<compile_context>
chip_gen: v7x
topology: tpu7x:2x2x1
jax: 0.10.0
libtpu: 0.0.40
codegen_flags: <defaults>
</compile_context>

<pallas_src>
import math

import jax
import jax.numpy as jnp
from jax import lax
from jax.experimental import pallas as pl
from jax.experimental.pallas import tpu as pltpu


def make_fused_encoder_kernel(B, L, D, H, F, FMAX):
    hd = D // H
    eps = 1e-5
    bf16 = jnp.bfloat16
    f32 = jnp.float32

    def kernel(x_ref, peT_ref, wqT_ref, wkT_ref, wvT_ref, wo_ref,
               w1_ref, w2_ref, vec_ref, o_ref):
        layer = pl.program_id(0)

        # Layer 0: seed the carried activation.  The output block has a
        # constant block index across the layer grid, so it stays resident in
        # VMEM and doubles as the layer-to-layer carry (single HBM writeback).
        @pl.when(layer == 0)
        def _():
            o_ref[...] = x_ref[...]

        x_all = o_ref[...]                       # (B*L, D) f32, batch-major
        x0 = x_all[:L, :]                        # (L, D)  batch 0 (ref quirk)
        x0T = jnp.transpose(x0)                  # (D, L)
        xpeT = x0T + peT_ref[...]                # (D, L)  PE added (batch 0)

        xpeT_bf = xpeT.astype(bf16)
        x0T_bf = x0T.astype(bf16)

        # ---- full-width projections (MXU-wide matmuls, scale folded in Wq) --
        qT = jnp.dot(wqT_ref[...], xpeT_bf, preferred_element_type=f32)  # (D,L)
        kT = jnp.dot(wkT_ref[...], xpeT_bf, preferred_element_type=f32)  # (D,L)
        vT = jnp.dot(wvT_ref[...], x0T_bf, preferred_element_type=f32)   # (D,L)

        # Head split only splits the leading/sublane dim (lane dim untouched).
        qh = jnp.transpose(qT.reshape(H, hd, L), (0, 2, 1)).astype(bf16)  # (H,L,hd)
        kh = jnp.transpose(kT.reshape(H, hd, L), (0, 2, 1)).astype(bf16)  # (H,L,hd)
        vT3 = vT.reshape(H, hd, L).astype(bf16)                           # (H,hd,L)

        # S = Q K^T (per head, scale already folded into Wq).
        s = jnp.einsum('hqd,hkd->hqk', qh, kh,
                       preferred_element_type=f32)           # (H, L, L) f32
        s = s - jnp.max(s, axis=-1, keepdims=True)
        probs = jnp.exp(s)
        probs = probs * pl.reciprocal(jnp.sum(probs, axis=-1, keepdims=True),
                                      approx=True)

        # P @ V computed transposed so the head merge is a leading-dim reshape.
        aoT3 = jnp.einsum('hdk,hqk->hdq', vT3, probs.astype(bf16),
                          preferred_element_type=f32)        # (H, hd, L)
        aoT = aoT3.reshape(D, L)                              # (D, L)
        ao = jnp.transpose(aoT).astype(bf16)                  # (L, D)
        attn0 = jnp.dot(ao, wo_ref[...],
                        preferred_element_type=f32)           # (L, D) f32

        # Broadcast batch-0 attention over every batch's residual (no concat:
        # broadcast add over a (B, L, D) view of the carried activation).
        h1 = (x_all.reshape(B, L, D) + attn0[None]).reshape(B * L, D)

        vec = vec_ref[...]                        # (8, FMAX) f32, packed vectors
        b1 = vec[0:1, :F]
        b2 = vec[1:2, :D]
        g1 = vec[2:3, :D]
        bt1 = vec[3:4, :D]
        g2 = vec[4:5, :D]
        bt2 = vec[5:6, :D]

        # Residual + LayerNorm 1 (one-pass variance).
        mu1 = jnp.mean(h1, axis=-1, keepdims=True)
        var1 = jnp.mean(h1 * h1, axis=-1, keepdims=True) - mu1 * mu1
        h1n = (h1 - mu1) * lax.rsqrt(var1 + eps) * g1 + bt1

        # Feed-forward: batches stacked -> one matmul pair.
        z = jnp.dot(h1n.astype(bf16), w1_ref[...],
                    preferred_element_type=f32) + b1
        z = jnp.maximum(z, 0.0)
        ff = jnp.dot(z.astype(bf16), w2_ref[...],
                     preferred_element_type=f32) + b2

        # Residual + LayerNorm 2 -> carried activation / final output.
        h2 = ff + h1n
        mu2 = jnp.mean(h2, axis=-1, keepdims=True)
        var2 = jnp.mean(h2 * h2, axis=-1, keepdims=True) - mu2 * mu2
        o_ref[...] = (h2 - mu2) * lax.rsqrt(var2 + eps) * g2 + bt2

    return kernel


def encoder_forward(x, pe, params, num_heads):
    """Run the full encoder stack in a single fused pallas_call."""
    B, L, D = x.shape
    NL = len(params)
    F = params[0]["w1"].shape[1]
    H = num_heads
    hd = D // H
    FMAX = max(D, F)
    bf16 = jnp.bfloat16
    scale = 1.0 / math.sqrt(hd)

    # Weight-only transforms done once in the wrapper (plain XLA ops):
    #  * attention scale folded into Wq,
    #  * Q/K/V weights pre-transposed so in-kernel projections are (D,D)@(D,L).
    wqT = jnp.stack([(p["wq"] * scale).T for p in params]).astype(bf16)  # (NL,D,D)
    wkT = jnp.stack([p["wk"].T for p in params]).astype(bf16)            # (NL,D,D)
    wvT = jnp.stack([p["wv"].T for p in params]).astype(bf16)            # (NL,D,D)
    wo = jnp.stack([p["wo"] for p in params]).astype(bf16)               # (NL,D,D)
    w1 = jnp.stack([p["w1"] for p in params]).astype(bf16)               # (NL,D,F)
    w2 = jnp.stack([p["w2"] for p in params]).astype(bf16)               # (NL,F,D)

    # Pack the six tiny per-layer vectors into one (NL, 8, FMAX) tensor.
    def padrow(v):
        return jnp.pad(v.astype(jnp.float32), ((0, 0), (0, FMAX - v.shape[1])))

    vec = jnp.stack([
        jnp.concatenate([padrow(p["b1"]), padrow(p["b2"]),
                         padrow(p["g1"]), padrow(p["bt1"]),
                         padrow(p["g2"]), padrow(p["bt2"]),
                         jnp.zeros((2, FMAX), jnp.float32)], axis=0)
        for p in params])                                                # (NL,8,FMAX)

    x2 = x.reshape(B * L, D).astype(jnp.float32)
    peT = pe.T.astype(jnp.float32)                                       # (D, L)

    kernel = make_fused_encoder_kernel(B, L, D, H, F, FMAX)

    def layer_spec(shape):
        zeros = (0,) * (len(shape) - 1)
        # Leading layer dim squeezed away -> kernel sees the per-layer tile.
        # (If weight DMA is ever exposed, add pipeline_mode=pl.Buffered(3).)
        return pl.BlockSpec((pl.Squeezed(),) + tuple(shape[1:]),
                            lambda l: (l,) + zeros)

    def const_spec(shape):
        zeros = (0,) * len(shape)
        return pl.BlockSpec(tuple(shape), lambda l: zeros)

    in_specs = [
        const_spec(x2.shape),
        const_spec(peT.shape),
        layer_spec(wqT.shape), layer_spec(wkT.shape), layer_spec(wvT.shape),
        layer_spec(wo.shape),
        layer_spec(w1.shape), layer_spec(w2.shape),
        layer_spec(vec.shape),
    ]

    out = pl.pallas_call(
        kernel,
        out_shape=jax.ShapeDtypeStruct((B * L, D), jnp.float32),
        grid=(NL,),
        in_specs=in_specs,
        out_specs=pl.BlockSpec((B * L, D), lambda l: (0, 0)),
        compiler_params=pltpu.CompilerParams(
            # Layer axis is a sequential carry -> "arbitrary".
            dimension_semantics=("arbitrary",),
            # Explicit VMEM budget, sized against v7x's 64 MiB (double-buffered
            # bf16 weights + resident f32 activation fit with large headroom).
            vmem_limit_bytes=64 * 1024 * 1024),
    )(x2, peT, wqT, wkT, wvT, wo, w1, w2, vec)
    return out.reshape(B, L, D)


def make_positional_encoding(L, D):
    pos = jnp.arange(L, dtype=jnp.float32)[:, None]
    i = jnp.arange(D // 2, dtype=jnp.float32)[None, :]
    angle = pos / (10000.0 ** (2.0 * i / D))
    pe = jnp.zeros((L, D), jnp.float32)
    pe = pe.at[:, 0::2].set(jnp.sin(angle))
    pe = pe.at[:, 1::2].set(jnp.cos(angle))
    return pe


def init_encoder_params(key, num_layers, D, F):
    params = []
    s = 0.05
    for _ in range(num_layers):
        key, kq, kk, kv, ko, k1, kb1, k2, kb2 = jax.random.split(key, 9)
        params.append(dict(
            wq=jax.random.normal(kq, (D, D), jnp.float32) * s,
            wk=jax.random.normal(kk, (D, D), jnp.float32) * s,
            wv=jax.random.normal(kv, (D, D), jnp.float32) * s,
            wo=jax.random.normal(ko, (D, D), jnp.float32) * s,
            w1=jax.random.normal(k1, (D, F), jnp.float32) * s,
            b1=jax.random.normal(kb1, (1, F), jnp.float32) * s,
            w2=jax.random.normal(k2, (F, D), jnp.float32) * s,
            b2=jax.random.normal(kb2, (1, D), jnp.float32) * s,
            g1=jnp.ones((1, D), jnp.float32),
            bt1=jnp.zeros((1, D), jnp.float32),
            g2=jnp.ones((1, D), jnp.float32),
            bt2=jnp.zeros((1, D), jnp.float32),
        ))
    return params


# ---------------- pure-JAX reference (for correctness check) ----------------
def _ln(h, g, bt, eps=1e-5):
    mu = jnp.mean(h, -1, keepdims=True)
    var = jnp.mean((h - mu) ** 2, -1, keepdims=True)
    return (h - mu) / jnp.sqrt(var + eps) * g + bt


def encoder_ref(x, pe, params, H):
    B, L, D = x.shape
    hd = D // H
    hp = lax.Precision.HIGHEST
    for p in params:
        xpe0 = x[0] + pe
        q0 = jnp.dot(xpe0, p["wq"], precision=hp)
        k0 = jnp.dot(xpe0, p["wk"], precision=hp)
        v0 = jnp.dot(x[0], p["wv"], precision=hp)
        q4 = q0.reshape(L, H, hd).transpose(1, 0, 2)
        k4 = k0.reshape(L, H, hd).transpose(1, 0, 2)
        v4 = v0.reshape(L, H, hd).transpose(1, 0, 2)
        s = jnp.einsum("hid,hjd->hij", q4, k4, precision=hp) / math.sqrt(hd)
        pr = jax.nn.softmax(s, axis=-1)
        ao = jnp.einsum("hij,hjd->hid", pr, v4, precision=hp)
        ao = ao.transpose(1, 0, 2).reshape(L, D)
        ao = jnp.dot(ao, p["wo"], precision=hp)
        h1 = _ln(ao[None] + x, p["g1"], p["bt1"])
        z = jnp.maximum(jnp.dot(h1, p["w1"], precision=hp) + p["b1"], 0.0)
        ff = jnp.dot(z, p["w2"], precision=hp) + p["b2"]
        x = _ln(ff + h1, p["g2"], p["bt2"])
    return x


if __name__ == "__main__":
    # Lane-dense model dim (D=128); other dims kept small for a quick test.
    B, L, D, H, NUM_LAYERS = 2, 16, 128, 8, 2
    F = 4 * D  # latent_dim defaults to embed_dim * 4

    key = jax.random.PRNGKey(0)
    kx, kp = jax.random.split(key)
    x = jax.random.normal(kx, (B, L, D), jnp.float32)
    params = init_encoder_params(kp, NUM_LAYERS, D, F)
    pe = make_positional_encoding(L, D)

    out = encoder_forward(x, pe, params, H)
    jax.block_until_ready(out)

    ref = encoder_ref(x, pe, params, H)
    assert out.shape == (B, L, D)
    err = jnp.max(jnp.abs(out - ref))
    assert jnp.allclose(out, ref, atol=3e-2, rtol=3e-2), f"max err {err}"

    print("KERNEL_OK")
</pallas_src>

<mosaic_0001>
module attributes {stable_mosaic.version = 11 : i64} {
  func.func @kernel(%arg0: i32, %arg1: memref<32x128xf32, #tpu.memory_space<vmem>>, %arg2: memref<128x16xf32, #tpu.memory_space<vmem>>, %arg3: memref<1x128x128xbf16, #tpu.memory_space<vmem>>, %arg4: memref<1x128x128xbf16, #tpu.memory_space<vmem>>, %arg5: memref<1x128x128xbf16, #tpu.memory_space<vmem>>, %arg6: memref<1x128x128xbf16, #tpu.memory_space<vmem>>, %arg7: memref<1x128x512xbf16, #tpu.memory_space<vmem>>, %arg8: memref<1x512x128xbf16, #tpu.memory_space<vmem>>, %arg9: memref<1x8x512xf32, #tpu.memory_space<vmem>>, %arg10: memref<32x128xf32, #tpu.memory_space<vmem>>) attributes {dimension_semantics = [#tpu.dimension_semantics<arbitrary>], iteration_bounds = array<i64: 2>, scalar_prefetch = 0 : i64, scratch_operands = 0 : i64, tpu.core_type = #tpu.core_type<tc>, window_params = [{pipeline_mode = #tpu.pipeline_mode<synchronous>, transform_indices = @transform_0, window_bounds = array<i64: 32, 128>}, {pipeline_mode = #tpu.pipeline_mode<synchronous>, transform_indices = @transform_1, window_bounds = array<i64: 128, 16>}, {transform_indices = @transform_2, window_bounds = array<i64: 1, 128, 128>}, {transform_indices = @transform_3, window_bounds = array<i64: 1, 128, 128>}, {transform_indices = @transform_4, window_bounds = array<i64: 1, 128, 128>}, {transform_indices = @transform_5, window_bounds = array<i64: 1, 128, 128>}, {transform_indices = @transform_6, window_bounds = array<i64: 1, 128, 512>}, {transform_indices = @transform_7, window_bounds = array<i64: 1, 512, 128>}, {transform_indices = @transform_8, window_bounds = array<i64: 1, 8, 512>}, {pipeline_mode = #tpu.pipeline_mode<synchronous>, transform_indices = @transform_9, window_bounds = array<i64: 32, 128>}]} {
    %c0_i32 = arith.constant 0 : i32
    %0 = arith.cmpi eq, %arg0, %c0_i32 : i32
    %1 = arith.extui %0 : i1 to i32
    %c0_i32_0 = arith.constant 0 : i32
    %2 = arith.cmpi ne, %1, %c0_i32_0 : i32
    scf.if %2 {
      %c0_47 = arith.constant 0 : index
      %c0_48 = arith.constant 0 : index
      %119 = vector.load %arg1[%c0_47, %c0_48] : memref<32x128xf32, #tpu.memory_space<vmem>>, vector<32x128xf32>
      %c0_49 = arith.constant 0 : index
      %c0_50 = arith.constant 0 : index
      %120 = vector.load %arg10[%c0_49, %c0_50] : memref<32x128xf32, #tpu.memory_space<vmem>>, vector<32x128xf32>
      tpu.vector_store %arg10[%c0_49, %c0_50], %119 {strides = array<i32>} : memref<32x128xf32, #tpu.memory_space<vmem>>, vector<32x128xf32>,
    } else {
    }
    %c0 = arith.constant 0 : index
    %c0_1 = arith.constant 0 : index
    %3 = vector.load %arg10[%c0, %c0_1] : memref<32x128xf32, #tpu.memory_space<vmem>>, vector<32x128xf32>
    %4 = vector.extract_strided_slice %3 {offsets = [0, 0], sizes = [16, 128], strides = [1, 1]} : vector<32x128xf32> to vector<16x128xf32>
    %5 = tpu.transpose %4, [1, 0] : vector<16x128xf32> -> vector<128x16xf32>
    %c0_2 = arith.constant 0 : index
    %c0_3 = arith.constant 0 : index
    %6 = vector.load %arg2[%c0_2, %c0_3] : memref<128x16xf32, #tpu.memory_space<vmem>>, vector<128x16xf32>
    %7 = arith.addf %5, %6 : vector<128x16xf32>
    %8 = arith.truncf %7 : vector<128x16xf32> to vector<128x16xbf16>
    %9 = arith.truncf %5 : vector<128x16xf32> to vector<128x16xbf16>
    %c0_4 = arith.constant 0 : index
    %c0_5 = arith.constant 0 : index
    %c0_6 = arith.constant 0 : index
    %10 = vector.load %arg3[%c0_4, %c0_5, %c0_6] : memref<1x128x128xbf16, #tpu.memory_space<vmem>>, vector<1x128x128xbf16>
    %11 = vector.shape_cast %10 : vector<1x128x128xbf16> to vector<128x128xbf16>
    %cst = arith.constant dense<0.000000e+00> : vector<128x16xf32>
    %12 = tpu.matmul %11, %8, %cst {dimension_numbers = #tpu.dot_dimension_numbers<[1], [0], [0], [1], [0, 0, 1, 1], [], []>} : vector<128x128xbf16>, vector<128x16xbf16>, vector<128x16xf32> -> vector<128x16xf32>
    %c0_7 = arith.constant 0 : index
    %c0_8 = arith.constant 0 : index
    %c0_9 = arith.constant 0 : index
    %13 = vector.load %arg4[%c0_7, %c0_8, %c0_9] : memref<1x128x128xbf16, #tpu.memory_space<vmem>>, vector<1x128x128xbf16>
    %14 = vector.shape_cast %13 : vector<1x128x128xbf16> to vector<128x128xbf16>
    %cst_10 = arith.constant dense<0.000000e+00> : vector<128x16xf32>
    %15 = tpu.matmul %14, %8, %cst_10 {dimension_numbers = #tpu.dot_dimension_numbers<[1], [0], [0], [1], [0, 0, 1, 1], [], []>} : vector<128x128xbf16>, vector<128x16xbf16>, vector<128x16xf32> -> vector<128x16xf32>
    %c0_11 = arith.constant 0 : index
    %c0_12 = arith.constant 0 : index
    %c0_13 = arith.constant 0 : index
    %16 = vector.load %arg5[%c0_11, %c0_12, %c0_13] : memref<1x128x128xbf16, #tpu.memory_space<vmem>>, vector<1x128x128xbf16>
    %17 = vector.shape_cast %16 : vector<1x128x128xbf16> to vector<128x128xbf16>
    %cst_14 = arith.constant dense<0.000000e+00> : vector<128x16xf32>
    %18 = tpu.matmul %17, %9, %cst_14 {dimension_numbers = #tpu.dot_dimension_numbers<[1], [0], [0], [1], [0, 0, 1, 1], [], []>} : vector<128x128xbf16>, vector<128x16xbf16>, vector<128x16xf32> -> vector<128x16xf32>
    %19 = vector.shape_cast %12 : vector<128x16xf32> to vector<8x16x16xf32>
    %20 = tpu.transpose %19, [0, 2, 1] : vector<8x16x16xf32> -> vector<8x16x16xf32>
    %21 = arith.truncf %20 : vector<8x16x16xf32> to vector<8x16x16xbf16>
    %22 = vector.shape_cast %15 : vector<128x16xf32> to vector<8x16x16xf32>
    %23 = tpu.transpose %22, [0, 2, 1] : vector<8x16x16xf32> -> vector<8x16x16xf32>
    %24 = arith.truncf %23 : vector<8x16x16xf32> to vector<8x16x16xbf16>
    %25 = vector.shape_cast %18 : vector<128x16xf32> to vector<8x16x16xf32>
    %26 = arith.truncf %25 : vector<8x16x16xf32> to vector<8x16x16xbf16>
    "tpu.trace_start"() <{level = 10 : i32, message = "hqd,hkd->hqk"}> : () -> ()
    %cst_15 = arith.constant dense<0.000000e+00> : vector<8x16x16xf32>
    %27 = tpu.matmul %21, %24, %cst_15 {dimension_numbers = #tpu.dot_dimension_numbers<[2], [2], [1], [1], [0, 0, 0, 1, 1, 1], [0], [0]>} : vector<8x16x16xbf16>, vector<8x16x16xbf16>, vector<8x16x16xf32> -> vector<8x16x16xf32>
    "tpu.trace_stop"() : () -> ()
    %cst_16 = arith.constant dense<0xFF800000> : vector<8x16xf32>
    %28 = vector.multi_reduction <maximumf>, %27, %cst_16 [2] : vector<8x16x16xf32> to vector<8x16xf32>
    %29 = vector.shape_cast %28 : vector<8x16xf32> to vector<8x16x1xf32>
    %30 = vector.broadcast %29 : vector<8x16x1xf32> to vector<8x16x16xf32>
    %31 = arith.subf %27, %30 : vector<8x16x16xf32>
    %32 = math.exp %31 : vector<8x16x16xf32>
    %cst_17 = arith.constant dense<0.000000e+00> : vector<8x16xf32>
    %33 = vector.multi_reduction <add>, %32, %cst_17 [2] : vector<8x16x16xf32> to vector<8x16xf32>
    %34 = vector.shape_cast %33 : vector<8x16xf32> to vector<8x16x1xf32>
    %35 = tpu.reciprocal %34 {approx = true} : vector<8x16x1xf32> -> vector<8x16x1xf32>
    %36 = vector.broadcast %35 : vector<8x16x1xf32> to vector<8x16x16xf32>
    %37 = arith.mulf %32, %36 : vector<8x16x16xf32>
    %38 = arith.truncf %37 : vector<8x16x16xf32> to vector<8x16x16xbf16>
    "tpu.trace_start"() <{level = 10 : i32, message = "hdk,hqk->hdq"}> : () -> ()
    %cst_18 = arith.constant dense<0.000000e+00> : vector<8x16x16xf32>
    %39 = tpu.matmul %26, %38, %cst_18 {dimension_numbers = #tpu.dot_dimension_numbers<[2], [2], [1], [1], [0, 0, 0, 1, 1, 1], [0], [0]>} : vector<8x16x16xbf16>, vector<8x16x16xbf16>, vector<8x16x16xf32> -> vector<8x16x16xf32>
    "tpu.trace_stop"() : () -> ()
    %40 = vector.shape_cast %39 : vector<8x16x16xf32> to vector<128x16xf32>
    %41 = tpu.transpose %40, [1, 0] : vector<128x16xf32> -> vector<16x128xf32>
    %42 = arith.truncf %41 : vector<16x128xf32> to vector<16x128xbf16>
    %c0_19 = arith.constant 0 : index
    %c0_20 = arith.constant 0 : index
    %c0_21 = arith.constant 0 : index
    %43 = vector.load %arg6[%c0_19, %c0_20, %c0_21] : memref<1x128x128xbf16, #tpu.memory_space<vmem>>, vector<1x128x128xbf16>
    %44 = vector.shape_cast %43 : vector<1x128x128xbf16> to vector<128x128xbf16>
    %cst_22 = arith.constant dense<0.000000e+00> : vector<16x128xf32>
    %45 = tpu.matmul %42, %44, %cst_22 {dimension_numbers = #tpu.dot_dimension_numbers<[1], [0], [0], [1], [0, 0, 1, 1], [], []>} : vector<16x128xbf16>, vector<128x128xbf16>, vector<16x128xf32> -> vector<16x128xf32>
    %46 = vector.shape_cast %3 : vector<32x128xf32> to vector<2x16x128xf32>
    %47 = vector.shape_cast %45 : vector<16x128xf32> to vector<1x16x128xf32>
    %48 = vector.broadcast %47 : vector<1x16x128xf32> to vector<2x16x128xf32>
    %49 = arith.addf %46, %48 : vector<2x16x128xf32>
    %50 = vector.shape_cast %49 : vector<2x16x128xf32> to vector<32x128xf32>
    %c0_23 = arith.constant 0 : index
    %c0_24 = arith.constant 0 : index
    %c0_25 = arith.constant 0 : index
    %51 = vector.load %arg9[%c0_23, %c0_24, %c0_25] : memref<1x8x512xf32, #tpu.memory_space<vmem>>, vector<1x8x512xf32>
    %52 = vector.shape_cast %51 : vector<1x8x512xf32> to vector<8x512xf32>
    %53 = vector.extract_strided_slice %52 {offsets = [0, 0], sizes = [1, 512], strides = [1, 1]} : vector<8x512xf32> to vector<1x512xf32>
    %54 = vector.extract_strided_slice %52 {offsets = [1, 0], sizes = [1, 128], strides = [1, 1]} : vector<8x512xf32> to vector<1x128xf32>
    %55 = vector.extract_strided_slice %52 {offsets = [2, 0], sizes = [1, 128], strides = [1, 1]} : vector<8x512xf32> to vector<1x128xf32>
    %56 = vector.extract_strided_slice %52 {offsets = [3, 0], sizes = [1, 128], strides = [1, 1]} : vector<8x512xf32> to vector<1x128xf32>
    %57 = vector.extract_strided_slice %52 {offsets = [4, 0], sizes = [1, 128], strides = [1, 1]} : vector<8x512xf32> to vector<1x128xf32>
    %58 = vector.extract_strided_slice %52 {offsets = [5, 0], sizes = [1, 128], strides = [1, 1]} : vector<8x512xf32> to vector<1x128xf32>
    %cst_26 = arith.constant dense<0.000000e+00> : vector<32xf32>
    %59 = vector.multi_reduction <add>, %50, %cst_26 [1] : vector<32x128xf32> to vector<32xf32>
    %60 = vector.shape_cast %59 : vector<32xf32> to vector<32x1xf32>
    %cst_27 = arith.constant 1.280000e+02 : f32
    %61 = vector.broadcast %cst_27 : f32 to vector<32x1xf32>
    %62 = arith.divf %60, %61 : vector<32x1xf32>
    %63 = arith.mulf %50, %50 : vector<32x128xf32>
    %cst_28 = arith.constant dense<0.000000e+00> : vector<32xf32>
    %64 = vector.multi_reduction <add>, %63, %cst_28 [1] : vector<32x128xf32> to vector<32xf32>
    %65 = vector.shape_cast %64 : vector<32xf32> to vector<32x1xf32>
    %cst_29 = arith.constant 1.280000e+02 : f32
    %66 = vector.broadcast %cst_29 : f32 to vector<32x1xf32>
    %67 = arith.divf %65, %66 : vector<32x1xf32>
    %68 = arith.mulf %62, %62 : vector<32x1xf32>
    %69 = arith.subf %67, %68 : vector<32x1xf32>
    %70 = vector.broadcast %62 : vector<32x1xf32> to vector<32x128xf32>
    %71 = arith.subf %50, %70 : vector<32x128xf32>
    %cst_30 = arith.constant 9.99999974E-6 : f32
    %72 = vector.broadcast %cst_30 : f32 to vector<32x1xf32>
    %73 = arith.addf %69, %72 : vector<32x1xf32>
    %74 = math.rsqrt %73 : vector<32x1xf32>
    %75 = vector.broadcast %74 : vector<32x1xf32> to vector<32x128xf32>
    %76 = arith.mulf %71, %75 : vector<32x128xf32>
    %77 = vector.broadcast %55 : vector<1x128xf32> to vector<32x128xf32>
    %78 = arith.mulf %76, %77 : vector<32x128xf32>
    %79 = vector.broadcast %56 : vector<1x128xf32> to vector<32x128xf32>
    %80 = arith.addf %78, %79 : vector<32x128xf32>
    %81 = arith.truncf %80 : vector<32x128xf32> to vector<32x128xbf16>
    %c0_31 = arith.constant 0 : index
    %c0_32 = arith.constant 0 : index
    %c0_33 = arith.constant 0 : index
    %82 = vector.load %arg7[%c0_31, %c0_32, %c0_33] : memref<1x128x512xbf16, #tpu.memory_space<vmem>>, vector<1x128x512xbf16>
    %83 = vector.shape_cast %82 : vector<1x128x512xbf16> to vector<128x512xbf16>
    %cst_34 = arith.constant dense<0.000000e+00> : vector<32x512xf32>
    %84 = tpu.matmul %81, %83, %cst_34 {dimension_numbers = #tpu.dot_dimension_numbers<[1], [0], [0], [1], [0, 0, 1, 1], [], []>} : vector<32x128xbf16>, vector<128x512xbf16>, vector<32x512xf32> -> vector<32x512xf32>
    %85 = vector.broadcast %53 : vector<1x512xf32> to vector<32x512xf32>
    %86 = arith.addf %84, %85 : vector<32x512xf32>
    %cst_35 = arith.constant 0.000000e+00 : f32
    %87 = vector.broadcast %cst_35 : f32 to vector<32x512xf32>
    %88 = arith.maximumf %86, %87 : vector<32x512xf32>
    %89 = arith.truncf %88 : vector<32x512xf32> to vector<32x512xbf16>
    %c0_36 = arith.constant 0 : index
    %c0_37 = arith.constant 0 : index
    %c0_38 = arith.constant 0 : index
    %90 = vector.load %arg8[%c0_36, %c0_37, %c0_38] : memref<1x512x128xbf16, #tpu.memory_space<vmem>>, vector<1x512x128xbf16>
    %91 = vector.shape_cast %90 : vector<1x512x128xbf16> to vector<512x128xbf16>
    %cst_39 = arith.constant dense<0.000000e+00> : vector<32x128xf32>
    %92 = tpu.matmul %89, %91, %cst_39 {dimension_numbers = #tpu.dot_dimension_numbers<[1], [0], [0], [1], [0, 0, 1, 1], [], []>} : vector<32x512xbf16>, vector<512x128xbf16>, vector<32x128xf32> -> vector<32x128xf32>
    %93 = vector.broadcast %54 : vector<1x128xf32> to vector<32x128xf32>
    %94 = arith.addf %92, %93 : vector<32x128xf32>
    %95 = arith.addf %94, %80 : vector<32x128xf32>
    %cst_40 = arith.constant dense<0.000000e+00> : vector<32xf32>
    %96 = vector.multi_reduction <add>, %95, %cst_40 [1] : vector<32x128xf32> to vector<32xf32>
    %97 = vector.shape_cast %96 : vector<32xf32> to vector<32x1xf32>
    %cst_41 = arith.constant 1.280000e+02 : f32
    %98 = vector.broadcast %cst_41 : f32 to vector<32x1xf32>
    %99 = arith.divf %97, %98 : vector<32x1xf32>
    %100 = arith.mulf %95, %95 : vector<32x128xf32>
    %cst_42 = arith.constant dense<0.000000e+00> : vector<32xf32>
    %101 = vector.multi_reduction <add>, %100, %cst_42 [1] : vector<32x128xf32> to vector<32xf32>
    %102 = vector.shape_cast %101 : vector<32xf32> to vector<32x1xf32>
    %cst_43 = arith.constant 1.280000e+02 : f32
    %103 = vector.broadcast %cst_43 : f32 to vector<32x1xf32>
    %104 = arith.divf %102, %103 : vector<32x1xf32>
    %105 = arith.mulf %99, %99 : vector<32x1xf32>
    %106 = arith.subf %104, %105 : vector<32x1xf32>
    %107 = vector.broadcast %99 : vector<32x1xf32> to vector<32x128xf32>
    %108 = arith.subf %95, %107 : vector<32x128xf32>
    %cst_44 = arith.constant 9.99999974E-6 : f32
    %109 = vector.broadcast %cst_44 : f32 to vector<32x1xf32>
    %110 = arith.addf %106, %109 : vector<32x1xf32>
    %111 = math.rsqrt %110 : vector<32x1xf32>
    %112 = vector.broadcast %111 : vector<32x1xf32> to vector<32x128xf32>
    %113 = arith.mulf %108, %112 : vector<32x128xf32>
    %114 = vector.broadcast %57 : vector<1x128xf32> to vector<32x128xf32>
    %115 = arith.mulf %113, %114 : vector<32x128xf32>
    %116 = vector.broadcast %58 : vector<1x128xf32> to vector<32x128xf32>
    %117 = arith.addf %115, %116 : vector<32x128xf32>
    %c0_45 = arith.constant 0 : index
    %c0_46 = arith.constant 0 : index
    %118 = vector.load %arg10[%c0_45, %c0_46] : memref<32x128xf32, #tpu.memory_space<vmem>>, vector<32x128xf32>
    tpu.vector_store %arg10[%c0_45, %c0_46], %117 {strides = array<i32>} : memref<32x128xf32, #tpu.memory_space<vmem>>, vector<32x128xf32>,
    return
  }
  func.func @transform_0(%arg0: i32) -> (i32, i32) {
    %c0_i32 = arith.constant 0 : i32
    %c0_i32_0 = arith.constant 0 : i32
    %c0_i32_1 = arith.constant 0 : i32
    return %c0_i32, %c0_i32_0 : i32, i32
  }
  func.func @transform_1(%arg0: i32) -> (i32, i32) {
    %c0_i32 = arith.constant 0 : i32
    %c0_i32_0 = arith.constant 0 : i32
    %c0_i32_1 = arith.constant 0 : i32
    return %c0_i32, %c0_i32_0 : i32, i32
  }
  func.func @transform_2(%arg0: i32) -> (i32, i32, i32) {
    %c0_i32 = arith.constant 0 : i32
    %c0_i32_0 = arith.constant 0 : i32
    %c0_i32_1 = arith.constant 0 : i32
    return %arg0, %c0_i32, %c0_i32_0 : i32, i32, i32
  }
  func.func @transform_3(%arg0: i32) -> (i32, i32, i32) {
    %c0_i32 = arith.constant 0 : i32
    %c0_i32_0 = arith.constant 0 : i32
    %c0_i32_1 = arith.constant 0 : i32
    return %arg0, %c0_i32, %c0_i32_0 : i32, i32, i32
  }
  func.func @transform_4(%arg0: i32) -> (i32, i32, i32) {
    %c0_i32 = arith.constant 0 : i32
    %c0_i32_0 = arith.constant 0 : i32
    %c0_i32_1 = arith.constant 0 : i32
    return %arg0, %c0_i32, %c0_i32_0 : i32, i32, i32
  }
  func.func @transform_5(%arg0: i32) -> (i32, i32, i32) {
    %c0_i32 = arith.constant 0 : i32
    %c0_i32_0 = arith.constant 0 : i32
    %c0_i32_1 = arith.constant 0 : i32
    return %arg0, %c0_i32, %c0_i32_0 : i32, i32, i32
  }
  func.func @transform_6(%arg0: i32) -> (i32, i32, i32) {
    %c0_i32 = arith.constant 0 : i32
    %c0_i32_0 = arith.constant 0 : i32
    %c0_i32_1 = arith.constant 0 : i32
    return %arg0, %c0_i32, %c0_i32_0 : i32, i32, i32
  }
  func.func @transform_7(%arg0: i32) -> (i32, i32, i32) {
    %c0_i32 = arith.constant 0 : i32
    %c0_i32_0 = arith.constant 0 : i32
    %c0_i32_1 = arith.constant 0 : i32
    return %arg0, %c0_i32, %c0_i32_0 : i32, i32, i32
  }
  func.func @transform_8(%arg0: i32) -> (i32, i32, i32) {
    %c0_i32 = arith.constant 0 : i32
    %c0_i32_0 = arith.constant 0 : i32
    %c0_i32_1 = arith.constant 0 : i32
    return %arg0, %c0_i32, %c0_i32_0 : i32, i32, i32
  }
  func.func @transform_9(%arg0: i32) -> (i32, i32) {
    %c0_i32 = arith.constant 0 : i32
    %c0_i32_0 = arith.constant 0 : i32
    %c0_i32_1 = arith.constant 0 : i32
    return %c0_i32, %c0_i32_0 : i32, i32
  }
}

</mosaic_0001>

<llo_original>
// kernel: tpu_custom_call.1
$region0: #{tpu_custom_call.1}
  #allocation0 [shape = 'u32[]', space=smem, size = 0x4, offset = 0x4, fixed_abs, tag = 'smem constant byte address 0x4 - core index']
  #allocation1 [shape = 'u32[144,128]{1,0:T(1,128)}', space=vmem, size = 0x12000, scoped, tag = 'internal scratch']
  %s0 = inlined_call_operand.hbm [shape: f32[32,128], index: 0, kind: input, shape index: {}]
  %s1 = inlined_call_operand.hbm [shape: f32[128,16], index: 1, kind: input, shape index: {}]
  %s2 = inlined_call_operand.hbm [shape: bf16[2,128,128], index: 2, kind: input, shape index: {}]
  %s3 = inlined_call_operand.hbm [shape: bf16[2,128,128], index: 3, kind: input, shape index: {}]
  %s4 = inlined_call_operand.hbm [shape: bf16[2,128,128], index: 4, kind: input, shape index: {}]
  %s5 = inlined_call_operand.hbm [shape: bf16[2,128,128], index: 5, kind: input, shape index: {}]
  %s6 = inlined_call_operand.hbm [shape: bf16[2,128,512], index: 6, kind: input, shape index: {}]
  %s7 = inlined_call_operand.hbm [shape: bf16[2,512,128], index: 7, kind: input, shape index: {}]
  %s8 = inlined_call_operand.hbm [shape: f32[2,8,512], index: 8, kind: input, shape index: {}]
  %s9 = inlined_call_operand.hbm [shape: f32[32,128], index: 9, kind: output, shape index: {}]
  %s10 = sld [smem:[#allocation0]]
  $region109: #{tpu_custom_call.1} parent=0
    _
  %s12 = ssub.s32 1, %s10
  %s13 = scalar_select 0, %s12, %s10
  $region1: #{tpu_custom_call.1} parent=0
    #allocation2 [shape = 'u8[16384]{0}', space=vmem, size = 0x4000, scoped, tag = 'input window, operand 0, single buffered']
    #allocation3 [shape = 's32[2]{0}', space=sflag, size = 0x8, scoped, tag = 'scoped memory for tpu_custom_call.1']
    #allocation4 [shape = 's32[2]{0}', space=sflag, size = 0x8, scoped, tag = 'scoped memory for tpu_custom_call.1']
    #allocation5 [shape = 'u8[65536]{0}', space=vmem, size = 0x10000, scoped, tag = 'input window, operand 1, single buffered']
    #allocation6 [shape = 's32[1]{0}', space=sflag, size = 0x4, scoped, tag = 'scoped memory for tpu_custom_call.1']
    #allocation7 [shape = 'u8[65536]{0}', space=vmem, size = 0x10000, scoped, tag = 'input window, operand 2']
    #allocation8 [shape = 'u8[65536]{0}', space=vmem, size = 0x10000, scoped, tag = 'input window, operand 3']
    #allocation9 [shape = 'u8[65536]{0}', space=vmem, size = 0x10000, scoped, tag = 'input window, operand 4']
    #allocation10 [shape = 'u8[65536]{0}', space=vmem, size = 0x10000, scoped, tag = 'input window, operand 5']
    #allocation11 [shape = 'u8[262144]{0}', space=vmem, size = 0x40000, scoped, tag = 'input window, operand 6']
    #allocation12 [shape = 'u8[262144]{0}', space=vmem, size = 0x40000, scoped, tag = 'input window, operand 7']
    #allocation13 [shape = 'u8[32768]{0}', space=vmem, size = 0x8000, scoped, tag = 'input window, operand 8']
    #allocation14 [shape = 'u8[16384]{0}', space=vmem, size = 0x4000, scoped, tag = 'output window, operand 0, single buffered']
    %14 = vsyncpa [#allocation3], 0
    %15 = vsyncpa [#allocation6], 0
    %16 = vsyncpa [#allocation4], 0
    loop: start=0, step=1, limit=4
    $region2: #{tpu_custom_call.1} parent=1 // loop_pre_header
      _
    $region3: #{tpu_custom_call.1} parent=1 // loop_header
      %s18 = sphi 0, %s22
      %p19 = scmp.ge.s32.totalorder %s18, 4
      %s26 = sphi 0, %s26
      %s28 = sphi 0, %s26
      %s29 = sphi 0, %s28
      %s43 = sphi 0, %s29
      %s47 = sphi 0, %s47
      %s49 = sphi 0, %s47
      %s50 = sphi 0, %s49
      %s64 = sphi 0, %s50
      %s70 = sphi 0, %s72
      %s73 = sphi 0, %s70
      %s74 = sphi 0, %s73
      %s90 = sphi 0, %s74
      %s96 = sphi 0, %s98
      %s99 = sphi 0, %s96
      %s100 = sphi 0, %s99
      %s116 = sphi 0, %s100
      %s122 = sphi 0, %s124
      %s125 = sphi 0, %s122
      %s126 = sphi 0, %s125
      %s142 = sphi 0, %s126
      %s148 = sphi 0, %s150
      %s151 = sphi 0, %s148
      %s152 = sphi 0, %s151
      %s168 = sphi 0, %s152
      %s174 = sphi 0, %s176
      %s177 = sphi 0, %s174
      %s178 = sphi 0, %s177
      %s194 = sphi 0, %s178
      %s200 = sphi 0, %s202
      %s203 = sphi 0, %s200
      %s204 = sphi 0, %s203
      %s220 = sphi 0, %s204
      %s226 = sphi 0, %s228
      %s229 = sphi 0, %s226
      %s230 = sphi 0, %s229
      %s246 = sphi 0, %s230
      %s250 = sphi 0, %s250
      %s252 = sphi 0, %s250
      %s253 = sphi 0, %s252
      %s267 = sphi 0, %s253
    $region4: #{tpu_custom_call.1} parent=1 // loop_header_branch
      %21 = sbr.rel (%p19) target = $region8
    $region5: #{tpu_custom_call.1} parent=1 // loop_body
      %s23 = ssub.s32 %s18, 1
      %s24 = ssub.s32 %s18, 2
      %s25 = sadd.s32 %s18, 1
      %s27 = sadd.s32 %s26, 1
      %p30 = scmp.eq.s32.totalorder %s18, 1
      %p31 = scmp.ne.s32.totalorder %s26, %s28
      %p32 = scmp.eq.s32.totalorder %s18, 0
      %p33 = por %p31, %p32
      %p34 = scmp.ne.s32.totalorder %s26, %s28
      %p35 = scmp.eq.s32.totalorder %s23, 1
      %p36 = por %p34, %p35
      %p37 = scmp.ne.s32.totalorder %s28, %s29
      %p38 = scmp.eq.s32.totalorder %s23, 0
      %p39 = por %p37, %p38
      %p40 = scmp.ne.s32.totalorder %s28, %s29
      %p41 = scmp.eq.s32.totalorder %s24, 1
      %p42 = por %p40, %p41
      %p44 = scmp.ne.s32.totalorder %s29, %s43
      %p45 = scmp.eq.s32.totalorder %s24, 0
      %p46 = por %p44, %p45
      %s48 = sadd.s32 %s47, 1
      %p51 = scmp.eq.s32.totalorder %s18, 1
      %p52 = scmp.ne.s32.totalorder %s47, %s49
      %p53 = scmp.eq.s32.totalorder %s18, 0
      %p54 = por %p52, %p53
      %p55 = scmp.ne.s32.totalorder %s47, %s49
      %p56 = scmp.eq.s32.totalorder %s23, 1
      %p57 = por %p55, %p56
      %p58 = scmp.ne.s32.totalorder %s49, %s50
      %p59 = scmp.eq.s32.totalorder %s23, 0
      %p60 = por %p58, %p59
      %p61 = scmp.ne.s32.totalorder %s49, %s50
      %p62 = scmp.eq.s32.totalorder %s24, 1
      %p63 = por %p61, %p62
      %p65 = scmp.ne.s32.totalorder %s50, %s64
      %p66 = scmp.eq.s32.totalorder %s24, 0
      %p67 = por %p65, %p66
      %s68 = ssub.s32 %s18, %s25
      %p69 = scmp.eq.s32.totalorder %s68, 0
      %s71 = sadd.s32 %s70, 1
      %s72 = scalar_select %p69, %s70, %s71
      %p75 = pneg %p69
      %p76 = scmp.eq.s32.totalorder %s18, 1
      %p77 = por %p75, %p76
      %p78 = scmp.ne.s32.totalorder %s70, %s73
      %p79 = scmp.eq.s32.totalorder %s18, 0
      %p80 = por %p78, %p79
      %p81 = scmp.ne.s32.totalorder %s70, %s73
      %p82 = scmp.eq.s32.totalorder %s23, 1
      %p83 = por %p81, %p82
      %p84 = scmp.ne.s32.totalorder %s73, %s74
      %p85 = scmp.eq.s32.totalorder %s23, 0
      %p86 = por %p84, %p85
      %p87 = scmp.ne.s32.totalorder %s73, %s74
      %p88 = scmp.eq.s32.totalorder %s24, 1
      %p89 = por %p87, %p88
      %p91 = scmp.ne.s32.totalorder %s74, %s90
      %p92 = scmp.eq.s32.totalorder %s24, 0
      %p93 = por %p91, %p92
      %s94 = ssub.s32 %s18, %s25
      %p95 = scmp.eq.s32.totalorder %s94, 0
      %s97 = sadd.s32 %s96, 1
      %s98 = scalar_select %p95, %s96, %s97
      %p101 = pneg %p95
      %p102 = scmp.eq.s32.totalorder %s18, 1
      %p103 = por %p101, %p102
      %p104 = scmp.ne.s32.totalorder %s96, %s99
      %p105 = scmp.eq.s32.totalorder %s18, 0
      %p106 = por %p104, %p105
      %p107 = scmp.ne.s32.totalorder %s96, %s99
      %p108 = scmp.eq.s32.totalorder %s23, 1
      %p109 = por %p107, %p108
      %p110 = scmp.ne.s32.totalorder %s99, %s100
      %p111 = scmp.eq.s32.totalorder %s23, 0
      %p112 = por %p110, %p111
      %p113 = scmp.ne.s32.totalorder %s99, %s100
      %p114 = scmp.eq.s32.totalorder %s24, 1
      %p115 = por %p113, %p114
      %p117 = scmp.ne.s32.totalorder %s100, %s116
      %p118 = scmp.eq.s32.totalorder %s24, 0
      %p119 = por %p117, %p118
      %s120 = ssub.s32 %s18, %s25
      %p121 = scmp.eq.s32.totalorder %s120, 0
      %s123 = sadd.s32 %s122, 1
      %s124 = scalar_select %p121, %s122, %s123
      %p127 = pneg %p121
      %p128 = scmp.eq.s32.totalorder %s18, 1
      %p129 = por %p127, %p128
      %p130 = scmp.ne.s32.totalorder %s122, %s125
      %p131 = scmp.eq.s32.totalorder %s18, 0
      %p132 = por %p130, %p131
      %p133 = scmp.ne.s32.totalorder %s122, %s125
      %p134 = scmp.eq.s32.totalorder %s23, 1
      %p135 = por %p133, %p134
      %p136 = scmp.ne.s32.totalorder %s125, %s126
      %p137 = scmp.eq.s32.totalorder %s23, 0
      %p138 = por %p136, %p137
      %p139 = scmp.ne.s32.totalorder %s125, %s126
      %p140 = scmp.eq.s32.totalorder %s24, 1
      %p141 = por %p139, %p140
      %p143 = scmp.ne.s32.totalorder %s126, %s142
      %p144 = scmp.eq.s32.totalorder %s24, 0
      %p145 = por %p143, %p144
      %s146 = ssub.s32 %s18, %s25
      %p147 = scmp.eq.s32.totalorder %s146, 0
      %s149 = sadd.s32 %s148, 1
      %s150 = scalar_select %p147, %s148, %s149
      %p153 = pneg %p147
      %p154 = scmp.eq.s32.totalorder %s18, 1
      %p155 = por %p153, %p154
      %p156 = scmp.ne.s32.totalorder %s148, %s151
      %p157 = scmp.eq.s32.totalorder %s18, 0
      %p158 = por %p156, %p157
      %p159 = scmp.ne.s32.totalorder %s148, %s151
      %p160 = scmp.eq.s32.totalorder %s23, 1
      %p161 = por %p159, %p160
      %p162 = scmp.ne.s32.totalorder %s151, %s152
      %p163 = scmp.eq.s32.totalorder %s23, 0
      %p164 = por %p162, %p163
      %p165 = scmp.ne.s32.totalorder %s151, %s152
      %p166 = scmp.eq.s32.totalorder %s24, 1
      %p167 = por %p165, %p166
      %p169 = scmp.ne.s32.totalorder %s152, %s168
      %p170 = scmp.eq.s32.totalorder %s24, 0
      %p171 = por %p169, %p170
      %s172 = ssub.s32 %s18, %s25
      %p173 = scmp.eq.s32.totalorder %s172, 0
      %s175 = sadd.s32 %s174, 1
      %s176 = scalar_select %p173, %s174, %s175
      %p179 = pneg %p173
      %p180 = scmp.eq.s32.totalorder %s18, 1
      %p181 = por %p179, %p180
      %p182 = scmp.ne.s32.totalorder %s174, %s177
      %p183 = scmp.eq.s32.totalorder %s18, 0
      %p184 = por %p182, %p183
      %p185 = scmp.ne.s32.totalorder %s174, %s177
      %p186 = scmp.eq.s32.totalorder %s23, 1
      %p187 = por %p185, %p186
      %p188 = scmp.ne.s32.totalorder %s177, %s178
      %p189 = scmp.eq.s32.totalorder %s23, 0
      %p190 = por %p188, %p189
      %p191 = scmp.ne.s32.totalorder %s177, %s178
      %p192 = scmp.eq.s32.totalorder %s24, 1
      %p193 = por %p191, %p192
      %p195 = scmp.ne.s32.totalorder %s178, %s194
      %p196 = scmp.eq.s32.totalorder %s24, 0
      %p197 = por %p195, %p196
      %s198 = ssub.s32 %s18, %s25
      %p199 = scmp.eq.s32.totalorder %s198, 0
      %s201 = sadd.s32 %s200, 1
      %s202 = scalar_select %p199, %s200, %s201
      %p205 = pneg %p199
      %p206 = scmp.eq.s32.totalorder %s18, 1
      %p207 = por %p205, %p206
      %p208 = scmp.ne.s32.totalorder %s200, %s203
      %p209 = scmp.eq.s32.totalorder %s18, 0
      %p210 = por %p208, %p209
      %p211 = scmp.ne.s32.totalorder %s200, %s203
      %p212 = scmp.eq.s32.totalorder %s23, 1
      %p213 = por %p211, %p212
      %p214 = scmp.ne.s32.totalorder %s203, %s204
      %p215 = scmp.eq.s32.totalorder %s23, 0
      %p216 = por %p214, %p215
      %p217 = scmp.ne.s32.totalorder %s203, %s204
      %p218 = scmp.eq.s32.totalorder %s24, 1
      %p219 = por %p217, %p218
      %p221 = scmp.ne.s32.totalorder %s204, %s220
      %p222 = scmp.eq.s32.totalorder %s24, 0
      %p223 = por %p221, %p222
      %s224 = ssub.s32 %s18, %s25
      %p225 = scmp.eq.s32.totalorder %s224, 0
      %s227 = sadd.s32 %s226, 1
      %s228 = scalar_select %p225, %s226, %s227
      %p231 = pneg %p225
      %p232 = scmp.eq.s32.totalorder %s18, 1
      %p233 = por %p231, %p232
      %p234 = scmp.ne.s32.totalorder %s226, %s229
      %p235 = scmp.eq.s32.totalorder %s18, 0
      %p236 = por %p234, %p235
      %p237 = scmp.ne.s32.totalorder %s226, %s229
      %p238 = scmp.eq.s32.totalorder %s23, 1
      %p239 = por %p237, %p238
      %p240 = scmp.ne.s32.totalorder %s229, %s230
      %p241 = scmp.eq.s32.totalorder %s23, 0
      %p242 = por %p240, %p241
      %p243 = scmp.ne.s32.totalorder %s229, %s230
      %p244 = scmp.eq.s32.totalorder %s24, 1
      %p245 = por %p243, %p244
      %p247 = scmp.ne.s32.totalorder %s230, %s246
      %p248 = scmp.eq.s32.totalorder %s24, 0
      %p249 = por %p247, %p248
      %s251 = sadd.s32 %s250, 1
      %p254 = scmp.eq.s32.totalorder %s18, 1
      %p255 = scmp.ne.s32.totalorder %s250, %s252
      %p256 = scmp.eq.s32.totalorder %s18, 0
      %p257 = por %p255, %p256
      %p258 = scmp.ne.s32.totalorder %s250, %s252
      %p259 = scmp.eq.s32.totalorder %s23, 1
      %p260 = por %p258, %p259
      %p261 = scmp.ne.s32.totalorder %s252, %s253
      %p262 = scmp.eq.s32.totalorder %s23, 0
      %p263 = por %p261, %p262
      %p264 = scmp.ne.s32.totalorder %s252, %s253
      %p265 = scmp.eq.s32.totalorder %s24, 1
      %p266 = por %p264, %p265
      %p268 = scmp.ne.s32.totalorder %s253, %s267
      %p269 = scmp.eq.s32.totalorder %s24, 0
      %p270 = por %p268, %p269
      %p271 = scmp.le.s32.totalorder 1, %s18
      %p272 = scmp.lt.s32.totalorder %s18, 3
      %p273 = pnand %p271, %p272
      %p274 = pneg %p273
      // Predicated region
      $region9: #{tpu_custom_call.1} parent=5 // pred_check
        _
      $region10: #{tpu_custom_call.1} parent=5 // pred_check_branch
        %276 = sbr.rel (%p273) target = $region12
      $region11: #{tpu_custom_call.1} parent=5 // pred_region
        %s277 = ssub.s32 %s18, 1
        // Predicated region
        $region13: #{tpu_custom_call.1} parent=11 // pred_check
          %p278 = pneg %p39
        $region14: #{tpu_custom_call.1} parent=11 // pred_check_branch
          %280 = sbr.rel (%p278) target = $region16
        $region15: #{tpu_custom_call.1} parent=11 // pred_region
          %s282 = ssub.s32 512, 512
          %283 = vsyncadd [#allocation3], %s282
          %s284 = sshll.u32 [#allocation2], 4
          %s285 = int_to_ptr.vmem [resolvable:$true] %s284
          %290 = dma.hbm_to_vmem [thread:$0]  %s0, 512, %s285, [#allocation3], 128, 128, 8
        $region16: #{tpu_custom_call.1} parent=11 // pred_fallthru
          _
        // Predicated region
        $region17: #{tpu_custom_call.1} parent=11 // pred_check
          %p291 = pneg %p60
        $region18: #{tpu_custom_call.1} parent=11 // pred_check_branch
          %293 = sbr.rel (%p291) target = $region20
        $region19: #{tpu_custom_call.1} parent=11 // pred_region
          %s295 = ssub.s32 2048, 2048
          %296 = vsyncadd [#allocation6], %s295
          %s297 = sshll.u32 [#allocation5], 4
          %s298 = int_to_ptr.vmem [resolvable:$true] %s297
          %303 = dma.hbm_to_vmem [thread:$0]  %s1, 2048, %s298, [#allocation6], 128, 128, 8
        $region20: #{tpu_custom_call.1} parent=11 // pred_fallthru
          _
      $region12: #{tpu_custom_call.1} parent=5 // pred_fallthru
        _
      %p304 = scmp.lt.s32.totalorder %s18, 2
      // Predicated region
      $region21: #{tpu_custom_call.1} parent=5 // pred_check
        %p305 = pneg %p304
      $region22: #{tpu_custom_call.1} parent=5 // pred_check_branch
        %307 = sbr.rel (%p305) target = $region24
      $region23: #{tpu_custom_call.1} parent=5 // pred_region
        // Predicated region
        $region25: #{tpu_custom_call.1} parent=23 // pred_check
          %p308 = pneg %p80
        $region26: #{tpu_custom_call.1} parent=23 // pred_check_branch
          %310 = sbr.rel (%p308) target = $region28
        $region27: #{tpu_custom_call.1} parent=23 // pred_region
          %s311 = sand.u32 %s18, 1
          %s312 = scalar_lea.sflag [#allocation3], %s311
          %s313 = sand.u32 %s70, 1
          %s314 = smul.addr %s313, 64
          %s315 = scalar_lea.vmem [#allocation7], %s314
          %s317 = ssub.s32 1024, 1024
          %318 = vsyncadd %s312, %s317
          %s319 = smul.addr %s18, 16
          %s320 = smul.addr %s319, 64
          %s321 = scalar_lea.hbm %s2, %s320
          %s322 = sshll.u32 %s315, 4
          %s323 = int_to_ptr.vmem [resolvable:$true] %s322
          %328 = dma.hbm_to_vmem [thread:$0]  %s321, 1024, %s323, %s312, 64, 64, 4
        $region28: #{tpu_custom_call.1} parent=23 // pred_fallthru
          _
        // Predicated region
        $region29: #{tpu_custom_call.1} parent=23 // pred_check
          %p329 = pneg %p106
        $region30: #{tpu_custom_call.1} parent=23 // pred_check_branch
          %331 = sbr.rel (%p329) target = $region32
        $region31: #{tpu_custom_call.1} parent=23 // pred_region
          %s332 = sand.u32 %s18, 1
          %s333 = scalar_lea.sflag [#allocation3], %s332
          %s334 = sand.u32 %s96, 1
          %s335 = smul.addr %s334, 64
          %s336 = scalar_lea.vmem [#allocation8], %s335
          %s338 = ssub.s32 1024, 1024
          %339 = vsyncadd %s333, %s338
          %s340 = smul.addr %s18, 16
          %s341 = smul.addr %s340, 64
          %s342 = scalar_lea.hbm %s3, %s341
          %s343 = sshll.u32 %s336, 4
          %s344 = int_to_ptr.vmem [resolvable:$true] %s343
          %349 = dma.hbm_to_vmem [thread:$0]  %s342, 1024, %s344, %s333, 64, 64, 4
        $region32: #{tpu_custom_call.1} parent=23 // pred_fallthru
          _
        // Predicated region
        $region33: #{tpu_custom_call.1} parent=23 // pred_check
          %p350 = pneg %p132
        $region34: #{tpu_custom_call.1} parent=23 // pred_check_branch
          %352 = sbr.rel (%p350) target = $region36
        $region35: #{tpu_custom_call.1} parent=23 // pred_region
          %s353 = sand.u32 %s18, 1
          %s354 = scalar_lea.sflag [#allocation3], %s353
          %s355 = sand.u32 %s122, 1
          %s356 = smul.addr %s355, 64
          %s357 = scalar_lea.vmem [#allocation9], %s356
          %s359 = ssub.s32 1024, 1024
          %360 = vsyncadd %s354, %s359
          %s361 = smul.addr %s18, 16
          %s362 = smul.addr %s361, 64
          %s363 = scalar_lea.hbm %s4, %s362
          %s364 = sshll.u32 %s357, 4
          %s365 = int_to_ptr.vmem [resolvable:$true] %s364
          %370 = dma.hbm_to_vmem [thread:$0]  %s363, 1024, %s365, %s354, 64, 64, 4
        $region36: #{tpu_custom_call.1} parent=23 // pred_fallthru
          _
        // Predicated region
        $region37: #{tpu_custom_call.1} parent=23 // pred_check
          %p371 = pneg %p158
        $region38: #{tpu_custom_call.1} parent=23 // pred_check_branch
          %373 = sbr.rel (%p371) target = $region40
        $region39: #{tpu_custom_call.1} parent=23 // pred_region
          %s374 = sand.u32 %s18, 1
          %s375 = scalar_lea.sflag [#allocation3], %s374
          %s376 = sand.u32 %s148, 1
          %s377 = smul.addr %s376, 64
          %s378 = scalar_lea.vmem [#allocation10], %s377
          %s380 = ssub.s32 1024, 1024
          %381 = vsyncadd %s375, %s380
          %s382 = smul.addr %s18, 16
          %s383 = smul.addr %s382, 64
          %s384 = scalar_lea.hbm %s5, %s383
          %s385 = sshll.u32 %s378, 4
          %s386 = int_to_ptr.vmem [resolvable:$true] %s385
          %391 = dma.hbm_to_vmem [thread:$0]  %s384, 1024, %s386, %s375, 64, 64, 4
        $region40: #{tpu_custom_call.1} parent=23 // pred_fallthru
          _
        // Predicated region
        $region41: #{tpu_custom_call.1} parent=23 // pred_check
          %p392 = pneg %p184
        $region42: #{tpu_custom_call.1} parent=23 // pred_check_branch
          %394 = sbr.rel (%p392) target = $region44
        $region43: #{tpu_custom_call.1} parent=23 // pred_region
          %s395 = sand.u32 %s18, 1
          %s396 = scalar_lea.sflag [#allocation3], %s395
          %s397 = sand.u32 %s174, 1
          %s398 = smul.addr %s397, 256
          %s399 = scalar_lea.vmem [#allocation11], %s398
          %s401 = ssub.s32 4096, 4096
          %402 = vsyncadd %s396, %s401
          %s403 = smul.addr %s18, 64
          %s404 = smul.addr %s403, 64
          %s405 = scalar_lea.hbm %s6, %s404
          %s406 = sshll.u32 %s399, 4
          %s407 = int_to_ptr.vmem [resolvable:$true] %s406
          %412 = dma.hbm_to_vmem [thread:$0]  %s405, 4096, %s407, %s396, 256, 256, 16
        $region44: #{tpu_custom_call.1} parent=23 // pred_fallthru
          _
        // Predicated region
        $region45: #{tpu_custom_call.1} parent=23 // pred_check
          %p413 = pneg %p210
        $region46: #{tpu_custom_call.1} parent=23 // pred_check_branch
          %415 = sbr.rel (%p413) target = $region48
        $region47: #{tpu_custom_call.1} parent=23 // pred_region
          %s416 = sand.u32 %s18, 1
          %s417 = scalar_lea.sflag [#allocation3], %s416
          %s418 = sand.u32 %s200, 1
          %s419 = smul.addr %s418, 256
          %s420 = scalar_lea.vmem [#allocation12], %s419
          %s422 = ssub.s32 4096, 4096
          %423 = vsyncadd %s417, %s422
          %s424 = smul.addr %s18, 64
          %s425 = smul.addr %s424, 64
          %s426 = scalar_lea.hbm %s7, %s425
          %s427 = sshll.u32 %s420, 4
          %s428 = int_to_ptr.vmem [resolvable:$true] %s427
          %433 = dma.hbm_to_vmem [thread:$0]  %s426, 4096, %s428, %s417, 64, 64, 4
        $region48: #{tpu_custom_call.1} parent=23 // pred_fallthru
          _
        // Predicated region
        $region49: #{tpu_custom_call.1} parent=23 // pred_check
          %p434 = pneg %p236
        $region50: #{tpu_custom_call.1} parent=23 // pred_check_branch
          %436 = sbr.rel (%p434) target = $region52
        $region51: #{tpu_custom_call.1} parent=23 // pred_region
          %s437 = sand.u32 %s18, 1
          %s438 = scalar_lea.sflag [#allocation3], %s437
          %s439 = sand.u32 %s226, 1
          %s440 = smul.addr %s439, 32
          %s441 = scalar_lea.vmem [#allocation13], %s440
          %s443 = ssub.s32 512, 512
          %444 = vsyncadd %s438, %s443
          %s445 = smul.addr %s18, 4
          %s446 = smul.addr %s445, 128
          %s447 = scalar_lea.hbm %s8, %s446
          %s449 = sshll.u32 %s441, 4
          %s450 = int_to_ptr.vmem [resolvable:$true] %s449
          %452 = dma.hbm_to_vmem [thread:$0]  %s447, 512, %s450, %s438
        $region52: #{tpu_custom_call.1} parent=23 // pred_fallthru
          _
      $region24: #{tpu_custom_call.1} parent=5 // pred_fallthru
        _
      %p453 = scmp.le.s32.totalorder 1, %s18
      %p454 = scmp.lt.s32.totalorder %s18, 3
      %p455 = pnand %p453, %p454
      %p456 = pneg %p455
      // Predicated region
      $region53: #{tpu_custom_call.1} parent=5 // pred_check
        _
      $region54: #{tpu_custom_call.1} parent=5 // pred_check_branch
        %458 = sbr.rel (%p455) target = $region56
      $region55: #{tpu_custom_call.1} parent=5 // pred_region
        %s459 = ssub.s32 %s18, 1
        // Predicated region
        $region57: #{tpu_custom_call.1} parent=55 // pred_check
          %p460 = pneg %p39
        $region58: #{tpu_custom_call.1} parent=55 // pred_check_branch
          %462 = sbr.rel (%p460) target = $region60
        $region59: #{tpu_custom_call.1} parent=55 // pred_region
          %463 = dma.done [#allocation3], 512
        $region60: #{tpu_custom_call.1} parent=55 // pred_fallthru
          _
        // Predicated region
        $region61: #{tpu_custom_call.1} parent=55 // pred_check
          %p464 = pneg %p60
        $region62: #{tpu_custom_call.1} parent=55 // pred_check_branch
          %466 = sbr.rel (%p464) target = $region64
        $region63: #{tpu_custom_call.1} parent=55 // pred_region
          %467 = dma.done [#allocation6], 2048
        $region64: #{tpu_custom_call.1} parent=55 // pred_fallthru
          _
        %s468 = sand.u32 %s23, 1
        %s469 = scalar_lea.sflag [#allocation3], %s468
        %s470 = sand.u32 %s73, 1
        %s471 = smul.addr %s470, 64
        %s472 = scalar_lea.vmem [#allocation7], %s471
        // Predicated region
        $region65: #{tpu_custom_call.1} parent=55 // pred_check
          %p473 = pneg %p86
        $region66: #{tpu_custom_call.1} parent=55 // pred_check_branch
          %475 = sbr.rel (%p473) target = $region68
        $region67: #{tpu_custom_call.1} parent=55 // pred_region
          %476 = dma.done %s469, 1024
        $region68: #{tpu_custom_call.1} parent=55 // pred_fallthru
          _
        %s477 = sand.u32 %s23, 1
        %s478 = scalar_lea.sflag [#allocation3], %s477
        %s479 = sand.u32 %s99, 1
        %s480 = smul.addr %s479, 64
        %s481 = scalar_lea.vmem [#allocation8], %s480
        // Predicated region
        $region69: #{tpu_custom_call.1} parent=55 // pred_check
          %p482 = pneg %p112
        $region70: #{tpu_custom_call.1} parent=55 // pred_check_branch
          %484 = sbr.rel (%p482) target = $region72
        $region71: #{tpu_custom_call.1} parent=55 // pred_region
          %485 = dma.done %s478, 1024
        $region72: #{tpu_custom_call.1} parent=55 // pred_fallthru
          _
        %s486 = sand.u32 %s23, 1
        %s487 = scalar_lea.sflag [#allocation3], %s486
        %s488 = sand.u32 %s125, 1
        %s489 = smul.addr %s488, 64
        %s490 = scalar_lea.vmem [#allocation9], %s489
        // Predicated region
        $region73: #{tpu_custom_call.1} parent=55 // pred_check
          %p491 = pneg %p138
        $region74: #{tpu_custom_call.1} parent=55 // pred_check_branch
          %493 = sbr.rel (%p491) target = $region76
        $region75: #{tpu_custom_call.1} parent=55 // pred_region
          %494 = dma.done %s487, 1024
        $region76: #{tpu_custom_call.1} parent=55 // pred_fallthru
          _
        %s495 = sand.u32 %s23, 1
        %s496 = scalar_lea.sflag [#allocation3], %s495
        %s497 = sand.u32 %s151, 1
        %s498 = smul.addr %s497, 64
        %s499 = scalar_lea.vmem [#allocation10], %s498
        // Predicated region
        $region77: #{tpu_custom_call.1} parent=55 // pred_check
          %p500 = pneg %p164
        $region78: #{tpu_custom_call.1} parent=55 // pred_check_branch
          %502 = sbr.rel (%p500) target = $region80
        $region79: #{tpu_custom_call.1} parent=55 // pred_region
          %503 = dma.done %s496, 1024
        $region80: #{tpu_custom_call.1} parent=55 // pred_fallthru
          _
        %s504 = sand.u32 %s23, 1
        %s505 = scalar_lea.sflag [#allocation3], %s504
        %s506 = sand.u32 %s177, 1
        %s507 = smul.addr %s506, 256
        %s508 = scalar_lea.vmem [#allocation11], %s507
        // Predicated region
        $region81: #{tpu_custom_call.1} parent=55 // pred_check
          %p509 = pneg %p190
        $region82: #{tpu_custom_call.1} parent=55 // pred_check_branch
          %511 = sbr.rel (%p509) target = $region84
        $region83: #{tpu_custom_call.1} parent=55 // pred_region
          %512 = dma.done %s505, 4096
        $region84: #{tpu_custom_call.1} parent=55 // pred_fallthru
          _
        %s513 = sand.u32 %s23, 1
        %s514 = scalar_lea.sflag [#allocation3], %s513
        %s515 = sand.u32 %s203, 1
        %s516 = smul.addr %s515, 256
        %s517 = scalar_lea.vmem [#allocation12], %s516
        // Predicated region
        $region85: #{tpu_custom_call.1} parent=55 // pred_check
          %p518 = pneg %p216
        $region86: #{tpu_custom_call.1} parent=55 // pred_check_branch
          %520 = sbr.rel (%p518) target = $region88
        $region87: #{tpu_custom_call.1} parent=55 // pred_region
          %521 = dma.done %s514, 4096
        $region88: #{tpu_custom_call.1} parent=55 // pred_fallthru
          _
        %s522 = sand.u32 %s23, 1
        %s523 = scalar_lea.sflag [#allocation3], %s522
        %s524 = sand.u32 %s229, 1
        %s525 = smul.addr %s524, 32
        %s526 = scalar_lea.vmem [#allocation13], %s525
        // Predicated region
        $region89: #{tpu_custom_call.1} parent=55 // pred_check
          %p527 = pneg %p242
        $region90: #{tpu_custom_call.1} parent=55 // pred_check_branch
          %529 = sbr.rel (%p527) target = $region92
        $region91: #{tpu_custom_call.1} parent=55 // pred_region
          %530 = dma.done %s523, 512
        $region92: #{tpu_custom_call.1} parent=55 // pred_fallthru
          _
        %p531 = pneg %p39
        %p532 = pneg %p36
        %p533 = pneg %p60
        %p534 = pneg %p57
        %s535 = sand.u32 %s23, 1
        %s536 = scalar_lea.sflag [#allocation3], %s535
        %s537 = sand.u32 %s73, 1
        %s538 = smul.addr %s537, 64
        %s539 = scalar_lea.vmem [#allocation7], %s538
        %p540 = pneg %p86
        %p541 = pneg %p83
        %s542 = sand.u32 %s23, 1
        %s543 = scalar_lea.sflag [#allocation3], %s542
        %s544 = sand.u32 %s99, 1
        %s545 = smul.addr %s544, 64
        %s546 = scalar_lea.vmem [#allocation8], %s545
        %p547 = pneg %p112
        %p548 = pneg %p109
        %s549 = sand.u32 %s23, 1
        %s550 = scalar_lea.sflag [#allocation3], %s549
        %s551 = sand.u32 %s125, 1
        %s552 = smul.addr %s551, 64
        %s553 = scalar_lea.vmem [#allocation9], %s552
        %p554 = pneg %p138
        %p555 = pneg %p135
        %s556 = sand.u32 %s23, 1
        %s557 = scalar_lea.sflag [#allocation3], %s556
        %s558 = sand.u32 %s151, 1
        %s559 = smul.addr %s558, 64
        %s560 = scalar_lea.vmem [#allocation10], %s559
        %p561 = pneg %p164
        %p562 = pneg %p161
        %s563 = sand.u32 %s23, 1
        %s564 = scalar_lea.sflag [#allocation3], %s563
        %s565 = sand.u32 %s177, 1
        %s566 = smul.addr %s565, 256
        %s567 = scalar_lea.vmem [#allocation11], %s566
        %p568 = pneg %p190
        %p569 = pneg %p187
        %s570 = sand.u32 %s23, 1
        %s571 = scalar_lea.sflag [#allocation3], %s570
        %s572 = sand.u32 %s203, 1
        %s573 = smul.addr %s572, 256
        %s574 = scalar_lea.vmem [#allocation12], %s573
        %p575 = pneg %p216
        %p576 = pneg %p213
        %s577 = sand.u32 %s23, 1
        %s578 = scalar_lea.sflag [#allocation3], %s577
        %s579 = sand.u32 %s229, 1
        %s580 = smul.addr %s579, 32
        %s581 = scalar_lea.vmem [#allocation13], %s580
        %p582 = pneg %p242
        %p583 = pneg %p239
        %p584 = pneg %p263
        %p585 = pneg %p260
        %p587 = scmp.eq.s32.totalorder %s23, 0
        // Predicated region
        $region93: #{tpu_custom_call.1} parent=55 // pred_check
          %p588 = pneg %p587
        $region94: #{tpu_custom_call.1} parent=55 // pred_check_branch
          %590 = sbr.rel (%p588) target = $region96
        $region95: #{tpu_custom_call.1} parent=55 // pred_region
          %v591 = vld [vmem:[#allocation2] sm:$0xff]
          %v592 = vld [vmem:[#allocation2 + $0x8] sm:$0xff]
          %v593 = vld [vmem:[#allocation2 + $0x10] sm:$0xff]
          %v594 = vld [vmem:[#allocation2 + $0x18] sm:$0xff]
          %595 = vst [vmem:[#allocation14] sm:$0xff] %v591
          %596 = vst [vmem:[#allocation14 + $0x8] sm:$0xff] %v592
          %597 = vst [vmem:[#allocation14 + $0x10] sm:$0xff] %v593
          %598 = vst [vmem:[#allocation14 + $0x18] sm:$0xff] %v594
        $region96: #{tpu_custom_call.1} parent=55 // pred_fallthru
          _
        %v599 = vld [vmem:[#allocation14] sm:$0xff]
        %v600 = vld [vmem:[#allocation14 + $0x8] sm:$0xff]
        %v601 = vld [vmem:[#allocation14 + $0x10] sm:$0xff]
        %v602 = vld [vmem:[#allocation14 + $0x18] sm:$0xff]
        %603 = vxpose.xlu0.b32.start [1/16] %v599, 128
        %604 = vxpose.xlu0.b32.cont [2/16] %v600, 128
        %605 = vxpose.xlu0.b32.cont [3/16] 0.0, 128
        %606 = vxpose.xlu0.b32.cont [4/16] 0.0, 128
        %607 = vxpose.xlu0.b32.cont [5/16] 0.0, 128
        %608 = vxpose.xlu0.b32.cont [6/16] 0.0, 128
        %609 = vxpose.xlu0.b32.cont [7/16] 0.0, 128
        %610 = vxpose.xlu0.b32.cont [8/16] 0.0, 128
        %611 = vxpose.xlu0.b32.cont [9/16] 0.0, 128
        %612 = vxpose.xlu0.b32.cont [10/16] 0.0, 128
        %613 = vxpose.xlu0.b32.cont [11/16] 0.0, 128
        %614 = vxpose.xlu0.b32.cont [12/16] 0.0, 128
        %615 = vxpose.xlu0.b32.cont [13/16] 0.0, 128
        %616 = vxpose.xlu0.b32.cont [14/16] 0.0, 128
        %617 = vxpose.xlu0.b32.cont [15/16] 0.0, 128
        %618 = vxpose.xlu0.b32.end [16/16] 0.0, 128
        %v619 = vpop.trf.xlu0
        %v620 = vpop.trf.xlu0
        %v621 = vpop.trf.xlu0
        %v622 = vpop.trf.xlu0
        %v623 = vpop.trf.xlu0
        %v624 = vpop.trf.xlu0
        %v625 = vpop.trf.xlu0
        %v626 = vpop.trf.xlu0
        %v627 = vpop.trf.xlu0
        %v628 = vpop.trf.xlu0
        %v629 = vpop.trf.xlu0
        %v630 = vpop.trf.xlu0
        %v631 = vpop.trf.xlu0
        %v632 = vpop.trf.xlu0
        %v633 = vpop.trf.xlu0
        %v634 = vpop.trf.xlu0
        %v635 = vld [vmem:[#allocation5] sm:$0xff]
        %v636 = vld [vmem:[#allocation5 + $0x8] sm:$0xff]
        %v637 = vld [vmem:[#allocation5 + $0x10] sm:$0xff]
        %v638 = vld [vmem:[#allocation5 + $0x18] sm:$0xff]
        %v639 = vld [vmem:[#allocation5 + $0x20] sm:$0xff]
        %v640 = vld [vmem:[#allocation5 + $0x28] sm:$0xff]
        %v641 = vld [vmem:[#allocation5 + $0x30] sm:$0xff]
        %v642 = vld [vmem:[#allocation5 + $0x38] sm:$0xff]
        %v643 = vld [vmem:[#allocation5 + $0x40] sm:$0xff]
        %v644 = vld [vmem:[#allocation5 + $0x48] sm:$0xff]
        %v645 = vld [vmem:[#allocation5 + $0x50] sm:$0xff]
        %v646 = vld [vmem:[#allocation5 + $0x58] sm:$0xff]
        %v647 = vld [vmem:[#allocation5 + $0x60] sm:$0xff]
        %v648 = vld [vmem:[#allocation5 + $0x68] sm:$0xff]
        %v649 = vld [vmem:[#allocation5 + $0x70] sm:$0xff]
        %v650 = vld [vmem:[#allocation5 + $0x78] sm:$0xff]
        %v651 = vadd.f32 %v619, %v635
        %v652 = vadd.f32 %v620, %v636
        %v653 = vadd.f32 %v621, %v637
        %v654 = vadd.f32 %v622, %v638
        %v655 = vadd.f32 %v623, %v639
        %v656 = vadd.f32 %v624, %v640
        %v657 = vadd.f32 %v625, %v641
        %v658 = vadd.f32 %v626, %v642
        %v659 = vadd.f32 %v627, %v643
        %v660 = vadd.f32 %v628, %v644
        %v661 = vadd.f32 %v629, %v645
        %v662 = vadd.f32 %v630, %v646
        %v663 = vadd.f32 %v631, %v647
        %v664 = vadd.f32 %v632, %v648
        %v665 = vadd.f32 %v633, %v649
        %v666 = vadd.f32 %v634, %v650
        %v667 = vpack.c.bf16 %v652, %v651
        %v668 = vpack.c.bf16 %v654, %v653
        %v669 = vpack.c.bf16 %v656, %v655
        %v670 = vpack.c.bf16 %v658, %v657
        %v671 = vpack.c.bf16 %v660, %v659
        %v672 = vpack.c.bf16 %v662, %v661
        %v673 = vpack.c.bf16 %v664, %v663
        %v674 = vpack.c.bf16 %v666, %v665
        %v675 = vpack.c.bf16 %v620, %v619
        %v676 = vpack.c.bf16 %v622, %v621
        %v677 = vpack.c.bf16 %v624, %v623
        %v678 = vpack.c.bf16 %v626, %v625
        %v679 = vpack.c.bf16 %v628, %v627
        %v680 = vpack.c.bf16 %v630, %v629
        %v681 = vpack.c.bf16 %v632, %v631
        %v682 = vpack.c.bf16 %v634, %v633
        %v683 = vld [vmem:[%s472] sm:$0xf]
        %v684 = vld [vmem:[%s472 + $0x4] sm:$0xf]
        %v685 = vld [vmem:[%s472 + $0x8] sm:$0xf]
        %v686 = vld [vmem:[%s472 + $0xc] sm:$0xf]
        %v687 = vld [vmem:[%s472 + $0x10] sm:$0xf]
        %v688 = vld [vmem:[%s472 + $0x14] sm:$0xf]
        %v689 = vld [vmem:[%s472 + $0x18] sm:$0xf]
        %v690 = vld [vmem:[%s472 + $0x1c] sm:$0xf]
        %v691 = vld [vmem:[%s472 + $0x20] sm:$0xf]
        %v692 = vld [vmem:[%s472 + $0x24] sm:$0xf]
        %v693 = vld [vmem:[%s472 + $0x28] sm:$0xf]
        %v694 = vld [vmem:[%s472 + $0x2c] sm:$0xf]
        %v695 = vld [vmem:[%s472 + $0x30] sm:$0xf]
        %v696 = vld [vmem:[%s472 + $0x34] sm:$0xf]
        %v697 = vld [vmem:[%s472 + $0x38] sm:$0xf]
        %v698 = vld [vmem:[%s472 + $0x3c] sm:$0xf]
        %v715 = vunpack.c.l.b16 %v683
        %v716 = vunpack.c.l.b16 %v684
        %v717 = vunpack.c.l.b16 %v685
        %v718 = vunpack.c.l.b16 %v686
        %v719 = vunpack.c.l.b16 %v687
        %v720 = vunpack.c.l.b16 %v688
        %v721 = vunpack.c.l.b16 %v689
        %v722 = vunpack.c.l.b16 %v690
        %v723 = vunpack.c.l.b16 %v691
        %v724 = vunpack.c.l.b16 %v692
        %v725 = vunpack.c.l.b16 %v693
        %v726 = vunpack.c.l.b16 %v694
        %v727 = vunpack.c.l.b16 %v695
        %v728 = vunpack.c.l.b16 %v696
        %v729 = vunpack.c.l.b16 %v697
        %v730 = vunpack.c.l.b16 %v698
        %v731 = vpack.c.b16 %v716, %v715
        %v732 = vpack.c.b16 %v718, %v717
        %v733 = vpack.c.b16 %v720, %v719
        %v734 = vpack.c.b16 %v722, %v721
        %v735 = vpack.c.b16 %v724, %v723
        %v736 = vpack.c.b16 %v726, %v725
        %v737 = vpack.c.b16 %v728, %v727
        %v738 = vpack.c.b16 %v730, %v729
        %747 = vmatprep.subr.bf16.mxu0 0
        %748 = vmatpush1.bf16.msra.mxu0 %v667
        %749 = vmatprep.subr.bf16.mxu0 0
        %750 = vmatpush1.bf16.msra.mxu0 %v668
        %751 = vmatprep.subr.bf16.mxu0 0
        %752 = vmatpush1.bf16.msra.mxu0 %v669
        %753 = vmatprep.subr.bf16.mxu0 0
        %754 = vmatpush1.bf16.msra.mxu0 %v670
        %755 = vmatprep.subr.bf16.mxu0 0
        %756 = vmatpush1.bf16.msra.mxu0 %v671
        %757 = vmatprep.subr.bf16.mxu0 0
        %758 = vmatpush1.bf16.msra.mxu0 %v672
        %759 = vmatprep.subr.bf16.mxu0 0
        %760 = vmatpush1.bf16.msra.mxu0 %v673
        %761 = vmatprep.subr.bf16.mxu0 0
        %762 = vmatpush1.bf16.msra.mxu0 %v674
        %763 = vmatprep.subr.bf16.mxu0 0
        %764 = vmatpush1.bf16.msra.mxu0 0
        %765 = vmatprep.subr.bf16.mxu0 0
        %766 = vmatpush1.bf16.msra.mxu0 0
        %767 = vmatprep.subr.bf16.mxu0 0
        %768 = vmatpush1.bf16.msra.mxu0 0
        %769 = vmatprep.subr.bf16.mxu0 0
        %770 = vmatpush1.bf16.msra.mxu0 0
        %771 = vmatprep.subr.bf16.mxu0 0
        %772 = vmatpush1.bf16.msra.mxu0 0
        %773 = vmatprep.subr.bf16.mxu0 0
        %774 = vmatpush1.bf16.msra.mxu0 0
        %775 = vmatprep.subr.bf16.mxu0 0
        %776 = vmatpush1.bf16.msra.mxu0 0
        %777 = vmatprep.subr.bf16.mxu0 0
        %778 = vmatpush1.bf16.msra.mxu0 0
        %779 = vmatprep.mubr.bf16.mxu0 0
        %780 = vmatmul.mubr.bf16.gmra.mrb[0].mxu0 %v731
        %v781 = vpop.f32.mrb[0].mxu0
        %v782 = vadd.f32 0.0, %v781
        %v783 = vpop.f32.mrb[0].mxu0
        %v784 = vpop.f32.mrb[0].mxu0
        %v785 = vadd.f32 0.0, %v784
        %v786 = vpop.f32.mrb[0].mxu0
        %787 = vmatprep.mubr.bf16.mxu0 0
        %788 = vmatmul.mubr.bf16.gmra.mrb[0].mxu0 %v732
        %v789 = vpop.f32.mrb[0].mxu0
        %v790 = vadd.f32 0.0, %v789
        %v791 = vpop.f32.mrb[0].mxu0
        %v792 = vpop.f32.mrb[0].mxu0
        %v793 = vadd.f32 0.0, %v792
        %v794 = vpop.f32.mrb[0].mxu0
        %795 = vmatprep.mubr.bf16.mxu0 0
        %796 = vmatmul.mubr.bf16.gmra.mrb[0].mxu0 %v733
        %v797 = vpop.f32.mrb[0].mxu0
        %v798 = vadd.f32 0.0, %v797
        %v799 = vpop.f32.mrb[0].mxu0
        %v800 = vpop.f32.mrb[0].mxu0
        %v801 = vadd.f32 0.0, %v800
        %v802 = vpop.f32.mrb[0].mxu0
        %803 = vmatprep.mubr.bf16.mxu0 0
        %804 = vmatmul.mubr.bf16.gmra.mrb[0].mxu0 %v734
        %v805 = vpop.f32.mrb[0].mxu0
        %v806 = vadd.f32 0.0, %v805
        %v807 = vpop.f32.mrb[0].mxu0
        %v808 = vpop.f32.mrb[0].mxu0
        %v809 = vadd.f32 0.0, %v808
        %v810 = vpop.f32.mrb[0].mxu0
        %811 = vmatprep.mubr.bf16.mxu0 0
        %812 = vmatmul.mubr.bf16.gmra.mrb[0].mxu0 %v735
        %v813 = vpop.f32.mrb[0].mxu0
        %v814 = vadd.f32 0.0, %v813
        %v815 = vpop.f32.mrb[0].mxu0
        %v816 = vpop.f32.mrb[0].mxu0
        %v817 = vadd.f32 0.0, %v816
        %v818 = vpop.f32.mrb[0].mxu0
        %819 = vmatprep.mubr.bf16.mxu0 0
        %820 = vmatmul.mubr.bf16.gmra.mrb[0].mxu0 %v736
        %v821 = vpop.f32.mrb[0].mxu0
        %v822 = vadd.f32 0.0, %v821
        %v823 = vpop.f32.mrb[0].mxu0
        %v824 = vpop.f32.mrb[0].mxu0
        %v825 = vadd.f32 0.0, %v824
        %v826 = vpop.f32.mrb[0].mxu0
        %827 = vmatprep.mubr.bf16.mxu0 0
        %828 = vmatmul.mubr.bf16.gmra.mrb[0].mxu0 %v737
        %v829 = vpop.f32.mrb[0].mxu0
        %v830 = vadd.f32 0.0, %v829
        %v831 = vpop.f32.mrb[0].mxu0
        %v832 = vpop.f32.mrb[0].mxu0
        %v833 = vadd.f32 0.0, %v832
        %v834 = vpop.f32.mrb[0].mxu0
        %835 = vmatprep.mubr.bf16.mxu0 0
        %836 = vmatmul.mubr.bf16.gmra.mrb[0].mxu0 %v738
        %v837 = vpop.f32.mrb[0].mxu0
        %v838 = vadd.f32 0.0, %v837
        %v839 = vpop.f32.mrb[0].mxu0
        %v840 = vpop.f32.mrb[0].mxu0
        %v841 = vadd.f32 0.0, %v840
        %v842 = vpop.f32.mrb[0].mxu0
        %843 = vdwg.mxu0
        %v844 = vld [vmem:[%s481] sm:$0xf]
        %v845 = vld [vmem:[%s481 + $0x4] sm:$0xf]
        %v846 = vld [vmem:[%s481 + $0x8] sm:$0xf]
        %v847 = vld [vmem:[%s481 + $0xc] sm:$0xf]
        %v848 = vld [vmem:[%s481 + $0x10] sm:$0xf]
        %v849 = vld [vmem:[%s481 + $0x14] sm:$0xf]
        %v850 = vld [vmem:[%s481 + $0x18] sm:$0xf]
        %v851 = vld [vmem:[%s481 + $0x1c] sm:$0xf]
        %v852 = vld [vmem:[%s481 + $0x20] sm:$0xf]
        %v853 = vld [vmem:[%s481 + $0x24] sm:$0xf]
        %v854 = vld [vmem:[%s481 + $0x28] sm:$0xf]
        %v855 = vld [vmem:[%s481 + $0x2c] sm:$0xf]
        %v856 = vld [vmem:[%s481 + $0x30] sm:$0xf]
        %v857 = vld [vmem:[%s481 + $0x34] sm:$0xf]
        %v858 = vld [vmem:[%s481 + $0x38] sm:$0xf]
        %v859 = vld [vmem:[%s481 + $0x3c] sm:$0xf]
        %v876 = vunpack.c.l.b16 %v844
        %v877 = vunpack.c.l.b16 %v845
        %v878 = vunpack.c.l.b16 %v846
        %v879 = vunpack.c.l.b16 %v847
        %v880 = vunpack.c.l.b16 %v848
        %v881 = vunpack.c.l.b16 %v849
        %v882 = vunpack.c.l.b16 %v850
        %v883 = vunpack.c.l.b16 %v851
        %v884 = vunpack.c.l.b16 %v852
        %v885 = vunpack.c.l.b16 %v853
        %v886 = vunpack.c.l.b16 %v854
        %v887 = vunpack.c.l.b16 %v855
        %v888 = vunpack.c.l.b16 %v856
        %v889 = vunpack.c.l.b16 %v857
        %v890 = vunpack.c.l.b16 %v858
        %v891 = vunpack.c.l.b16 %v859
        %v892 = vpack.c.b16 %v877, %v876
        %v893 = vpack.c.b16 %v879, %v878
        %v894 = vpack.c.b16 %v881, %v880
        %v895 = vpack.c.b16 %v883, %v882
        %v896 = vpack.c.b16 %v885, %v884
        %v897 = vpack.c.b16 %v887, %v886
        %v898 = vpack.c.b16 %v889, %v888
        %v899 = vpack.c.b16 %v891, %v890
        %908 = vmatprep.subr.bf16.mxu0 0
        %909 = vmatpush1.bf16.msra.mxu0 %v667
        %910 = vmatprep.subr.bf16.mxu0 0
        %911 = vmatpush1.bf16.msra.mxu0 %v668
        %912 = vmatprep.subr.bf16.mxu0 0
        %913 = vmatpush1.bf16.msra.mxu0 %v669
        %914 = vmatprep.subr.bf16.mxu0 0
        %915 = vmatpush1.bf16.msra.mxu0 %v670
        %916 = vmatprep.subr.bf16.mxu0 0
        %917 = vmatpush1.bf16.msra.mxu0 %v671
        %918 = vmatprep.subr.bf16.mxu0 0
        %919 = vmatpush1.bf16.msra.mxu0 %v672
        %920 = vmatprep.subr.bf16.mxu0 0
        %921 = vmatpush1.bf16.msra.mxu0 %v673
        %922 = vmatprep.subr.bf16.mxu0 0
        %923 = vmatpush1.bf16.msra.mxu0 %v674
        %924 = vmatprep.subr.bf16.mxu0 0
        %925 = vmatpush1.bf16.msra.mxu0 0
        %926 = vmatprep.subr.bf16.mxu0 0
        %927 = vmatpush1.bf16.msra.mxu0 0
        %928 = vmatprep.subr.bf16.mxu0 0
        %929 = vmatpush1.bf16.msra.mxu0 0
        %930 = vmatprep.subr.bf16.mxu0 0
        %931 = vmatpush1.bf16.msra.mxu0 0
        %932 = vmatprep.subr.bf16.mxu0 0
        %933 = vmatpush1.bf16.msra.mxu0 0
        %934 = vmatprep.subr.bf16.mxu0 0
        %935 = vmatpush1.bf16.msra.mxu0 0
        %936 = vmatprep.subr.bf16.mxu0 0
        %937 = vmatpush1.bf16.msra.mxu0 0
        %938 = vmatprep.subr.bf16.mxu0 0
        %939 = vmatpush1.bf16.msra.mxu0 0
        %940 = vmatprep.mubr.bf16.mxu0 0
        %941 = vmatmul.mubr.bf16.gmra.mrb[0].mxu0 %v892
        %v942 = vpop.f32.mrb[0].mxu0
        %v943 = vadd.f32 0.0, %v942
        %v944 = vpop.f32.mrb[0].mxu0
        %v945 = vpop.f32.mrb[0].mxu0
        %v946 = vadd.f32 0.0, %v945
        %v947 = vpop.f32.mrb[0].mxu0
        %948 = vmatprep.mubr.bf16.mxu0 0
        %949 = vmatmul.mubr.bf16.gmra.mrb[0].mxu0 %v893
        %v950 = vpop.f32.mrb[0].mxu0
        %v951 = vadd.f32 0.0, %v950
        %v952 = vpop.f32.mrb[0].mxu0
        %v953 = vpop.f32.mrb[0].mxu0
        %v954 = vadd.f32 0.0, %v953
        %v955 = vpop.f32.mrb[0].mxu0
        %956 = vmatprep.mubr.bf16.mxu0 0
        %957 = vmatmul.mubr.bf16.gmra.mrb[0].mxu0 %v894
        %v958 = vpop.f32.mrb[0].mxu0
        %v959 = vadd.f32 0.0, %v958
        %v960 = vpop.f32.mrb[0].mxu0
        %v961 = vpop.f32.mrb[0].mxu0
        %v962 = vadd.f32 0.0, %v961
        %v963 = vpop.f32.mrb[0].mxu0
        %964 = vmatprep.mubr.bf16.mxu0 0
        %965 = vmatmul.mubr.bf16.gmra.mrb[0].mxu0 %v895
        %v966 = vpop.f32.mrb[0].mxu0
        %v967 = vadd.f32 0.0, %v966
        %v968 = vpop.f32.mrb[0].mxu0
        %v969 = vpop.f32.mrb[0].mxu0
        %v970 = vadd.f32 0.0, %v969
        %v971 = vpop.f32.mrb[0].mxu0
        %972 = vmatprep.mubr.bf16.mxu0 0
        %973 = vmatmul.mubr.bf16.gmra.mrb[0].mxu0 %v896
        %v974 = vpop.f32.mrb[0].mxu0
        %v975 = vadd.f32 0.0, %v974
        %v976 = vpop.f32.mrb[0].mxu0
        %v977 = vpop.f32.mrb[0].mxu0
        %v978 = vadd.f32 0.0, %v977
        %v979 = vpop.f32.mrb[0].mxu0
        %980 = vmatprep.mubr.bf16.mxu0 0
        %981 = vmatmul.mubr.bf16.gmra.mrb[0].mxu0 %v897
        %v982 = vpop.f32.mrb[0].mxu0
        %v983 = vadd.f32 0.0, %v982
        %v984 = vpop.f32.mrb[0].mxu0
        %v985 = vpop.f32.mrb[0].mxu0
        %v986 = vadd.f32 0.0, %v985
        %v987 = vpop.f32.mrb[0].mxu0
        %988 = vmatprep.mubr.bf16.mxu0 0
        %989 = vmatmul.mubr.bf16.gmra.mrb[0].mxu0 %v898
        %v990 = vpop.f32.mrb[0].mxu0
        %v991 = vadd.f32 0.0, %v990
        %v992 = vpop.f32.mrb[0].mxu0
        %v993 = vpop.f32.mrb[0].mxu0
        %v994 = vadd.f32 0.0, %v993
        %v995 = vpop.f32.mrb[0].mxu0
        %996 = vmatprep.mubr.bf16.mxu0 0
        %997 = vmatmul.mubr.bf16.gmra.mrb[0].mxu0 %v899
        %v998 = vpop.f32.mrb[0].mxu0
        %v999 = vadd.f32 0.0, %v998
        %v1000 = vpop.f32.mrb[0].mxu0
        %v1001 = vpop.f32.mrb[0].mxu0
        %v1002 = vadd.f32 0.0, %v1001
        %v1003 = vpop.f32.mrb[0].mxu0
        %1004 = vdwg.mxu0
        %v1005 = vld [vmem:[%s490] sm:$0xf]
        %v1006 = vld [vmem:[%s490 + $0x4] sm:$0xf]
        %v1007 = vld [vmem:[%s490 + $0x8] sm:$0xf]
        %v1008 = vld [vmem:[%s490 + $0xc] sm:$0xf]
        %v1009 = vld [vmem:[%s490 + $0x10] sm:$0xf]
        %v1010 = vld [vmem:[%s490 + $0x14] sm:$0xf]
        %v1011 = vld [vmem:[%s490 + $0x18] sm:$0xf]
        %v1012 = vld [vmem:[%s490 + $0x1c] sm:$0xf]
        %v1013 = vld [vmem:[%s490 + $0x20] sm:$0xf]
        %v1014 = vld [vmem:[%s490 + $0x24] sm:$0xf]
        %v1015 = vld [vmem:[%s490 + $0x28] sm:$0xf]
        %v1016 = vld [vmem:[%s490 + $0x2c] sm:$0xf]
        %v1017 = vld [vmem:[%s490 + $0x30] sm:$0xf]
        %v1018 = vld [vmem:[%s490 + $0x34] sm:$0xf]
        %v1019 = vld [vmem:[%s490 + $0x38] sm:$0xf]
        %v1020 = vld [vmem:[%s490 + $0x3c] sm:$0xf]
        %v1037 = vunpack.c.l.b16 %v1005
        %v1038 = vunpack.c.l.b16 %v1006
        %v1039 = vunpack.c.l.b16 %v1007
        %v1040 = vunpack.c.l.b16 %v1008
        %v1041 = vunpack.c.l.b16 %v1009
        %v1042 = vunpack.c.l.b16 %v1010
        %v1043 = vunpack.c.l.b16 %v1011
        %v1044 = vunpack.c.l.b16 %v1012
        %v1045 = vunpack.c.l.b16 %v1013
        %v1046 = vunpack.c.l.b16 %v1014
        %v1047 = vunpack.c.l.b16 %v1015
        %v1048 = vunpack.c.l.b16 %v1016
        %v1049 = vunpack.c.l.b16 %v1017
        %v1050 = vunpack.c.l.b16 %v1018
        %v1051 = vunpack.c.l.b16 %v1019
        %v1052 = vunpack.c.l.b16 %v1020
        %v1053 = vpack.c.b16 %v1038, %v1037
        %v1054 = vpack.c.b16 %v1040, %v1039
        %v1055 = vpack.c.b16 %v1042, %v1041
        %v1056 = vpack.c.b16 %v1044, %v1043
        %v1057 = vpack.c.b16 %v1046, %v1045
        %v1058 = vpack.c.b16 %v1048, %v1047
        %v1059 = vpack.c.b16 %v1050, %v1049
        %v1060 = vpack.c.b16 %v1052, %v1051
        %1069 = vmatprep.subr.bf16.mxu0 0
        %1070 = vmatpush1.bf16.msra.mxu0 %v675
        %1071 = vmatprep.subr.bf16.mxu0 0
        %1072 = vmatpush1.bf16.msra.mxu0 %v676
        %1073 = vmatprep.subr.bf16.mxu0 0
        %1074 = vmatpush1.bf16.msra.mxu0 %v677
        %1075 = vmatprep.subr.bf16.mxu0 0
        %1076 = vmatpush1.bf16.msra.mxu0 %v678
        %1077 = vmatprep.subr.bf16.mxu0 0
        %1078 = vmatpush1.bf16.msra.mxu0 %v679
        %1079 = vmatprep.subr.bf16.mxu0 0
        %1080 = vmatpush1.bf16.msra.mxu0 %v680
        %1081 = vmatprep.subr.bf16.mxu0 0
        %1082 = vmatpush1.bf16.msra.mxu0 %v681
        %1083 = vmatprep.subr.bf16.mxu0 0
        %1084 = vmatpush1.bf16.msra.mxu0 %v682
        %1085 = vmatprep.subr.bf16.mxu0 0
        %1086 = vmatpush1.bf16.msra.mxu0 0
        %1087 = vmatprep.subr.bf16.mxu0 0
        %1088 = vmatpush1.bf16.msra.mxu0 0
        %1089 = vmatprep.subr.bf16.mxu0 0
        %1090 = vmatpush1.bf16.msra.mxu0 0
        %1091 = vmatprep.subr.bf16.mxu0 0
        %1092 = vmatpush1.bf16.msra.mxu0 0
        %1093 = vmatprep.subr.bf16.mxu0 0
        %1094 = vmatpush1.bf16.msra.mxu0 0
        %1095 = vmatprep.subr.bf16.mxu0 0
        %1096 = vmatpush1.bf16.msra.mxu0 0
        %1097 = vmatprep.subr.bf16.mxu0 0
        %1098 = vmatpush1.bf16.msra.mxu0 0
        %1099 = vmatprep.subr.bf16.mxu0 0
        %1100 = vmatpush1.bf16.msra.mxu0 0
        %1101 = vmatprep.mubr.bf16.mxu0 0
        %1102 = vmatmul.mubr.bf16.gmra.mrb[0].mxu0 %v1053
        %v1103 = vpop.f32.mrb[0].mxu0
        %v1104 = vadd.f32 0.0, %v1103
        %v1105 = vpop.f32.mrb[0].mxu0
        %v1106 = vpop.f32.mrb[0].mxu0
        %v1107 = vadd.f32 0.0, %v1106
        %v1108 = vpop.f32.mrb[0].mxu0
        %1109 = vmatprep.mubr.bf16.mxu0 0
        %1110 = vmatmul.mubr.bf16.gmra.mrb[0].mxu0 %v1054
        %v1111 = vpop.f32.mrb[0].mxu0
        %v1112 = vadd.f32 0.0, %v1111
        %v1113 = vpop.f32.mrb[0].mxu0
        %v1114 = vpop.f32.mrb[0].mxu0
        %v1115 = vadd.f32 0.0, %v1114
        %v1116 = vpop.f32.mrb[0].mxu0
        %1117 = vmatprep.mubr.bf16.mxu0 0
        %1118 = vmatmul.mubr.bf16.gmra.mrb[0].mxu0 %v1055
        %v1119 = vpop.f32.mrb[0].mxu0
        %v1120 = vadd.f32 0.0, %v1119
        %v1121 = vpop.f32.mrb[0].mxu0
        %v1122 = vpop.f32.mrb[0].mxu0
        %v1123 = vadd.f32 0.0, %v1122
        %v1124 = vpop.f32.mrb[0].mxu0
        %1125 = vmatprep.mubr.bf16.mxu0 0
        %1126 = vmatmul.mubr.bf16.gmra.mrb[0].mxu0 %v1056
        %v1127 = vpop.f32.mrb[0].mxu0
        %v1128 = vadd.f32 0.0, %v1127
        %v1129 = vpop.f32.mrb[0].mxu0
        %v1130 = vpop.f32.mrb[0].mxu0
        %v1131 = vadd.f32 0.0, %v1130
        %v1132 = vpop.f32.mrb[0].mxu0
        %1133 = vmatprep.mubr.bf16.mxu0 0
        %1134 = vmatmul.mubr.bf16.gmra.mrb[0].mxu0 %v1057
        %v1135 = vpop.f32.mrb[0].mxu0
        %v1136 = vadd.f32 0.0, %v1135
        %v1137 = vpop.f32.mrb[0].mxu0
        %v1138 = vpop.f32.mrb[0].mxu0
        %v1139 = vadd.f32 0.0, %v1138
        %v1140 = vpop.f32.mrb[0].mxu0
        %1141 = vmatprep.mubr.bf16.mxu0 0
        %1142 = vmatmul.mubr.bf16.gmra.mrb[0].mxu0 %v1058
        %v1143 = vpop.f32.mrb[0].mxu0
        %v1144 = vadd.f32 0.0, %v1143
        %v1145 = vpop.f32.mrb[0].mxu0
        %v1146 = vpop.f32.mrb[0].mxu0
        %v1147 = vadd.f32 0.0, %v1146
        %v1148 = vpop.f32.mrb[0].mxu0
        %1149 = vmatprep.mubr.bf16.mxu0 0
        %1150 = vmatmul.mubr.bf16.gmra.mrb[0].mxu0 %v1059
        %v1151 = vpop.f32.mrb[0].mxu0
        %v1152 = vadd.f32 0.0, %v1151
        %v1153 = vpop.f32.mrb[0].mxu0
        %v1154 = vpop.f32.mrb[0].mxu0
        %v1155 = vadd.f32 0.0, %v1154
        %v1156 = vpop.f32.mrb[0].mxu0
        %1157 = vmatprep.mubr.bf16.mxu0 0
        %1158 = vmatmul.mubr.bf16.gmra.mrb[0].mxu0 %v1060
        %v1159 = vpop.f32.mrb[0].mxu0
        %v1160 = vadd.f32 0.0, %v1159
        %v1161 = vpop.f32.mrb[0].mxu0
        %v1162 = vpop.f32.mrb[0].mxu0
        %v1163 = vadd.f32 0.0, %v1162
        %v1164 = vpop.f32.mrb[0].mxu0
        %1165 = vdwg.mxu0
        %1166 = vxpose.xlu0.b32.start [1/16] %v782, 128
        %1167 = vxpose.xlu0.b32.cont [2/16] %v785, 128
        %1168 = vxpose.xlu0.b32.cont [3/16] 0.0, 128
        %1169 = vxpose.xlu0.b32.cont [4/16] 0.0, 128
        %1170 = vxpose.xlu0.b32.cont [5/16] 0.0, 128
        %1171 = vxpose.xlu0.b32.cont [6/16] 0.0, 128
        %1172 = vxpose.xlu0.b32.cont [7/16] 0.0, 128
        %1173 = vxpose.xlu0.b32.cont [8/16] 0.0, 128
        %1174 = vxpose.xlu0.b32.cont [9/16] 0.0, 128
        %1175 = vxpose.xlu0.b32.cont [10/16] 0.0, 128
        %1176 = vxpose.xlu0.b32.cont [11/16] 0.0, 128
        %1177 = vxpose.xlu0.b32.cont [12/16] 0.0, 128
        %1178 = vxpose.xlu0.b32.cont [13/16] 0.0, 128
        %1179 = vxpose.xlu0.b32.cont [14/16] 0.0, 128
        %1180 = vxpose.xlu0.b32.cont [15/16] 0.0, 128
        %1181 = vxpose.xlu0.b32.end [16/16] 0.0, 128
        %v1182 = vpop.trf.xlu0
        %v1183 = vpop.trf.xlu0
        %v1184 = vpop.trf.xlu0
        %v1185 = vpop.trf.xlu0
        %v1186 = vpop.trf.xlu0
        %v1187 = vpop.trf.xlu0
        %v1188 = vpop.trf.xlu0
        %v1189 = vpop.trf.xlu0
        %v1190 = vpop.trf.xlu0
        %v1191 = vpop.trf.xlu0
        %v1192 = vpop.trf.xlu0
        %v1193 = vpop.trf.xlu0
        %v1194 = vpop.trf.xlu0
        %v1195 = vpop.trf.xlu0
        %v1196 = vpop.trf.xlu0
        %v1197 = vpop.trf.xlu0
        %1198 = vxpose.xlu0.b32.start [1/16] %v790, 128
        %1199 = vxpose.xlu0.b32.cont [2/16] %v793, 128
        %1200 = vxpose.xlu0.b32.cont [3/16] 0.0, 128
        %1201 = vxpose.xlu0.b32.cont [4/16] 0.0, 128
        %1202 = vxpose.xlu0.b32.cont [5/16] 0.0, 128
        %1203 = vxpose.xlu0.b32.cont [6/16] 0.0, 128
        %1204 = vxpose.xlu0.b32.cont [7/16] 0.0, 128
        %1205 = vxpose.xlu0.b32.cont [8/16] 0.0, 128
        %1206 = vxpose.xlu0.b32.cont [9/16] 0.0, 128
        %1207 = vxpose.xlu0.b32.cont [10/16] 0.0, 128
        %1208 = vxpose.xlu0.b32.cont [11/16] 0.0, 128
        %1209 = vxpose.xlu0.b32.cont [12/16] 0.0, 128
        %1210 = vxpose.xlu0.b32.cont [13/16] 0.0, 128
        %1211 = vxpose.xlu0.b32.cont [14/16] 0.0, 128
        %1212 = vxpose.xlu0.b32.cont [15/16] 0.0, 128
        %1213 = vxpose.xlu0.b32.end [16/16] 0.0, 128
        %v1214 = vpop.trf.xlu0
        %v1215 = vpop.trf.xlu0
        %v1216 = vpop.trf.xlu0
        %v1217 = vpop.trf.xlu0
        %v1218 = vpop.trf.xlu0
        %v1219 = vpop.trf.xlu0
        %v1220 = vpop.trf.xlu0
        %v1221 = vpop.trf.xlu0
        %v1222 = vpop.trf.xlu0
        %v1223 = vpop.trf.xlu0
        %v1224 = vpop.trf.xlu0
        %v1225 = vpop.trf.xlu0
        %v1226 = vpop.trf.xlu0
        %v1227 = vpop.trf.xlu0
        %v1228 = vpop.trf.xlu0
        %v1229 = vpop.trf.xlu0
        %1230 = vxpose.xlu0.b32.start [1/16] %v798, 128
        %1231 = vxpose.xlu0.b32.cont [2/16] %v801, 128
        %1232 = vxpose.xlu0.b32.cont [3/16] 0.0, 128
        %1233 = vxpose.xlu0.b32.cont [4/16] 0.0, 128
        %1234 = vxpose.xlu0.b32.cont [5/16] 0.0, 128
        %1235 = vxpose.xlu0.b32.cont [6/16] 0.0, 128
        %1236 = vxpose.xlu0.b32.cont [7/16] 0.0, 128
        %1237 = vxpose.xlu0.b32.cont [8/16] 0.0, 128
        %1238 = vxpose.xlu0.b32.cont [9/16] 0.0, 128
        %1239 = vxpose.xlu0.b32.cont [10/16] 0.0, 128
        %1240 = vxpose.xlu0.b32.cont [11/16] 0.0, 128
        %1241 = vxpose.xlu0.b32.cont [12/16] 0.0, 128
        %1242 = vxpose.xlu0.b32.cont [13/16] 0.0, 128
        %1243 = vxpose.xlu0.b32.cont [14/16] 0.0, 128
        %1244 = vxpose.xlu0.b32.cont [15/16] 0.0, 128
        %1245 = vxpose.xlu0.b32.end [16/16] 0.0, 128
        %v1246 = vpop.trf.xlu0
        %v1247 = vpop.trf.xlu0
        %v1248 = vpop.trf.xlu0
        %v1249 = vpop.trf.xlu0
        %v1250 = vpop.trf.xlu0
        %v1251 = vpop.trf.xlu0
        %v1252 = vpop.trf.xlu0
        %v1253 = vpop.trf.xlu0
        %v1254 = vpop.trf.xlu0
        %v1255 = vpop.trf.xlu0
        %v1256 = vpop.trf.xlu0
        %v1257 = vpop.trf.xlu0
        %v1258 = vpop.trf.xlu0
        %v1259 = vpop.trf.xlu0
        %v1260 = vpop.trf.xlu0
        %v1261 = vpop.trf.xlu0
        %1262 = vxpose.xlu0.b32.start [1/16] %v806, 128
        %1263 = vxpose.xlu0.b32.cont [2/16] %v809, 128
        %1264 = vxpose.xlu0.b32.cont [3/16] 0.0, 128
        %1265 = vxpose.xlu0.b32.cont [4/16] 0.0, 128
        %1266 = vxpose.xlu0.b32.cont [5/16] 0.0, 128
        %1267 = vxpose.xlu0.b32.cont [6/16] 0.0, 128
        %1268 = vxpose.xlu0.b32.cont [7/16] 0.0, 128
        %1269 = vxpose.xlu0.b32.cont [8/16] 0.0, 128
        %1270 = vxpose.xlu0.b32.cont [9/16] 0.0, 128
        %1271 = vxpose.xlu0.b32.cont [10/16] 0.0, 128
        %1272 = vxpose.xlu0.b32.cont [11/16] 0.0, 128
        %1273 = vxpose.xlu0.b32.cont [12/16] 0.0, 128
        %1274 = vxpose.xlu0.b32.cont [13/16] 0.0, 128
        %1275 = vxpose.xlu0.b32.cont [14/16] 0.0, 128
        %1276 = vxpose.xlu0.b32.cont [15/16] 0.0, 128
        %1277 = vxpose.xlu0.b32.end [16/16] 0.0, 128
        %v1278 = vpop.trf.xlu0
        %v1279 = vpop.trf.xlu0
        %v1280 = vpop.trf.xlu0
        %v1281 = vpop.trf.xlu0
        %v1282 = vpop.trf.xlu0
        %v1283 = vpop.trf.xlu0
        %v1284 = vpop.trf.xlu0
        %v1285 = vpop.trf.xlu0
        %v1286 = vpop.trf.xlu0
        %v1287 = vpop.trf.xlu0
        %v1288 = vpop.trf.xlu0
        %v1289 = vpop.trf.xlu0
        %v1290 = vpop.trf.xlu0
        %v1291 = vpop.trf.xlu0
        %v1292 = vpop.trf.xlu0
        %v1293 = vpop.trf.xlu0
        %1294 = vxpose.xlu0.b32.start [1/16] %v814, 128
        %1295 = vxpose.xlu0.b32.cont [2/16] %v817, 128
        %1296 = vxpose.xlu0.b32.cont [3/16] 0.0, 128
        %1297 = vxpose.xlu0.b32.cont [4/16] 0.0, 128
        %1298 = vxpose.xlu0.b32.cont [5/16] 0.0, 128
        %1299 = vxpose.xlu0.b32.cont [6/16] 0.0, 128
        %1300 = vxpose.xlu0.b32.cont [7/16] 0.0, 128
        %1301 = vxpose.xlu0.b32.cont [8/16] 0.0, 128
        %1302 = vxpose.xlu0.b32.cont [9/16] 0.0, 128
        %1303 = vxpose.xlu0.b32.cont [10/16] 0.0, 128
        %1304 = vxpose.xlu0.b32.cont [11/16] 0.0, 128
        %1305 = vxpose.xlu0.b32.cont [12/16] 0.0, 128
        %1306 = vxpose.xlu0.b32.cont [13/16] 0.0, 128
        %1307 = vxpose.xlu0.b32.cont [14/16] 0.0, 128
        %1308 = vxpose.xlu0.b32.cont [15/16] 0.0, 128
        %1309 = vxpose.xlu0.b32.end [16/16] 0.0, 128
        %v1310 = vpop.trf.xlu0
        %v1311 = vpop.trf.xlu0
        %v1312 = vpop.trf.xlu0
        %v1313 = vpop.trf.xlu0
        %v1314 = vpop.trf.xlu0
        %v1315 = vpop.trf.xlu0
        %v1316 = vpop.trf.xlu0
        %v1317 = vpop.trf.xlu0
        %v1318 = vpop.trf.xlu0
        %v1319 = vpop.trf.xlu0
        %v1320 = vpop.trf.xlu0
        %v1321 = vpop.trf.xlu0
        %v1322 = vpop.trf.xlu0
        %v1323 = vpop.trf.xlu0
        %v1324 = vpop.trf.xlu0
        %v1325 = vpop.trf.xlu0
        %1326 = vxpose.xlu0.b32.start [1/16] %v822, 128
        %1327 = vxpose.xlu0.b32.cont [2/16] %v825, 128
        %1328 = vxpose.xlu0.b32.cont [3/16] 0.0, 128
        %1329 = vxpose.xlu0.b32.cont [4/16] 0.0, 128
        %1330 = vxpose.xlu0.b32.cont [5/16] 0.0, 128
        %1331 = vxpose.xlu0.b32.cont [6/16] 0.0, 128
        %1332 = vxpose.xlu0.b32.cont [7/16] 0.0, 128
        %1333 = vxpose.xlu0.b32.cont [8/16] 0.0, 128
        %1334 = vxpose.xlu0.b32.cont [9/16] 0.0, 128
        %1335 = vxpose.xlu0.b32.cont [10/16] 0.0, 128
        %1336 = vxpose.xlu0.b32.cont [11/16] 0.0, 128
        %1337 = vxpose.xlu0.b32.cont [12/16] 0.0, 128
        %1338 = vxpose.xlu0.b32.cont [13/16] 0.0, 128
        %1339 = vxpose.xlu0.b32.cont [14/16] 0.0, 128
        %1340 = vxpose.xlu0.b32.cont [15/16] 0.0, 128
        %1341 = vxpose.xlu0.b32.end [16/16] 0.0, 128
        %v1342 = vpop.trf.xlu0
        %v1343 = vpop.trf.xlu0
        %v1344 = vpop.trf.xlu0
        %v1345 = vpop.trf.xlu0
        %v1346 = vpop.trf.xlu0
        %v1347 = vpop.trf.xlu0
        %v1348 = vpop.trf.xlu0
        %v1349 = vpop.trf.xlu0
        %v1350 = vpop.trf.xlu0
        %v1351 = vpop.trf.xlu0
        %v1352 = vpop.trf.xlu0
        %v1353 = vpop.trf.xlu0
        %v1354 = vpop.trf.xlu0
        %v1355 = vpop.trf.xlu0
        %v1356 = vpop.trf.xlu0
        %v1357 = vpop.trf.xlu0
        %1358 = vxpose.xlu0.b32.start [1/16] %v830, 128
        %1359 = vxpose.xlu0.b32.cont [2/16] %v833, 128
        %1360 = vxpose.xlu0.b32.cont [3/16] 0.0, 128
        %1361 = vxpose.xlu0.b32.cont [4/16] 0.0, 128
        %1362 = vxpose.xlu0.b32.cont [5/16] 0.0, 128
        %1363 = vxpose.xlu0.b32.cont [6/16] 0.0, 128
        %1364 = vxpose.xlu0.b32.cont [7/16] 0.0, 128
        %1365 = vxpose.xlu0.b32.cont [8/16] 0.0, 128
        %1366 = vxpose.xlu0.b32.cont [9/16] 0.0, 128
        %1367 = vxpose.xlu0.b32.cont [10/16] 0.0, 128
        %1368 = vxpose.xlu0.b32.cont [11/16] 0.0, 128
        %1369 = vxpose.xlu0.b32.cont [12/16] 0.0, 128
        %1370 = vxpose.xlu0.b32.cont [13/16] 0.0, 128
        %1371 = vxpose.xlu0.b32.cont [14/16] 0.0, 128
        %1372 = vxpose.xlu0.b32.cont [15/16] 0.0, 128
        %1373 = vxpose.xlu0.b32.end [16/16] 0.0, 128
        %v1374 = vpop.trf.xlu0
        %v1375 = vpop.trf.xlu0
        %v1376 = vpop.trf.xlu0
        %v1377 = vpop.trf.xlu0
        %v1378 = vpop.trf.xlu0
        %v1379 = vpop.trf.xlu0
        %v1380 = vpop.trf.xlu0
        %v1381 = vpop.trf.xlu0
        %v1382 = vpop.trf.xlu0
        %v1383 = vpop.trf.xlu0
        %v1384 = vpop.trf.xlu0
        %v1385 = vpop.trf.xlu0
        %v1386 = vpop.trf.xlu0
        %v1387 = vpop.trf.xlu0
        %v1388 = vpop.trf.xlu0
        %v1389 = vpop.trf.xlu0
        %1390 = vxpose.xlu0.b32.start [1/16] %v838, 128
        %1391 = vxpose.xlu0.b32.cont [2/16] %v841, 128
        %1392 = vxpose.xlu0.b32.cont [3/16] 0.0, 128
        %1393 = vxpose.xlu0.b32.cont [4/16] 0.0, 128
        %1394 = vxpose.xlu0.b32.cont [5/16] 0.0, 128
        %1395 = vxpose.xlu0.b32.cont [6/16] 0.0, 128
        %1396 = vxpose.xlu0.b32.cont [7/16] 0.0, 128
        %1397 = vxpose.xlu0.b32.cont [8/16] 0.0, 128
        %1398 = vxpose.xlu0.b32.cont [9/16] 0.0, 128
        %1399 = vxpose.xlu0.b32.cont [10/16] 0.0, 128
        %1400 = vxpose.xlu0.b32.cont [11/16] 0.0, 128
        %1401 = vxpose.xlu0.b32.cont [12/16] 0.0, 128
        %1402 = vxpose.xlu0.b32.cont [13/16] 0.0, 128
        %1403 = vxpose.xlu0.b32.cont [14/16] 0.0, 128
        %1404 = vxpose.xlu0.b32.cont [15/16] 0.0, 128
        %1405 = vxpose.xlu0.b32.end [16/16] 0.0, 128
        %v1406 = vpop.trf.xlu0
        %v1407 = vpop.trf.xlu0
        %v1408 = vpop.trf.xlu0
        %v1409 = vpop.trf.xlu0
        %v1410 = vpop.trf.xlu0
        %v1411 = vpop.trf.xlu0
        %v1412 = vpop.trf.xlu0
        %v1413 = vpop.trf.xlu0
        %v1414 = vpop.trf.xlu0
        %v1415 = vpop.trf.xlu0
        %v1416 = vpop.trf.xlu0
        %v1417 = vpop.trf.xlu0
        %v1418 = vpop.trf.xlu0
        %v1419 = vpop.trf.xlu0
        %v1420 = vpop.trf.xlu0
        %v1421 = vpop.trf.xlu0
        %v1422 = vpack.c.bf16 %v1183, %v1182
        %v1423 = vpack.c.bf16 %v1215, %v1214
        %v1424 = vpack.c.bf16 %v1247, %v1246
        %v1425 = vpack.c.bf16 %v1279, %v1278
        %v1426 = vpack.c.bf16 %v1311, %v1310
        %v1427 = vpack.c.bf16 %v1343, %v1342
        %v1428 = vpack.c.bf16 %v1375, %v1374
        %v1429 = vpack.c.bf16 %v1407, %v1406
        %1430 = vxpose.xlu0.b32.start [1/16] %v943, 128
        %1431 = vxpose.xlu0.b32.cont [2/16] %v946, 128
        %1432 = vxpose.xlu0.b32.cont [3/16] 0.0, 128
        %1433 = vxpose.xlu0.b32.cont [4/16] 0.0, 128
        %1434 = vxpose.xlu0.b32.cont [5/16] 0.0, 128
        %1435 = vxpose.xlu0.b32.cont [6/16] 0.0, 128
        %1436 = vxpose.xlu0.b32.cont [7/16] 0.0, 128
        %1437 = vxpose.xlu0.b32.cont [8/16] 0.0, 128
        %1438 = vxpose.xlu0.b32.cont [9/16] 0.0, 128
        %1439 = vxpose.xlu0.b32.cont [10/16] 0.0, 128
        %1440 = vxpose.xlu0.b32.cont [11/16] 0.0, 128
        %1441 = vxpose.xlu0.b32.cont [12/16] 0.0, 128
        %1442 = vxpose.xlu0.b32.cont [13/16] 0.0, 128
        %1443 = vxpose.xlu0.b32.cont [14/16] 0.0, 128
        %1444 = vxpose.xlu0.b32.cont [15/16] 0.0, 128
        %1445 = vxpose.xlu0.b32.end [16/16] 0.0, 128
        %v1446 = vpop.trf.xlu0
        %v1447 = vpop.trf.xlu0
        %v1448 = vpop.trf.xlu0
        %v1449 = vpop.trf.xlu0
        %v1450 = vpop.trf.xlu0
        %v1451 = vpop.trf.xlu0
        %v1452 = vpop.trf.xlu0
        %v1453 = vpop.trf.xlu0
        %v1454 = vpop.trf.xlu0
        %v1455 = vpop.trf.xlu0
        %v1456 = vpop.trf.xlu0
        %v1457 = vpop.trf.xlu0
        %v1458 = vpop.trf.xlu0
        %v1459 = vpop.trf.xlu0
        %v1460 = vpop.trf.xlu0
        %v1461 = vpop.trf.xlu0
        %1462 = vxpose.xlu0.b32.start [1/16] %v951, 128
        %1463 = vxpose.xlu0.b32.cont [2/16] %v954, 128
        %1464 = vxpose.xlu0.b32.cont [3/16] 0.0, 128
        %1465 = vxpose.xlu0.b32.cont [4/16] 0.0, 128
        %1466 = vxpose.xlu0.b32.cont [5/16] 0.0, 128
        %1467 = vxpose.xlu0.b32.cont [6/16] 0.0, 128
        %1468 = vxpose.xlu0.b32.cont [7/16] 0.0, 128
        %1469 = vxpose.xlu0.b32.cont [8/16] 0.0, 128
        %1470 = vxpose.xlu0.b32.cont [9/16] 0.0, 128
        %1471 = vxpose.xlu0.b32.cont [10/16] 0.0, 128
        %1472 = vxpose.xlu0.b32.cont [11/16] 0.0, 128
        %1473 = vxpose.xlu0.b32.cont [12/16] 0.0, 128
        %1474 = vxpose.xlu0.b32.cont [13/16] 0.0, 128
        %1475 = vxpose.xlu0.b32.cont [14/16] 0.0, 128
        %1476 = vxpose.xlu0.b32.cont [15/16] 0.0, 128
        %1477 = vxpose.xlu0.b32.end [16/16] 0.0, 128
        %v1478 = vpop.trf.xlu0
        %v1479 = vpop.trf.xlu0
        %v1480 = vpop.trf.xlu0
        %v1481 = vpop.trf.xlu0
        %v1482 = vpop.trf.xlu0
        %v1483 = vpop.trf.xlu0
        %v1484 = vpop.trf.xlu0
        %v1485 = vpop.trf.xlu0
        %v1486 = vpop.trf.xlu0
        %v1487 = vpop.trf.xlu0
        %v1488 = vpop.trf.xlu0
        %v1489 = vpop.trf.xlu0
        %v1490 = vpop.trf.xlu0
        %v1491 = vpop.trf.xlu0
        %v1492 = vpop.trf.xlu0
        %v1493 = vpop.trf.xlu0
        %1494 = vxpose.xlu0.b32.start [1/16] %v959, 128
        %1495 = vxpose.xlu0.b32.cont [2/16] %v962, 128
        %1496 = vxpose.xlu0.b32.cont [3/16] 0.0, 128
        %1497 = vxpose.xlu0.b32.cont [4/16] 0.0, 128
        %1498 = vxpose.xlu0.b32.cont [5/16] 0.0, 128
        %1499 = vxpose.xlu0.b32.cont [6/16] 0.0, 128
        %1500 = vxpose.xlu0.b32.cont [7/16] 0.0, 128
        %1501 = vxpose.xlu0.b32.cont [8/16] 0.0, 128
        %1502 = vxpose.xlu0.b32.cont [9/16] 0.0, 128
        %1503 = vxpose.xlu0.b32.cont [10/16] 0.0, 128
        %1504 = vxpose.xlu0.b32.cont [11/16] 0.0, 128
        %1505 = vxpose.xlu0.b32.cont [12/16] 0.0, 128
        %1506 = vxpose.xlu0.b32.cont [13/16] 0.0, 128
        %1507 = vxpose.xlu0.b32.cont [14/16] 0.0, 128
        %1508 = vxpose.xlu0.b32.cont [15/16] 0.0, 128
        %1509 = vxpose.xlu0.b32.end [16/16] 0.0, 128
        %v1510 = vpop.trf.xlu0
        %v1511 = vpop.trf.xlu0
        %v1512 = vpop.trf.xlu0
        %v1513 = vpop.trf.xlu0
        %v1514 = vpop.trf.xlu0
        %v1515 = vpop.trf.xlu0
        %v1516 = vpop.trf.xlu0
        %v1517 = vpop.trf.xlu0
        %v1518 = vpop.trf.xlu0
        %v1519 = vpop.trf.xlu0
        %v1520 = vpop.trf.xlu0
        %v1521 = vpop.trf.xlu0
        %v1522 = vpop.trf.xlu0
        %v1523 = vpop.trf.xlu0
        %v1524 = vpop.trf.xlu0
        %v1525 = vpop.trf.xlu0
        %1526 = vxpose.xlu0.b32.start [1/16] %v967, 128
        %1527 = vxpose.xlu0.b32.cont [2/16] %v970, 128
        %1528 = vxpose.xlu0.b32.cont [3/16] 0.0, 128
        %1529 = vxpose.xlu0.b32.cont [4/16] 0.0, 128
        %1530 = vxpose.xlu0.b32.cont [5/16] 0.0, 128
        %1531 = vxpose.xlu0.b32.cont [6/16] 0.0, 128
        %1532 = vxpose.xlu0.b32.cont [7/16] 0.0, 128
        %1533 = vxpose.xlu0.b32.cont [8/16] 0.0, 128
        %1534 = vxpose.xlu0.b32.cont [9/16] 0.0, 128
        %1535 = vxpose.xlu0.b32.cont [10/16] 0.0, 128
        %1536 = vxpose.xlu0.b32.cont [11/16] 0.0, 128
        %1537 = vxpose.xlu0.b32.cont [12/16] 0.0, 128
        %1538 = vxpose.xlu0.b32.cont [13/16] 0.0, 128
        %1539 = vxpose.xlu0.b32.cont [14/16] 0.0, 128
        %1540 = vxpose.xlu0.b32.cont [15/16] 0.0, 128
        %1541 = vxpose.xlu0.b32.end [16/16] 0.0, 128
        %v1542 = vpop.trf.xlu0
        %v1543 = vpop.trf.xlu0
        %v1544 = vpop.trf.xlu0
        %v1545 = vpop.trf.xlu0
        %v1546 = vpop.trf.xlu0
        %v1547 = vpop.trf.xlu0
        %v1548 = vpop.trf.xlu0
        %v1549 = vpop.trf.xlu0
        %v1550 = vpop.trf.xlu0
        %v1551 = vpop.trf.xlu0
        %v1552 = vpop.trf.xlu0
        %v1553 = vpop.trf.xlu0
        %v1554 = vpop.trf.xlu0
        %v1555 = vpop.trf.xlu0
        %v1556 = vpop.trf.xlu0
        %v1557 = vpop.trf.xlu0
        %1558 = vxpose.xlu0.b32.start [1/16] %v975, 128
        %1559 = vxpose.xlu0.b32.cont [2/16] %v978, 128
        %1560 = vxpose.xlu0.b32.cont [3/16] 0.0, 128
        %1561 = vxpose.xlu0.b32.cont [4/16] 0.0, 128
        %1562 = vxpose.xlu0.b32.cont [5/16] 0.0, 128
        %1563 = vxpose.xlu0.b32.cont [6/16] 0.0, 128
        %1564 = vxpose.xlu0.b32.cont [7/16] 0.0, 128
        %1565 = vxpose.xlu0.b32.cont [8/16] 0.0, 128
        %1566 = vxpose.xlu0.b32.cont [9/16] 0.0, 128
        %1567 = vxpose.xlu0.b32.cont [10/16] 0.0, 128
        %1568 = vxpose.xlu0.b32.cont [11/16] 0.0, 128
        %1569 = vxpose.xlu0.b32.cont [12/16] 0.0, 128
        %1570 = vxpose.xlu0.b32.cont [13/16] 0.0, 128
        %1571 = vxpose.xlu0.b32.cont [14/16] 0.0, 128
        %1572 = vxpose.xlu0.b32.cont [15/16] 0.0, 128
        %1573 = vxpose.xlu0.b32.end [16/16] 0.0, 128
        %v1574 = vpop.trf.xlu0
        %v1575 = vpop.trf.xlu0
        %v1576 = vpop.trf.xlu0
        %v1577 = vpop.trf.xlu0
        %v1578 = vpop.trf.xlu0
        %v1579 = vpop.trf.xlu0
        %v1580 = vpop.trf.xlu0
        %v1581 = vpop.trf.xlu0
        %v1582 = vpop.trf.xlu0
        %v1583 = vpop.trf.xlu0
        %v1584 = vpop.trf.xlu0
        %v1585 = vpop.trf.xlu0
        %v1586 = vpop.trf.xlu0
        %v1587 = vpop.trf.xlu0
        %v1588 = vpop.trf.xlu0
        %v1589 = vpop.trf.xlu0
        %1590 = vxpose.xlu0.b32.start [1/16] %v983, 128
        %1591 = vxpose.xlu0.b32.cont [2/16] %v986, 128
        %1592 = vxpose.xlu0.b32.cont [3/16] 0.0, 128
        %1593 = vxpose.xlu0.b32.cont [4/16] 0.0, 128
        %1594 = vxpose.xlu0.b32.cont [5/16] 0.0, 128
        %1595 = vxpose.xlu0.b32.cont [6/16] 0.0, 128
        %1596 = vxpose.xlu0.b32.cont [7/16] 0.0, 128
        %1597 = vxpose.xlu0.b32.cont [8/16] 0.0, 128
        %1598 = vxpose.xlu0.b32.cont [9/16] 0.0, 128
        %1599 = vxpose.xlu0.b32.cont [10/16] 0.0, 128
        %1600 = vxpose.xlu0.b32.cont [11/16] 0.0, 128
        %1601 = vxpose.xlu0.b32.cont [12/16] 0.0, 128
        %1602 = vxpose.xlu0.b32.cont [13/16] 0.0, 128
        %1603 = vxpose.xlu0.b32.cont [14/16] 0.0, 128
        %1604 = vxpose.xlu0.b32.cont [15/16] 0.0, 128
        %1605 = vxpose.xlu0.b32.end [16/16] 0.0, 128
        %v1606 = vpop.trf.xlu0
        %v1607 = vpop.trf.xlu0
        %v1608 = vpop.trf.xlu0
        %v1609 = vpop.trf.xlu0
        %v1610 = vpop.trf.xlu0
        %v1611 = vpop.trf.xlu0
        %v1612 = vpop.trf.xlu0
        %v1613 = vpop.trf.xlu0
        %v1614 = vpop.trf.xlu0
        %v1615 = vpop.trf.xlu0
        %v1616 = vpop.trf.xlu0
        %v1617 = vpop.trf.xlu0
        %v1618 = vpop.trf.xlu0
        %v1619 = vpop.trf.xlu0
        %v1620 = vpop.trf.xlu0
        %v1621 = vpop.trf.xlu0
        %1622 = vxpose.xlu0.b32.start [1/16] %v991, 128
        %1623 = vxpose.xlu0.b32.cont [2/16] %v994, 128
        %1624 = vxpose.xlu0.b32.cont [3/16] 0.0, 128
        %1625 = vxpose.xlu0.b32.cont [4/16] 0.0, 128
        %1626 = vxpose.xlu0.b32.cont [5/16] 0.0, 128
        %1627 = vxpose.xlu0.b32.cont [6/16] 0.0, 128
        %1628 = vxpose.xlu0.b32.cont [7/16] 0.0, 128
        %1629 = vxpose.xlu0.b32.cont [8/16] 0.0, 128
        %1630 = vxpose.xlu0.b32.cont [9/16] 0.0, 128
        %1631 = vxpose.xlu0.b32.cont [10/16] 0.0, 128
        %1632 = vxpose.xlu0.b32.cont [11/16] 0.0, 128
        %1633 = vxpose.xlu0.b32.cont [12/16] 0.0, 128
        %1634 = vxpose.xlu0.b32.cont [13/16] 0.0, 128
        %1635 = vxpose.xlu0.b32.cont [14/16] 0.0, 128
        %1636 = vxpose.xlu0.b32.cont [15/16] 0.0, 128
        %1637 = vxpose.xlu0.b32.end [16/16] 0.0, 128
        %v1638 = vpop.trf.xlu0
        %v1639 = vpop.trf.xlu0
        %v1640 = vpop.trf.xlu0
        %v1641 = vpop.trf.xlu0
        %v1642 = vpop.trf.xlu0
        %v1643 = vpop.trf.xlu0
        %v1644 = vpop.trf.xlu0
        %v1645 = vpop.trf.xlu0
        %v1646 = vpop.trf.xlu0
        %v1647 = vpop.trf.xlu0
        %v1648 = vpop.trf.xlu0
        %v1649 = vpop.trf.xlu0
        %v1650 = vpop.trf.xlu0
        %v1651 = vpop.trf.xlu0
        %v1652 = vpop.trf.xlu0
        %v1653 = vpop.trf.xlu0
        %1654 = vxpose.xlu0.b32.start [1/16] %v999, 128
        %1655 = vxpose.xlu0.b32.cont [2/16] %v1002, 128
        %1656 = vxpose.xlu0.b32.cont [3/16] 0.0, 128
        %1657 = vxpose.xlu0.b32.cont [4/16] 0.0, 128
        %1658 = vxpose.xlu0.b32.cont [5/16] 0.0, 128
        %1659 = vxpose.xlu0.b32.cont [6/16] 0.0, 128
        %1660 = vxpose.xlu0.b32.cont [7/16] 0.0, 128
        %1661 = vxpose.xlu0.b32.cont [8/16] 0.0, 128
        %1662 = vxpose.xlu0.b32.cont [9/16] 0.0, 128
        %1663 = vxpose.xlu0.b32.cont [10/16] 0.0, 128
        %1664 = vxpose.xlu0.b32.cont [11/16] 0.0, 128
        %1665 = vxpose.xlu0.b32.cont [12/16] 0.0, 128
        %1666 = vxpose.xlu0.b32.cont [13/16] 0.0, 128
        %1667 = vxpose.xlu0.b32.cont [14/16] 0.0, 128
        %1668 = vxpose.xlu0.b32.cont [15/16] 0.0, 128
        %1669 = vxpose.xlu0.b32.end [16/16] 0.0, 128
        %v1670 = vpop.trf.xlu0
        %v1671 = vpop.trf.xlu0
        %v1672 = vpop.trf.xlu0
        %v1673 = vpop.trf.xlu0
        %v1674 = vpop.trf.xlu0
        %v1675 = vpop.trf.xlu0
        %v1676 = vpop.trf.xlu0
        %v1677 = vpop.trf.xlu0
        %v1678 = vpop.trf.xlu0
        %v1679 = vpop.trf.xlu0
        %v1680 = vpop.trf.xlu0
        %v1681 = vpop.trf.xlu0
        %v1682 = vpop.trf.xlu0
        %v1683 = vpop.trf.xlu0
        %v1684 = vpop.trf.xlu0
        %v1685 = vpop.trf.xlu0
        %v1686 = vpack.c.bf16 %v1447, %v1446
        %v1687 = vpack.c.bf16 %v1479, %v1478
        %v1688 = vpack.c.bf16 %v1511, %v1510
        %v1689 = vpack.c.bf16 %v1543, %v1542
        %v1690 = vpack.c.bf16 %v1575, %v1574
        %v1691 = vpack.c.bf16 %v1607, %v1606
        %v1692 = vpack.c.bf16 %v1639, %v1638
        %v1693 = vpack.c.bf16 %v1671, %v1670
        %v1694 = vpack.c.bf16 %v1107, %v1104
        %v1695 = vpack.c.bf16 %v1115, %v1112
        %v1696 = vpack.c.bf16 %v1123, %v1120
        %v1697 = vpack.c.bf16 %v1131, %v1128
        %v1698 = vpack.c.bf16 %v1139, %v1136
        %v1699 = vpack.c.bf16 %v1147, %v1144
        %v1700 = vpack.c.bf16 %v1155, %v1152
        %v1701 = vpack.c.bf16 %v1163, %v1160
        %vm1702 = vcmask 130048
        %v1704 = vsel %vm1702, %v1422, 0
        %v1707 = vsel %vm1702, %v1686, 0
        %1709 = vmatprep.subr.bf16.mxu0 0
        %1710 = vmatpush1.bf16.xpose.msra.mxu0 %v1707
        %1711 = vmatprep.subr.bf16.mxu0 0
        %1712 = vmatpush1.bf16.xpose.msra.mxu0 0
        %1713 = vmatprep.subr.bf16.mxu0 0
        %1714 = vmatpush1.bf16.xpose.msra.mxu0 0
        %1715 = vmatprep.subr.bf16.mxu0 0
        %1716 = vmatpush1.bf16.xpose.msra.mxu0 0
        %1717 = vmatprep.subr.bf16.mxu0 0
        %1718 = vmatpush1.bf16.xpose.msra.mxu0 0
        %1719 = vmatprep.subr.bf16.mxu0 0
        %1720 = vmatpush1.bf16.xpose.msra.mxu0 0
        %1721 = vmatprep.subr.bf16.mxu0 0
        %1722 = vmatpush1.bf16.xpose.msra.mxu0 0
        %1723 = vmatprep.subr.bf16.mxu0 0
        %1724 = vmatpush1.bf16.xpose.msra.mxu0 0
        %1725 = vmatprep.subr.bf16.mxu0 0
        %1726 = vmatpush1.bf16.xpose.msra.mxu0 0
        %1727 = vmatprep.subr.bf16.mxu0 0
        %1728 = vmatpush1.bf16.xpose.msra.mxu0 0
        %1729 = vmatprep.subr.bf16.mxu0 0
        %1730 = vmatpush1.bf16.xpose.msra.mxu0 0
        %1731 = vmatprep.subr.bf16.mxu0 0
        %1732 = vmatpush1.bf16.xpose.msra.mxu0 0
        %1733 = vmatprep.subr.bf16.mxu0 0
        %1734 = vmatpush1.bf16.xpose.msra.mxu0 0
        %1735 = vmatprep.subr.bf16.mxu0 0
        %1736 = vmatpush1.bf16.xpose.msra.mxu0 0
        %1737 = vmatprep.subr.bf16.mxu0 0
        %1738 = vmatpush1.bf16.xpose.msra.mxu0 0
        %1739 = vmatprep.subr.bf16.mxu0 0
        %1740 = vmatpush1.bf16.xpose.msra.mxu0 0
        %1741 = vmatprep.mubr.bf16.mxu0 0
        %1742 = vmatmul.mubr.bf16.gmra.mrb[0].mxu0 %v1704
        %v1743 = vpop.f32.mrb[0].mxu0
        %v1744 = vadd.f32 0.0, %v1743
        %v1745 = vpop.f32.mrb[0].mxu0
        %v1746 = vpop.f32.mrb[0].mxu0
        %v1747 = vadd.f32 0.0, %v1746
        %v1748 = vpop.f32.mrb[0].mxu0
        %1749 = vdwg.mxu0
        %v1751 = vsel %vm1702, %v1423, 0
        %v1754 = vsel %vm1702, %v1687, 0
        %1756 = vmatprep.subr.bf16.mxu0 0
        %1757 = vmatpush1.bf16.xpose.msra.mxu0 %v1754
        %1758 = vmatprep.subr.bf16.mxu0 0
        %1759 = vmatpush1.bf16.xpose.msra.mxu0 0
        %1760 = vmatprep.subr.bf16.mxu0 0
        %1761 = vmatpush1.bf16.xpose.msra.mxu0 0
        %1762 = vmatprep.subr.bf16.mxu0 0
        %1763 = vmatpush1.bf16.xpose.msra.mxu0 0
        %1764 = vmatprep.subr.bf16.mxu0 0
        %1765 = vmatpush1.bf16.xpose.msra.mxu0 0
        %1766 = vmatprep.subr.bf16.mxu0 0
        %1767 = vmatpush1.bf16.xpose.msra.mxu0 0
        %1768 = vmatprep.subr.bf16.mxu0 0
        %1769 = vmatpush1.bf16.xpose.msra.mxu0 0
        %1770 = vmatprep.subr.bf16.mxu0 0
        %1771 = vmatpush1.bf16.xpose.msra.mxu0 0
        %1772 = vmatprep.subr.bf16.mxu0 0
        %1773 = vmatpush1.bf16.xpose.msra.mxu0 0
        %1774 = vmatprep.subr.bf16.mxu0 0
        %1775 = vmatpush1.bf16.xpose.msra.mxu0 0
        %1776 = vmatprep.subr.bf16.mxu0 0
        %1777 = vmatpush1.bf16.xpose.msra.mxu0 0
        %1778 = vmatprep.subr.bf16.mxu0 0
        %1779 = vmatpush1.bf16.xpose.msra.mxu0 0
        %1780 = vmatprep.subr.bf16.mxu0 0
        %1781 = vmatpush1.bf16.xpose.msra.mxu0 0
        %1782 = vmatprep.subr.bf16.mxu0 0
        %1783 = vmatpush1.bf16.xpose.msra.mxu0 0
        %1784 = vmatprep.subr.bf16.mxu0 0
        %1785 = vmatpush1.bf16.xpose.msra.mxu0 0
        %1786 = vmatprep.subr.bf16.mxu0 0
        %1787 = vmatpush1.bf16.xpose.msra.mxu0 0
        %1788 = vmatprep.mubr.bf16.mxu0 0
        %1789 = vmatmul.mubr.bf16.gmra.mrb[0].mxu0 %v1751
        %v1790 = vpop.f32.mrb[0].mxu0
        %v1791 = vadd.f32 0.0, %v1790
        %v1792 = vpop.f32.mrb[0].mxu0
        %v1793 = vpop.f32.mrb[0].mxu0
        %v1794 = vadd.f32 0.0, %v1793
        %v1795 = vpop.f32.mrb[0].mxu0
        %1796 = vdwg.mxu0
        %v1798 = vsel %vm1702, %v1424, 0
        %v1801 = vsel %vm1702, %v1688, 0
        %1803 = vmatprep.subr.bf16.mxu0 0
        %1804 = vmatpush1.bf16.xpose.msra.mxu0 %v1801
        %1805 = vmatprep.subr.bf16.mxu0 0
        %1806 = vmatpush1.bf16.xpose.msra.mxu0 0
        %1807 = vmatprep.subr.bf16.mxu0 0
        %1808 = vmatpush1.bf16.xpose.msra.mxu0 0
        %1809 = vmatprep.subr.bf16.mxu0 0
        %1810 = vmatpush1.bf16.xpose.msra.mxu0 0
        %1811 = vmatprep.subr.bf16.mxu0 0
        %1812 = vmatpush1.bf16.xpose.msra.mxu0 0
        %1813 = vmatprep.subr.bf16.mxu0 0
        %1814 = vmatpush1.bf16.xpose.msra.mxu0 0
        %1815 = vmatprep.subr.bf16.mxu0 0
        %1816 = vmatpush1.bf16.xpose.msra.mxu0 0
        %1817 = vmatprep.subr.bf16.mxu0 0
        %1818 = vmatpush1.bf16.xpose.msra.mxu0 0
        %1819 = vmatprep.subr.bf16.mxu0 0
        %1820 = vmatpush1.bf16.xpose.msra.mxu0 0
        %1821 = vmatprep.subr.bf16.mxu0 0
        %1822 = vmatpush1.bf16.xpose.msra.mxu0 0
        %1823 = vmatprep.subr.bf16.mxu0 0
        %1824 = vmatpush1.bf16.xpose.msra.mxu0 0
        %1825 = vmatprep.subr.bf16.mxu0 0
        %1826 = vmatpush1.bf16.xpose.msra.mxu0 0
        %1827 = vmatprep.subr.bf16.mxu0 0
        %1828 = vmatpush1.bf16.xpose.msra.mxu0 0
        %1829 = vmatprep.subr.bf16.mxu0 0
        %1830 = vmatpush1.bf16.xpose.msra.mxu0 0
        %1831 = vmatprep.subr.bf16.mxu0 0
        %1832 = vmatpush1.bf16.xpose.msra.mxu0 0
        %1833 = vmatprep.subr.bf16.mxu0 0
        %1834 = vmatpush1.bf16.xpose.msra.mxu0 0
        %1835 = vmatprep.mubr.bf16.mxu0 0
        %1836 = vmatmul.mubr.bf16.gmra.mrb[0].mxu0 %v1798
        %v1837 = vpop.f32.mrb[0].mxu0
        %v1838 = vadd.f32 0.0, %v1837
        %v1839 = vpop.f32.mrb[0].mxu0
        %v1840 = vpop.f32.mrb[0].mxu0
        %v1841 = vadd.f32 0.0, %v1840
        %v1842 = vpop.f32.mrb[0].mxu0
        %1843 = vdwg.mxu0
        %v1845 = vsel %vm1702, %v1425, 0
        %v1848 = vsel %vm1702, %v1689, 0
        %1850 = vmatprep.subr.bf16.mxu0 0
        %1851 = vmatpush1.bf16.xpose.msra.mxu0 %v1848
        %1852 = vmatprep.subr.bf16.mxu0 0
        %1853 = vmatpush1.bf16.xpose.msra.mxu0 0
        %1854 = vmatprep.subr.bf16.mxu0 0
        %1855 = vmatpush1.bf16.xpose.msra.mxu0 0
        %1856 = vmatprep.subr.bf16.mxu0 0
        %1857 = vmatpush1.bf16.xpose.msra.mxu0 0
        %1858 = vmatprep.subr.bf16.mxu0 0
        %1859 = vmatpush1.bf16.xpose.msra.mxu0 0
        %1860 = vmatprep.subr.bf16.mxu0 0
        %1861 = vmatpush1.bf16.xpose.msra.mxu0 0
        %1862 = vmatprep.subr.bf16.mxu0 0
        %1863 = vmatpush1.bf16.xpose.msra.mxu0 0
        %1864 = vmatprep.subr.bf16.mxu0 0
        %1865 = vmatpush1.bf16.xpose.msra.mxu0 0
        %1866 = vmatprep.subr.bf16.mxu0 0
        %1867 = vmatpush1.bf16.xpose.msra.mxu0 0
        %1868 = vmatprep.subr.bf16.mxu0 0
        %1869 = vmatpush1.bf16.xpose.msra.mxu0 0
        %1870 = vmatprep.subr.bf16.mxu0 0
        %1871 = vmatpush1.bf16.xpose.msra.mxu0 0
        %1872 = vmatprep.subr.bf16.mxu0 0
        %1873 = vmatpush1.bf16.xpose.msra.mxu0 0
        %1874 = vmatprep.subr.bf16.mxu0 0
        %1875 = vmatpush1.bf16.xpose.msra.mxu0 0
        %1876 = vmatprep.subr.bf16.mxu0 0
        %1877 = vmatpush1.bf16.xpose.msra.mxu0 0
        %1878 = vmatprep.subr.bf16.mxu0 0
        %1879 = vmatpush1.bf16.xpose.msra.mxu0 0
        %1880 = vmatprep.subr.bf16.mxu0 0
        %1881 = vmatpush1.bf16.xpose.msra.mxu0 0
        %1882 = vmatprep.mubr.bf16.mxu0 0
        %1883 = vmatmul.mubr.bf16.gmra.mrb[0].mxu0 %v1845
        %v1884 = vpop.f32.mrb[0].mxu0
        %v1885 = vadd.f32 0.0, %v1884
        %v1886 = vpop.f32.mrb[0].mxu0
        %v1887 = vpop.f32.mrb[0].mxu0
        %v1888 = vadd.f32 0.0, %v1887
        %v1889 = vpop.f32.mrb[0].mxu0
        %1890 = vdwg.mxu0
        %v1892 = vsel %vm1702, %v1426, 0
        %v1895 = vsel %vm1702, %v1690, 0
        %1897 = vmatprep.subr.bf16.mxu0 0
        %1898 = vmatpush1.bf16.xpose.msra.mxu0 %v1895
        %1899 = vmatprep.subr.bf16.mxu0 0
        %1900 = vmatpush1.bf16.xpose.msra.mxu0 0
        %1901 = vmatprep.subr.bf16.mxu0 0
        %1902 = vmatpush1.bf16.xpose.msra.mxu0 0
        %1903 = vmatprep.subr.bf16.mxu0 0
        %1904 = vmatpush1.bf16.xpose.msra.mxu0 0
        %1905 = vmatprep.subr.bf16.mxu0 0
        %1906 = vmatpush1.bf16.xpose.msra.mxu0 0
        %1907 = vmatprep.subr.bf16.mxu0 0
        %1908 = vmatpush1.bf16.xpose.msra.mxu0 0
        %1909 = vmatprep.subr.bf16.mxu0 0
        %1910 = vmatpush1.bf16.xpose.msra.mxu0 0
        %1911 = vmatprep.subr.bf16.mxu0 0
        %1912 = vmatpush1.bf16.xpose.msra.mxu0 0
        %1913 = vmatprep.subr.bf16.mxu0 0
        %1914 = vmatpush1.bf16.xpose.msra.mxu0 0
        %1915 = vmatprep.subr.bf16.mxu0 0
        %1916 = vmatpush1.bf16.xpose.msra.mxu0 0
        %1917 = vmatprep.subr.bf16.mxu0 0
        %1918 = vmatpush1.bf16.xpose.msra.mxu0 0
        %1919 = vmatprep.subr.bf16.mxu0 0
        %1920 = vmatpush1.bf16.xpose.msra.mxu0 0
        %1921 = vmatprep.subr.bf16.mxu0 0
        %1922 = vmatpush1.bf16.xpose.msra.mxu0 0
        %1923 = vmatprep.subr.bf16.mxu0 0
        %1924 = vmatpush1.bf16.xpose.msra.mxu0 0
        %1925 = vmatprep.subr.bf16.mxu0 0
        %1926 = vmatpush1.bf16.xpose.msra.mxu0 0
        %1927 = vmatprep.subr.bf16.mxu0 0
        %1928 = vmatpush1.bf16.xpose.msra.mxu0 0
        %1929 = vmatprep.mubr.bf16.mxu0 0
        %1930 = vmatmul.mubr.bf16.gmra.mrb[0].mxu0 %v1892
        %v1931 = vpop.f32.mrb[0].mxu0
        %v1932 = vadd.f32 0.0, %v1931
        %v1933 = vpop.f32.mrb[0].mxu0
        %v1934 = vpop.f32.mrb[0].mxu0
        %v1935 = vadd.f32 0.0, %v1934
        %v1936 = vpop.f32.mrb[0].mxu0
        %1937 = vdwg.mxu0
        %v1939 = vsel %vm1702, %v1427, 0
        %v1942 = vsel %vm1702, %v1691, 0
        %1944 = vmatprep.subr.bf16.mxu0 0
        %1945 = vmatpush1.bf16.xpose.msra.mxu0 %v1942
        %1946 = vmatprep.subr.bf16.mxu0 0
        %1947 = vmatpush1.bf16.xpose.msra.mxu0 0
        %1948 = vmatprep.subr.bf16.mxu0 0
        %1949 = vmatpush1.bf16.xpose.msra.mxu0 0
        %1950 = vmatprep.subr.bf16.mxu0 0
        %1951 = vmatpush1.bf16.xpose.msra.mxu0 0
        %1952 = vmatprep.subr.bf16.mxu0 0
        %1953 = vmatpush1.bf16.xpose.msra.mxu0 0
        %1954 = vmatprep.subr.bf16.mxu0 0
        %1955 = vmatpush1.bf16.xpose.msra.mxu0 0
        %1956 = vmatprep.subr.bf16.mxu0 0
        %1957 = vmatpush1.bf16.xpose.msra.mxu0 0
        %1958 = vmatprep.subr.bf16.mxu0 0
        %1959 = vmatpush1.bf16.xpose.msra.mxu0 0
        %1960 = vmatprep.subr.bf16.mxu0 0
        %1961 = vmatpush1.bf16.xpose.msra.mxu0 0
        %1962 = vmatprep.subr.bf16.mxu0 0
        %1963 = vmatpush1.bf16.xpose.msra.mxu0 0
        %1964 = vmatprep.subr.bf16.mxu0 0
        %1965 = vmatpush1.bf16.xpose.msra.mxu0 0
        %1966 = vmatprep.subr.bf16.mxu0 0
        %1967 = vmatpush1.bf16.xpose.msra.mxu0 0
        %1968 = vmatprep.subr.bf16.mxu0 0
        %1969 = vmatpush1.bf16.xpose.msra.mxu0 0
        %1970 = vmatprep.subr.bf16.mxu0 0
        %1971 = vmatpush1.bf16.xpose.msra.mxu0 0
        %1972 = vmatprep.subr.bf16.mxu0 0
        %1973 = vmatpush1.bf16.xpose.msra.mxu0 0
        %1974 = vmatprep.subr.bf16.mxu0 0
        %1975 = vmatpush1.bf16.xpose.msra.mxu0 0
        %1976 = vmatprep.mubr.bf16.mxu0 0
        %1977 = vmatmul.mubr.bf16.gmra.mrb[0].mxu0 %v1939
        %v1978 = vpop.f32.mrb[0].mxu0
        %v1979 = vadd.f32 0.0, %v1978
        %v1980 = vpop.f32.mrb[0].mxu0
        %v1981 = vpop.f32.mrb[0].mxu0
        %v1982 = vadd.f32 0.0, %v1981
        %v1983 = vpop.f32.mrb[0].mxu0
        %1984 = vdwg.mxu0
        %v1986 = vsel %vm1702, %v1428, 0
        %v1989 = vsel %vm1702, %v1692, 0
        %1991 = vmatprep.subr.bf16.mxu0 0
        %1992 = vmatpush1.bf16.xpose.msra.mxu0 %v1989
        %1993 = vmatprep.subr.bf16.mxu0 0
        %1994 = vmatpush1.bf16.xpose.msra.mxu0 0
        %1995 = vmatprep.subr.bf16.mxu0 0
        %1996 = vmatpush1.bf16.xpose.msra.mxu0 0
        %1997 = vmatprep.subr.bf16.mxu0 0
        %1998 = vmatpush1.bf16.xpose.msra.mxu0 0
        %1999 = vmatprep.subr.bf16.mxu0 0
        %2000 = vmatpush1.bf16.xpose.msra.mxu0 0
        %2001 = vmatprep.subr.bf16.mxu0 0
        %2002 = vmatpush1.bf16.xpose.msra.mxu0 0
        %2003 = vmatprep.subr.bf16.mxu0 0
        %2004 = vmatpush1.bf16.xpose.msra.mxu0 0
        %2005 = vmatprep.subr.bf16.mxu0 0
        %2006 = vmatpush1.bf16.xpose.msra.mxu0 0
        %2007 = vmatprep.subr.bf16.mxu0 0
        %2008 = vmatpush1.bf16.xpose.msra.mxu0 0
        %2009 = vmatprep.subr.bf16.mxu0 0
        %2010 = vmatpush1.bf16.xpose.msra.mxu0 0
        %2011 = vmatprep.subr.bf16.mxu0 0
        %2012 = vmatpush1.bf16.xpose.msra.mxu0 0
        %2013 = vmatprep.subr.bf16.mxu0 0
        %2014 = vmatpush1.bf16.xpose.msra.mxu0 0
        %2015 = vmatprep.subr.bf16.mxu0 0
        %2016 = vmatpush1.bf16.xpose.msra.mxu0 0
        %2017 = vmatprep.subr.bf16.mxu0 0
        %2018 = vmatpush1.bf16.xpose.msra.mxu0 0
        %2019 = vmatprep.subr.bf16.mxu0 0
        %2020 = vmatpush1.bf16.xpose.msra.mxu0 0
        %2021 = vmatprep.subr.bf16.mxu0 0
        %2022 = vmatpush1.bf16.xpose.msra.mxu0 0
        %2023 = vmatprep.mubr.bf16.mxu0 0
        %2024 = vmatmul.mubr.bf16.gmra.mrb[0].mxu0 %v1986
        %v2025 = vpop.f32.mrb[0].mxu0
        %v2026 = vadd.f32 0.0, %v2025
        %v2027 = vpop.f32.mrb[0].mxu0
        %v2028 = vpop.f32.mrb[0].mxu0
        %v2029 = vadd.f32 0.0, %v2028
        %v2030 = vpop.f32.mrb[0].mxu0
        %2031 = vdwg.mxu0
        %v2033 = vsel %vm1702, %v1429, 0
        %v2036 = vsel %vm1702, %v1693, 0
        %2038 = vmatprep.subr.bf16.mxu0 0
        %2039 = vmatpush1.bf16.xpose.msra.mxu0 %v2036
        %2040 = vmatprep.subr.bf16.mxu0 0
        %2041 = vmatpush1.bf16.xpose.msra.mxu0 0
        %2042 = vmatprep.subr.bf16.mxu0 0
        %2043 = vmatpush1.bf16.xpose.msra.mxu0 0
        %2044 = vmatprep.subr.bf16.mxu0 0
        %2045 = vmatpush1.bf16.xpose.msra.mxu0 0
        %2046 = vmatprep.subr.bf16.mxu0 0
        %2047 = vmatpush1.bf16.xpose.msra.mxu0 0
        %2048 = vmatprep.subr.bf16.mxu0 0
        %2049 = vmatpush1.bf16.xpose.msra.mxu0 0
        %2050 = vmatprep.subr.bf16.mxu0 0
        %2051 = vmatpush1.bf16.xpose.msra.mxu0 0
        %2052 = vmatprep.subr.bf16.mxu0 0
        %2053 = vmatpush1.bf16.xpose.msra.mxu0 0
        %2054 = vmatprep.subr.bf16.mxu0 0
        %2055 = vmatpush1.bf16.xpose.msra.mxu0 0
        %2056 = vmatprep.subr.bf16.mxu0 0
        %2057 = vmatpush1.bf16.xpose.msra.mxu0 0
        %2058 = vmatprep.subr.bf16.mxu0 0
        %2059 = vmatpush1.bf16.xpose.msra.mxu0 0
        %2060 = vmatprep.subr.bf16.mxu0 0
        %2061 = vmatpush1.bf16.xpose.msra.mxu0 0
        %2062 = vmatprep.subr.bf16.mxu0 0
        %2063 = vmatpush1.bf16.xpose.msra.mxu0 0
        %2064 = vmatprep.subr.bf16.mxu0 0
        %2065 = vmatpush1.bf16.xpose.msra.mxu0 0
        %2066 = vmatprep.subr.bf16.mxu0 0
        %2067 = vmatpush1.bf16.xpose.msra.mxu0 0
        %2068 = vmatprep.subr.bf16.mxu0 0
        %2069 = vmatpush1.bf16.xpose.msra.mxu0 0
        %2070 = vmatprep.mubr.bf16.mxu0 0
        %2071 = vmatmul.mubr.bf16.gmra.mrb[0].mxu0 %v2033
        %v2072 = vpop.f32.mrb[0].mxu0
        %v2073 = vadd.f32 0.0, %v2072
        %v2074 = vpop.f32.mrb[0].mxu0
        %v2075 = vpop.f32.mrb[0].mxu0
        %v2076 = vadd.f32 0.0, %v2075
        %v2077 = vpop.f32.mrb[0].mxu0
        %2078 = vdwg.mxu0
        %v2079 = vsel %vm1702, %v1744, -inf
        %2080 = vmax.xlane.f32.xlu0 %v2079
        %v2081 = vpop.xlane.xlu0 %2080
        %v2082 = vsel %vm1702, %v1747, -inf
        %2083 = vmax.xlane.f32.xlu0 %v2082
        %v2084 = vpop.xlane.xlu0 %2083
        %v2085 = vsel %vm1702, %v1791, -inf
        %2086 = vmax.xlane.f32.xlu0 %v2085
        %v2087 = vpop.xlane.xlu0 %2086
        %v2088 = vsel %vm1702, %v1794, -inf
        %2089 = vmax.xlane.f32.xlu0 %v2088
        %v2090 = vpop.xlane.xlu0 %2089
        %v2091 = vsel %vm1702, %v1838, -inf
        %2092 = vmax.xlane.f32.xlu0 %v2091
        %v2093 = vpop.xlane.xlu0 %2092
        %v2094 = vsel %vm1702, %v1841, -inf
        %2095 = vmax.xlane.f32.xlu0 %v2094
        %v2096 = vpop.xlane.xlu0 %2095
        %v2097 = vsel %vm1702, %v1885, -inf
        %2098 = vmax.xlane.f32.xlu0 %v2097
        %v2099 = vpop.xlane.xlu0 %2098
        %v2100 = vsel %vm1702, %v1888, -inf
        %2101 = vmax.xlane.f32.xlu0 %v2100
        %v2102 = vpop.xlane.xlu0 %2101
        %v2103 = vsel %vm1702, %v1932, -inf
        %2104 = vmax.xlane.f32.xlu0 %v2103
        %v2105 = vpop.xlane.xlu0 %2104
        %v2106 = vsel %vm1702, %v1935, -inf
        %2107 = vmax.xlane.f32.xlu0 %v2106
        %v2108 = vpop.xlane.xlu0 %2107
        %v2109 = vsel %vm1702, %v1979, -inf
        %2110 = vmax.xlane.f32.xlu0 %v2109
        %v2111 = vpop.xlane.xlu0 %2110
        %v2112 = vsel %vm1702, %v1982, -inf
        %2113 = vmax.xlane.f32.xlu0 %v2112
        %v2114 = vpop.xlane.xlu0 %2113
        %v2115 = vsel %vm1702, %v2026, -inf
        %2116 = vmax.xlane.f32.xlu0 %v2115
        %v2117 = vpop.xlane.xlu0 %2116
        %v2118 = vsel %vm1702, %v2029, -inf
        %2119 = vmax.xlane.f32.xlu0 %v2118
        %v2120 = vpop.xlane.xlu0 %2119
        %v2121 = vsel %vm1702, %v2073, -inf
        %2122 = vmax.xlane.f32.xlu0 %v2121
        %v2123 = vpop.xlane.xlu0 %2122
        %v2124 = vsel %vm1702, %v2076, -inf
        %2125 = vmax.xlane.f32.xlu0 %v2124
        %v2126 = vpop.xlane.xlu0 %2125
        %v2127 = vsub.f32 %v1744, %v2081
        %v2128 = vsub.f32 %v1747, %v2084
        %v2129 = vsub.f32 %v1791, %v2087
        %v2130 = vsub.f32 %v1794, %v2090
        %v2131 = vsub.f32 %v1838, %v2093
        %v2132 = vsub.f32 %v1841, %v2096
        %v2133 = vsub.f32 %v1885, %v2099
        %v2134 = vsub.f32 %v1888, %v2102
        %v2135 = vsub.f32 %v1932, %v2105
        %v2136 = vsub.f32 %v1935, %v2108
        %v2137 = vsub.f32 %v1979, %v2111
        %v2138 = vsub.f32 %v1982, %v2114
        %v2139 = vsub.f32 %v2026, %v2117
        %v2140 = vsub.f32 %v2029, %v2120
        %v2141 = vsub.f32 %v2073, %v2123
        %v2142 = vsub.f32 %v2076, %v2126
        %v2143 = vmul.f32 %v2127, 1.442695
        %v2144 = vpow.pop %v2143
        %v2145 = vmul.f32 %v2128, 1.442695
        %v2146 = vpow.pop %v2145
        %v2147 = vmul.f32 %v2129, 1.442695
        %v2148 = vpow.pop %v2147
        %v2149 = vmul.f32 %v2130, 1.442695
        %v2150 = vpow.pop %v2149
        %v2151 = vmul.f32 %v2131, 1.442695
        %v2152 = vpow.pop %v2151
        %v2153 = vmul.f32 %v2132, 1.442695
        %v2154 = vpow.pop %v2153
        %v2155 = vmul.f32 %v2133, 1.442695
        %v2156 = vpow.pop %v2155
        %v2157 = vmul.f32 %v2134, 1.442695
        %v2158 = vpow.pop %v2157
        %v2159 = vmul.f32 %v2135, 1.442695
        %v2160 = vpow.pop %v2159
        %v2161 = vmul.f32 %v2136, 1.442695
        %v2162 = vpow.pop %v2161
        %v2163 = vmul.f32 %v2137, 1.442695
        %v2164 = vpow.pop %v2163
        %v2165 = vmul.f32 %v2138, 1.442695
        %v2166 = vpow.pop %v2165
        %v2167 = vmul.f32 %v2139, 1.442695
        %v2168 = vpow.pop %v2167
        %v2169 = vmul.f32 %v2140, 1.442695
        %v2170 = vpow.pop %v2169
        %v2171 = vmul.f32 %v2141, 1.442695
        %v2172 = vpow.pop %v2171
        %v2173 = vmul.f32 %v2142, 1.442695
        %v2174 = vpow.pop %v2173
        %v2175 = vsel %vm1702, %v2144, 0.0
        %2176 = vadd.xlane.f32.xlu0 %v2175
        %v2177 = vpop.xlane.xlu0 %2176
        %v2178 = vsel %vm1702, %v2146, 0.0
        %2179 = vadd.xlane.f32.xlu0 %v2178
        %v2180 = vpop.xlane.xlu0 %2179
        %v2181 = vsel %vm1702, %v2148, 0.0
        %2182 = vadd.xlane.f32.xlu0 %v2181
        %v2183 = vpop.xlane.xlu0 %2182
        %v2184 = vsel %vm1702, %v2150, 0.0
        %2185 = vadd.xlane.f32.xlu0 %v2184
        %v2186 = vpop.xlane.xlu0 %2185
        %v2187 = vsel %vm1702, %v2152, 0.0
        %2188 = vadd.xlane.f32.xlu0 %v2187
        %v2189 = vpop.xlane.xlu0 %2188
        %v2190 = vsel %vm1702, %v2154, 0.0
        %2191 = vadd.xlane.f32.xlu0 %v2190
        %v2192 = vpop.xlane.xlu0 %2191
        %v2193 = vsel %vm1702, %v2156, 0.0
        %2194 = vadd.xlane.f32.xlu0 %v2193
        %v2195 = vpop.xlane.xlu0 %2194
        %v2196 = vsel %vm1702, %v2158, 0.0
        %2197 = vadd.xlane.f32.xlu0 %v2196
        %v2198 = vpop.xlane.xlu0 %2197
        %v2199 = vsel %vm1702, %v2160, 0.0
        %2200 = vadd.xlane.f32.xlu0 %v2199
        %v2201 = vpop.xlane.xlu0 %2200
        %v2202 = vsel %vm1702, %v2162, 0.0
        %2203 = vadd.xlane.f32.xlu0 %v2202
        %v2204 = vpop.xlane.xlu0 %2203
        %v2205 = vsel %vm1702, %v2164, 0.0
        %2206 = vadd.xlane.f32.xlu0 %v2205
        %v2207 = vpop.xlane.xlu0 %2206
        %v2208 = vsel %vm1702, %v2166, 0.0
        %2209 = vadd.xlane.f32.xlu0 %v2208
        %v2210 = vpop.xlane.xlu0 %2209
        %v2211 = vsel %vm1702, %v2168, 0.0
        %2212 = vadd.xlane.f32.xlu0 %v2211
        %v2213 = vpop.xlane.xlu0 %2212
        %v2214 = vsel %vm1702, %v2170, 0.0
        %2215 = vadd.xlane.f32.xlu0 %v2214
        %v2216 = vpop.xlane.xlu0 %2215
        %v2217 = vsel %vm1702, %v2172, 0.0
        %2218 = vadd.xlane.f32.xlu0 %v2217
        %v2219 = vpop.xlane.xlu0 %2218
        %v2220 = vsel %vm1702, %v2174, 0.0
        %2221 = vadd.xlane.f32.xlu0 %v2220
        %v2222 = vpop.xlane.xlu0 %2221
        %v2223 = vrcp.pop %v2177
        %v2224 = vrcp.pop %v2180
        %v2225 = vrcp.pop %v2183
        %v2226 = vrcp.pop %v2186
        %v2227 = vrcp.pop %v2189
        %v2228 = vrcp.pop %v2192
        %v2229 = vrcp.pop %v2195
        %v2230 = vrcp.pop %v2198
        %v2231 = vrcp.pop %v2201
        %v2232 = vrcp.pop %v2204
        %v2233 = vrcp.pop %v2207
        %v2234 = vrcp.pop %v2210
        %v2235 = vrcp.pop %v2213
        %v2236 = vrcp.pop %v2216
        %v2237 = vrcp.pop %v2219
        %v2238 = vrcp.pop %v2222
        %v2239 = vmul.f32 %v2144, %v2223
        %v2240 = vmul.f32 %v2146, %v2224
        %v2241 = vmul.f32 %v2148, %v2225
        %v2242 = vmul.f32 %v2150, %v2226
        %v2243 = vmul.f32 %v2152, %v2227
        %v2244 = vmul.f32 %v2154, %v2228
        %v2245 = vmul.f32 %v2156, %v2229
        %v2246 = vmul.f32 %v2158, %v2230
        %v2247 = vmul.f32 %v2160, %v2231
        %v2248 = vmul.f32 %v2162, %v2232
        %v2249 = vmul.f32 %v2164, %v2233
        %v2250 = vmul.f32 %v2166, %v2234
        %v2251 = vmul.f32 %v2168, %v2235
        %v2252 = vmul.f32 %v2170, %v2236
        %v2253 = vmul.f32 %v2172, %v2237
        %v2254 = vmul.f32 %v2174, %v2238
        %v2255 = vpack.c.bf16 %v2240, %v2239
        %v2256 = vpack.c.bf16 %v2242, %v2241
        %v2257 = vpack.c.bf16 %v2244, %v2243
        %v2258 = vpack.c.bf16 %v2246, %v2245
        %v2259 = vpack.c.bf16 %v2248, %v2247
        %v2260 = vpack.c.bf16 %v2250, %v2249
        %v2261 = vpack.c.bf16 %v2252, %v2251
        %v2262 = vpack.c.bf16 %v2254, %v2253
        %v2264 = vsel %vm1702, %v1694, 0
        %v2267 = vsel %vm1702, %v2255, 0
        %2269 = vmatprep.subr.bf16.mxu0 0
        %2270 = vmatpush1.bf16.xpose.msra.mxu0 %v2267
        %2271 = vmatprep.subr.bf16.mxu0 0
        %2272 = vmatpush1.bf16.xpose.msra.mxu0 0
        %2273 = vmatprep.subr.bf16.mxu0 0
        %2274 = vmatpush1.bf16.xpose.msra.mxu0 0
        %2275 = vmatprep.subr.bf16.mxu0 0
        %2276 = vmatpush1.bf16.xpose.msra.mxu0 0
        %2277 = vmatprep.subr.bf16.mxu0 0
        %2278 = vmatpush1.bf16.xpose.msra.mxu0 0
        %2279 = vmatprep.subr.bf16.mxu0 0
        %2280 = vmatpush1.bf16.xpose.msra.mxu0 0
        %2281 = vmatprep.subr.bf16.mxu0 0
        %2282 = vmatpush1.bf16.xpose.msra.mxu0 0
        %2283 = vmatprep.subr.bf16.mxu0 0
        %2284 = vmatpush1.bf16.xpose.msra.mxu0 0
        %2285 = vmatprep.subr.bf16.mxu0 0
        %2286 = vmatpush1.bf16.xpose.msra.mxu0 0
        %2287 = vmatprep.subr.bf16.mxu0 0
        %2288 = vmatpush1.bf16.xpose.msra.mxu0 0
        %2289 = vmatprep.subr.bf16.mxu0 0
        %2290 = vmatpush1.bf16.xpose.msra.mxu0 0
        %2291 = vmatprep.subr.bf16.mxu0 0
        %2292 = vmatpush1.bf16.xpose.msra.mxu0 0
        %2293 = vmatprep.subr.bf16.mxu0 0
        %2294 = vmatpush1.bf16.xpose.msra.mxu0 0
        %2295 = vmatprep.subr.bf16.mxu0 0
        %2296 = vmatpush1.bf16.xpose.msra.mxu0 0
        %2297 = vmatprep.subr.bf16.mxu0 0
        %2298 = vmatpush1.bf16.xpose.msra.mxu0 0
        %2299 = vmatprep.subr.bf16.mxu0 0
        %2300 = vmatpush1.bf16.xpose.msra.mxu0 0
        %2301 = vmatprep.mubr.bf16.mxu0 0
        %2302 = vmatmul.mubr.bf16.gmra.mrb[0].mxu0 %v2264
        %v2303 = vpop.f32.mrb[0].mxu0
        %v2304 = vadd.f32 0.0, %v2303
        %v2305 = vpop.f32.mrb[0].mxu0
        %v2306 = vpop.f32.mrb[0].mxu0
        %v2307 = vadd.f32 0.0, %v2306
        %v2308 = vpop.f32.mrb[0].mxu0
        %2309 = vdwg.mxu0
        %v2311 = vsel %vm1702, %v1695, 0
        %v2314 = vsel %vm1702, %v2256, 0
        %2316 = vmatprep.subr.bf16.mxu0 0
        %2317 = vmatpush1.bf16.xpose.msra.mxu0 %v2314
        %2318 = vmatprep.subr.bf16.mxu0 0
        %2319 = vmatpush1.bf16.xpose.msra.mxu0 0
        %2320 = vmatprep.subr.bf16.mxu0 0
        %2321 = vmatpush1.bf16.xpose.msra.mxu0 0
        %2322 = vmatprep.subr.bf16.mxu0 0
        %2323 = vmatpush1.bf16.xpose.msra.mxu0 0
        %2324 = vmatprep.subr.bf16.mxu0 0
        %2325 = vmatpush1.bf16.xpose.msra.mxu0 0
        %2326 = vmatprep.subr.bf16.mxu0 0
        %2327 = vmatpush1.bf16.xpose.msra.mxu0 0
        %2328 = vmatprep.subr.bf16.mxu0 0
        %2329 = vmatpush1.bf16.xpose.msra.mxu0 0
        %2330 = vmatprep.subr.bf16.mxu0 0
        %2331 = vmatpush1.bf16.xpose.msra.mxu0 0
        %2332 = vmatprep.subr.bf16.mxu0 0
        %2333 = vmatpush1.bf16.xpose.msra.mxu0 0
        %2334 = vmatprep.subr.bf16.mxu0 0
        %2335 = vmatpush1.bf16.xpose.msra.mxu0 0
        %2336 = vmatprep.subr.bf16.mxu0 0
        %2337 = vmatpush1.bf16.xpose.msra.mxu0 0
        %2338 = vmatprep.subr.bf16.mxu0 0
        %2339 = vmatpush1.bf16.xpose.msra.mxu0 0
        %2340 = vmatprep.subr.bf16.mxu0 0
        %2341 = vmatpush1.bf16.xpose.msra.mxu0 0
        %2342 = vmatprep.subr.bf16.mxu0 0
        %2343 = vmatpush1.bf16.xpose.msra.mxu0 0
        %2344 = vmatprep.subr.bf16.mxu0 0
        %2345 = vmatpush1.bf16.xpose.msra.mxu0 0
        %2346 = vmatprep.subr.bf16.mxu0 0
        %2347 = vmatpush1.bf16.xpose.msra.mxu0 0
        %2348 = vmatprep.mubr.bf16.mxu0 0
        %2349 = vmatmul.mubr.bf16.gmra.mrb[0].mxu0 %v2311
        %v2350 = vpop.f32.mrb[0].mxu0
        %v2351 = vadd.f32 0.0, %v2350
        %v2352 = vpop.f32.mrb[0].mxu0
        %v2353 = vpop.f32.mrb[0].mxu0
        %v2354 = vadd.f32 0.0, %v2353
        %v2355 = vpop.f32.mrb[0].mxu0
        %2356 = vdwg.mxu0
        %v2358 = vsel %vm1702, %v1696, 0
        %v2361 = vsel %vm1702, %v2257, 0
        %2363 = vmatprep.subr.bf16.mxu0 0
        %2364 = vmatpush1.bf16.xpose.msra.mxu0 %v2361
        %2365 = vmatprep.subr.bf16.mxu0 0
        %2366 = vmatpush1.bf16.xpose.msra.mxu0 0
        %2367 = vmatprep.subr.bf16.mxu0 0
        %2368 = vmatpush1.bf16.xpose.msra.mxu0 0
        %2369 = vmatprep.subr.bf16.mxu0 0
        %2370 = vmatpush1.bf16.xpose.msra.mxu0 0
        %2371 = vmatprep.subr.bf16.mxu0 0
        %2372 = vmatpush1.bf16.xpose.msra.mxu0 0
        %2373 = vmatprep.subr.bf16.mxu0 0
        %2374 = vmatpush1.bf16.xpose.msra.mxu0 0
        %2375 = vmatprep.subr.bf16.mxu0 0
        %2376 = vmatpush1.bf16.xpose.msra.mxu0 0
        %2377 = vmatprep.subr.bf16.mxu0 0
        %2378 = vmatpush1.bf16.xpose.msra.mxu0 0
        %2379 = vmatprep.subr.bf16.mxu0 0
        %2380 = vmatpush1.bf16.xpose.msra.mxu0 0
        %2381 = vmatprep.subr.bf16.mxu0 0
        %2382 = vmatpush1.bf16.xpose.msra.mxu0 0
        %2383 = vmatprep.subr.bf16.mxu0 0
        %2384 = vmatpush1.bf16.xpose.msra.mxu0 0
        %2385 = vmatprep.subr.bf16.mxu0 0
        %2386 = vmatpush1.bf16.xpose.msra.mxu0 0
        %2387 = vmatprep.subr.bf16.mxu0 0
        %2388 = vmatpush1.bf16.xpose.msra.mxu0 0
        %2389 = vmatprep.subr.bf16.mxu0 0
        %2390 = vmatpush1.bf16.xpose.msra.mxu0 0
        %2391 = vmatprep.subr.bf16.mxu0 0
        %2392 = vmatpush1.bf16.xpose.msra.mxu0 0
        %2393 = vmatprep.subr.bf16.mxu0 0
        %2394 = vmatpush1.bf16.xpose.msra.mxu0 0
        %2395 = vmatprep.mubr.bf16.mxu0 0
        %2396 = vmatmul.mubr.bf16.gmra.mrb[0].mxu0 %v2358
        %v2397 = vpop.f32.mrb[0].mxu0
        %v2398 = vadd.f32 0.0, %v2397
        %v2399 = vpop.f32.mrb[0].mxu0
        %v2400 = vpop.f32.mrb[0].mxu0
        %v2401 = vadd.f32 0.0, %v2400
        %v2402 = vpop.f32.mrb[0].mxu0
        %2403 = vdwg.mxu0
        %v2405 = vsel %vm1702, %v1697, 0
        %v2408 = vsel %vm1702, %v2258, 0
        %2410 = vmatprep.subr.bf16.mxu0 0
        %2411 = vmatpush1.bf16.xpose.msra.mxu0 %v2408
        %2412 = vmatprep.subr.bf16.mxu0 0
        %2413 = vmatpush1.bf16.xpose.msra.mxu0 0
        %2414 = vmatprep.subr.bf16.mxu0 0
        %2415 = vmatpush1.bf16.xpose.msra.mxu0 0
        %2416 = vmatprep.subr.bf16.mxu0 0
        %2417 = vmatpush1.bf16.xpose.msra.mxu0 0
        %2418 = vmatprep.subr.bf16.mxu0 0
        %2419 = vmatpush1.bf16.xpose.msra.mxu0 0
        %2420 = vmatprep.subr.bf16.mxu0 0
        %2421 = vmatpush1.bf16.xpose.msra.mxu0 0
        %2422 = vmatprep.subr.bf16.mxu0 0
        %2423 = vmatpush1.bf16.xpose.msra.mxu0 0
        %2424 = vmatprep.subr.bf16.mxu0 0
        %2425 = vmatpush1.bf16.xpose.msra.mxu0 0
        %2426 = vmatprep.subr.bf16.mxu0 0
        %2427 = vmatpush1.bf16.xpose.msra.mxu0 0
        %2428 = vmatprep.subr.bf16.mxu0 0
        %2429 = vmatpush1.bf16.xpose.msra.mxu0 0
        %2430 = vmatprep.subr.bf16.mxu0 0
        %2431 = vmatpush1.bf16.xpose.msra.mxu0 0
        %2432 = vmatprep.subr.bf16.mxu0 0
        %2433 = vmatpush1.bf16.xpose.msra.mxu0 0
        %2434 = vmatprep.subr.bf16.mxu0 0
        %2435 = vmatpush1.bf16.xpose.msra.mxu0 0
        %2436 = vmatprep.subr.bf16.mxu0 0
        %2437 = vmatpush1.bf16.xpose.msra.mxu0 0
        %2438 = vmatprep.subr.bf16.mxu0 0
        %2439 = vmatpush1.bf16.xpose.msra.mxu0 0
        %2440 = vmatprep.subr.bf16.mxu0 0
        %2441 = vmatpush1.bf16.xpose.msra.mxu0 0
        %2442 = vmatprep.mubr.bf16.mxu0 0
        %2443 = vmatmul.mubr.bf16.gmra.mrb[0].mxu0 %v2405
        %v2444 = vpop.f32.mrb[0].mxu0
        %v2445 = vadd.f32 0.0, %v2444
        %v2446 = vpop.f32.mrb[0].mxu0
        %v2447 = vpop.f32.mrb[0].mxu0
        %v2448 = vadd.f32 0.0, %v2447
        %v2449 = vpop.f32.mrb[0].mxu0
        %2450 = vdwg.mxu0
        %v2452 = vsel %vm1702, %v1698, 0
        %v2455 = vsel %vm1702, %v2259, 0
        %2457 = vmatprep.subr.bf16.mxu0 0
        %2458 = vmatpush1.bf16.xpose.msra.mxu0 %v2455
        %2459 = vmatprep.subr.bf16.mxu0 0
        %2460 = vmatpush1.bf16.xpose.msra.mxu0 0
        %2461 = vmatprep.subr.bf16.mxu0 0
        %2462 = vmatpush1.bf16.xpose.msra.mxu0 0
        %2463 = vmatprep.subr.bf16.mxu0 0
        %2464 = vmatpush1.bf16.xpose.msra.mxu0 0
        %2465 = vmatprep.subr.bf16.mxu0 0
        %2466 = vmatpush1.bf16.xpose.msra.mxu0 0
        %2467 = vmatprep.subr.bf16.mxu0 0
        %2468 = vmatpush1.bf16.xpose.msra.mxu0 0
        %2469 = vmatprep.subr.bf16.mxu0 0
        %2470 = vmatpush1.bf16.xpose.msra.mxu0 0
        %2471 = vmatprep.subr.bf16.mxu0 0
        %2472 = vmatpush1.bf16.xpose.msra.mxu0 0
        %2473 = vmatprep.subr.bf16.mxu0 0
        %2474 = vmatpush1.bf16.xpose.msra.mxu0 0
        %2475 = vmatprep.subr.bf16.mxu0 0
        %2476 = vmatpush1.bf16.xpose.msra.mxu0 0
        %2477 = vmatprep.subr.bf16.mxu0 0
        %2478 = vmatpush1.bf16.xpose.msra.mxu0 0
        %2479 = vmatprep.subr.bf16.mxu0 0
        %2480 = vmatpush1.bf16.xpose.msra.mxu0 0
        %2481 = vmatprep.subr.bf16.mxu0 0
        %2482 = vmatpush1.bf16.xpose.msra.mxu0 0
        %2483 = vmatprep.subr.bf16.mxu0 0
        %2484 = vmatpush1.bf16.xpose.msra.mxu0 0
        %2485 = vmatprep.subr.bf16.mxu0 0
        %2486 = vmatpush1.bf16.xpose.msra.mxu0 0
        %2487 = vmatprep.subr.bf16.mxu0 0
        %2488 = vmatpush1.bf16.xpose.msra.mxu0 0
        %2489 = vmatprep.mubr.bf16.mxu0 0
        %2490 = vmatmul.mubr.bf16.gmra.mrb[0].mxu0 %v2452
        %v2491 = vpop.f32.mrb[0].mxu0
        %v2492 = vadd.f32 0.0, %v2491
        %v2493 = vpop.f32.mrb[0].mxu0
        %v2494 = vpop.f32.mrb[0].mxu0
        %v2495 = vadd.f32 0.0, %v2494
        %v2496 = vpop.f32.mrb[0].mxu0
        %2497 = vdwg.mxu0
        %v2499 = vsel %vm1702, %v1699, 0
        %v2502 = vsel %vm1702, %v2260, 0
        %2504 = vmatprep.subr.bf16.mxu0 0
        %2505 = vmatpush1.bf16.xpose.msra.mxu0 %v2502
        %2506 = vmatprep.subr.bf16.mxu0 0
        %2507 = vmatpush1.bf16.xpose.msra.mxu0 0
        %2508 = vmatprep.subr.bf16.mxu0 0
        %2509 = vmatpush1.bf16.xpose.msra.mxu0 0
        %2510 = vmatprep.subr.bf16.mxu0 0
        %2511 = vmatpush1.bf16.xpose.msra.mxu0 0
        %2512 = vmatprep.subr.bf16.mxu0 0
        %2513 = vmatpush1.bf16.xpose.msra.mxu0 0
        %2514 = vmatprep.subr.bf16.mxu0 0
        %2515 = vmatpush1.bf16.xpose.msra.mxu0 0
        %2516 = vmatprep.subr.bf16.mxu0 0
        %2517 = vmatpush1.bf16.xpose.msra.mxu0 0
        %2518 = vmatprep.subr.bf16.mxu0 0
        %2519 = vmatpush1.bf16.xpose.msra.mxu0 0
        %2520 = vmatprep.subr.bf16.mxu0 0
        %2521 = vmatpush1.bf16.xpose.msra.mxu0 0
        %2522 = vmatprep.subr.bf16.mxu0 0
        %2523 = vmatpush1.bf16.xpose.msra.mxu0 0
        %2524 = vmatprep.subr.bf16.mxu0 0
        %2525 = vmatpush1.bf16.xpose.msra.mxu0 0
        %2526 = vmatprep.subr.bf16.mxu0 0
        %2527 = vmatpush1.bf16.xpose.msra.mxu0 0
        %2528 = vmatprep.subr.bf16.mxu0 0
        %2529 = vmatpush1.bf16.xpose.msra.mxu0 0
        %2530 = vmatprep.subr.bf16.mxu0 0
        %2531 = vmatpush1.bf16.xpose.msra.mxu0 0
        %2532 = vmatprep.subr.bf16.mxu0 0
        %2533 = vmatpush1.bf16.xpose.msra.mxu0 0
        %2534 = vmatprep.subr.bf16.mxu0 0
        %2535 = vmatpush1.bf16.xpose.msra.mxu0 0
        %2536 = vmatprep.mubr.bf16.mxu0 0
        %2537 = vmatmul.mubr.bf16.gmra.mrb[0].mxu0 %v2499
        %v2538 = vpop.f32.mrb[0].mxu0
        %v2539 = vadd.f32 0.0, %v2538
        %v2540 = vpop.f32.mrb[0].mxu0
        %v2541 = vpop.f32.mrb[0].mxu0
        %v2542 = vadd.f32 0.0, %v2541
        %v2543 = vpop.f32.mrb[0].mxu0
        %2544 = vdwg.mxu0
        %v2546 = vsel %vm1702, %v1700, 0
        %v2549 = vsel %vm1702, %v2261, 0
        %2551 = vmatprep.subr.bf16.mxu0 0
        %2552 = vmatpush1.bf16.xpose.msra.mxu0 %v2549
        %2553 = vmatprep.subr.bf16.mxu0 0
        %2554 = vmatpush1.bf16.xpose.msra.mxu0 0
        %2555 = vmatprep.subr.bf16.mxu0 0
        %2556 = vmatpush1.bf16.xpose.msra.mxu0 0
        %2557 = vmatprep.subr.bf16.mxu0 0
        %2558 = vmatpush1.bf16.xpose.msra.mxu0 0
        %2559 = vmatprep.subr.bf16.mxu0 0
        %2560 = vmatpush1.bf16.xpose.msra.mxu0 0
        %2561 = vmatprep.subr.bf16.mxu0 0
        %2562 = vmatpush1.bf16.xpose.msra.mxu0 0
        %2563 = vmatprep.subr.bf16.mxu0 0
        %2564 = vmatpush1.bf16.xpose.msra.mxu0 0
        %2565 = vmatprep.subr.bf16.mxu0 0
        %2566 = vmatpush1.bf16.xpose.msra.mxu0 0
        %2567 = vmatprep.subr.bf16.mxu0 0
        %2568 = vmatpush1.bf16.xpose.msra.mxu0 0
        %2569 = vmatprep.subr.bf16.mxu0 0
        %2570 = vmatpush1.bf16.xpose.msra.mxu0 0
        %2571 = vmatprep.subr.bf16.mxu0 0
        %2572 = vmatpush1.bf16.xpose.msra.mxu0 0
        %2573 = vmatprep.subr.bf16.mxu0 0
        %2574 = vmatpush1.bf16.xpose.msra.mxu0 0
        %2575 = vmatprep.subr.bf16.mxu0 0
        %2576 = vmatpush1.bf16.xpose.msra.mxu0 0
        %2577 = vmatprep.subr.bf16.mxu0 0
        %2578 = vmatpush1.bf16.xpose.msra.mxu0 0
        %2579 = vmatprep.subr.bf16.mxu0 0
        %2580 = vmatpush1.bf16.xpose.msra.mxu0 0
        %2581 = vmatprep.subr.bf16.mxu0 0
        %2582 = vmatpush1.bf16.xpose.msra.mxu0 0
        %2583 = vmatprep.mubr.bf16.mxu0 0
        %2584 = vmatmul.mubr.bf16.gmra.mrb[0].mxu0 %v2546
        %v2585 = vpop.f32.mrb[0].mxu0
        %v2586 = vadd.f32 0.0, %v2585
        %v2587 = vpop.f32.mrb[0].mxu0
        %v2588 = vpop.f32.mrb[0].mxu0
        %v2589 = vadd.f32 0.0, %v2588
        %v2590 = vpop.f32.mrb[0].mxu0
        %2591 = vdwg.mxu0
        %v2593 = vsel %vm1702, %v1701, 0
        %v2596 = vsel %vm1702, %v2262, 0
        %2598 = vmatprep.subr.bf16.mxu0 0
        %2599 = vmatpush1.bf16.xpose.msra.mxu0 %v2596
        %2600 = vmatprep.subr.bf16.mxu0 0
        %2601 = vmatpush1.bf16.xpose.msra.mxu0 0
        %2602 = vmatprep.subr.bf16.mxu0 0
        %2603 = vmatpush1.bf16.xpose.msra.mxu0 0
        %2604 = vmatprep.subr.bf16.mxu0 0
        %2605 = vmatpush1.bf16.xpose.msra.mxu0 0
        %2606 = vmatprep.subr.bf16.mxu0 0
        %2607 = vmatpush1.bf16.xpose.msra.mxu0 0
        %2608 = vmatprep.subr.bf16.mxu0 0
        %2609 = vmatpush1.bf16.xpose.msra.mxu0 0
        %2610 = vmatprep.subr.bf16.mxu0 0
        %2611 = vmatpush1.bf16.xpose.msra.mxu0 0
        %2612 = vmatprep.subr.bf16.mxu0 0
        %2613 = vmatpush1.bf16.xpose.msra.mxu0 0
        %2614 = vmatprep.subr.bf16.mxu0 0
        %2615 = vmatpush1.bf16.xpose.msra.mxu0 0
        %2616 = vmatprep.subr.bf16.mxu0 0
        %2617 = vmatpush1.bf16.xpose.msra.mxu0 0
        %2618 = vmatprep.subr.bf16.mxu0 0
        %2619 = vmatpush1.bf16.xpose.msra.mxu0 0
        %2620 = vmatprep.subr.bf16.mxu0 0
        %2621 = vmatpush1.bf16.xpose.msra.mxu0 0
        %2622 = vmatprep.subr.bf16.mxu0 0
        %2623 = vmatpush1.bf16.xpose.msra.mxu0 0
        %2624 = vmatprep.subr.bf16.mxu0 0
        %2625 = vmatpush1.bf16.xpose.msra.mxu0 0
        %2626 = vmatprep.subr.bf16.mxu0 0
        %2627 = vmatpush1.bf16.xpose.msra.mxu0 0
        %2628 = vmatprep.subr.bf16.mxu0 0
        %2629 = vmatpush1.bf16.xpose.msra.mxu0 0
        %2630 = vmatprep.mubr.bf16.mxu0 0
        %2631 = vmatmul.mubr.bf16.gmra.mrb[0].mxu0 %v2593
        %v2632 = vpop.f32.mrb[0].mxu0
        %v2633 = vadd.f32 0.0, %v2632
        %v2634 = vpop.f32.mrb[0].mxu0
        %v2635 = vpop.f32.mrb[0].mxu0
        %v2636 = vadd.f32 0.0, %v2635
        %v2637 = vpop.f32.mrb[0].mxu0
        %2638 = vdwg.mxu0
        %2639 = vxpose.xlu0.b32.start [1/16] %v2304, 128
        %2640 = vxpose.xlu0.b32.cont [2/16] %v2307, 128
        %2641 = vxpose.xlu0.b32.cont [3/16] %v2351, 128
        %2642 = vxpose.xlu0.b32.cont [4/16] %v2354, 128
        %2643 = vxpose.xlu0.b32.cont [5/16] %v2398, 128
        %2644 = vxpose.xlu0.b32.cont [6/16] %v2401, 128
        %2645 = vxpose.xlu0.b32.cont [7/16] %v2445, 128
        %2646 = vxpose.xlu0.b32.cont [8/16] %v2448, 128
        %2647 = vxpose.xlu0.b32.cont [9/16] %v2492, 128
        %2648 = vxpose.xlu0.b32.cont [10/16] %v2495, 128
        %2649 = vxpose.xlu0.b32.cont [11/16] %v2539, 128
        %2650 = vxpose.xlu0.b32.cont [12/16] %v2542, 128
        %2651 = vxpose.xlu0.b32.cont [13/16] %v2586, 128
        %2652 = vxpose.xlu0.b32.cont [14/16] %v2589, 128
        %2653 = vxpose.xlu0.b32.cont [15/16] %v2633, 128
        %2654 = vxpose.xlu0.b32.end [16/16] %v2636, 128
        %v2655 = vpop.trf.xlu0
        %v2656 = vpop.trf.xlu0
        %v2657 = vpop.trf.xlu0
        %v2658 = vpop.trf.xlu0
        %v2659 = vpop.trf.xlu0
        %v2660 = vpop.trf.xlu0
        %v2661 = vpop.trf.xlu0
        %v2662 = vpop.trf.xlu0
        %v2663 = vpop.trf.xlu0
        %v2664 = vpop.trf.xlu0
        %v2665 = vpop.trf.xlu0
        %v2666 = vpop.trf.xlu0
        %v2667 = vpop.trf.xlu0
        %v2668 = vpop.trf.xlu0
        %v2669 = vpop.trf.xlu0
        %v2670 = vpop.trf.xlu0
        %v2671 = vpack.c.bf16 %v2656, %v2655
        %v2672 = vld [vmem:[%s499] sm:$0xf]
        %v2673 = vld [vmem:[%s499 + $0x4] sm:$0xf]
        %v2674 = vld [vmem:[%s499 + $0x8] sm:$0xf]
        %v2675 = vld [vmem:[%s499 + $0xc] sm:$0xf]
        %v2676 = vld [vmem:[%s499 + $0x10] sm:$0xf]
        %v2677 = vld [vmem:[%s499 + $0x14] sm:$0xf]
        %v2678 = vld [vmem:[%s499 + $0x18] sm:$0xf]
        %v2679 = vld [vmem:[%s499 + $0x1c] sm:$0xf]
        %v2680 = vld [vmem:[%s499 + $0x20] sm:$0xf]
        %v2681 = vld [vmem:[%s499 + $0x24] sm:$0xf]
        %v2682 = vld [vmem:[%s499 + $0x28] sm:$0xf]
        %v2683 = vld [vmem:[%s499 + $0x2c] sm:$0xf]
        %v2684 = vld [vmem:[%s499 + $0x30] sm:$0xf]
        %v2685 = vld [vmem:[%s499 + $0x34] sm:$0xf]
        %v2686 = vld [vmem:[%s499 + $0x38] sm:$0xf]
        %v2687 = vld [vmem:[%s499 + $0x3c] sm:$0xf]
        %v2704 = vunpack.c.l.b16 %v2672
        %v2705 = vunpack.c.l.b16 %v2673
        %v2706 = vunpack.c.l.b16 %v2674
        %v2707 = vunpack.c.l.b16 %v2675
        %v2708 = vunpack.c.l.b16 %v2676
        %v2709 = vunpack.c.l.b16 %v2677
        %v2710 = vunpack.c.l.b16 %v2678
        %v2711 = vunpack.c.l.b16 %v2679
        %v2712 = vunpack.c.l.b16 %v2680
        %v2713 = vunpack.c.l.b16 %v2681
        %v2714 = vunpack.c.l.b16 %v2682
        %v2715 = vunpack.c.l.b16 %v2683
        %v2716 = vunpack.c.l.b16 %v2684
        %v2717 = vunpack.c.l.b16 %v2685
        %v2718 = vunpack.c.l.b16 %v2686
        %v2719 = vunpack.c.l.b16 %v2687
        %v2720 = vpack.c.b16 %v2705, %v2704
        %v2721 = vpack.c.b16 %v2707, %v2706
        %v2722 = vpack.c.b16 %v2709, %v2708
        %v2723 = vpack.c.b16 %v2711, %v2710
        %v2724 = vpack.c.b16 %v2713, %v2712
        %v2725 = vpack.c.b16 %v2715, %v2714
        %v2726 = vpack.c.b16 %v2717, %v2716
        %v2727 = vpack.c.b16 %v2719, %v2718
        %2736 = vmatprep.subr.bf16.mxu0 0
        %2737 = vmatpush1.bf16.msra.mxu0 %v2720
        %2738 = vmatprep.subr.bf16.mxu0 0
        %2739 = vmatpush1.bf16.msra.mxu0 %v2721
        %2740 = vmatprep.subr.bf16.mxu0 0
        %2741 = vmatpush1.bf16.msra.mxu0 %v2722
        %2742 = vmatprep.subr.bf16.mxu0 0
        %2743 = vmatpush1.bf16.msra.mxu0 %v2723
        %2744 = vmatprep.subr.bf16.mxu0 0
        %2745 = vmatpush1.bf16.msra.mxu0 %v2724
        %2746 = vmatprep.subr.bf16.mxu0 0
        %2747 = vmatpush1.bf16.msra.mxu0 %v2725
        %2748 = vmatprep.subr.bf16.mxu0 0
        %2749 = vmatpush1.bf16.msra.mxu0 %v2726
        %2750 = vmatprep.subr.bf16.mxu0 0
        %2751 = vmatpush1.bf16.msra.mxu0 %v2727
        %2752 = vmatprep.subr.bf16.mxu0 0
        %2753 = vmatpush1.bf16.msra.mxu0 0
        %2754 = vmatprep.subr.bf16.mxu0 0
        %2755 = vmatpush1.bf16.msra.mxu0 0
        %2756 = vmatprep.subr.bf16.mxu0 0
        %2757 = vmatpush1.bf16.msra.mxu0 0
        %2758 = vmatprep.subr.bf16.mxu0 0
        %2759 = vmatpush1.bf16.msra.mxu0 0
        %2760 = vmatprep.subr.bf16.mxu0 0
        %2761 = vmatpush1.bf16.msra.mxu0 0
        %2762 = vmatprep.subr.bf16.mxu0 0
        %2763 = vmatpush1.bf16.msra.mxu0 0
        %2764 = vmatprep.subr.bf16.mxu0 0
        %2765 = vmatpush1.bf16.msra.mxu0 0
        %2766 = vmatprep.subr.bf16.mxu0 0
        %2767 = vmatpush1.bf16.msra.mxu0 0
        %2768 = vmatprep.mubr.bf16.mxu0 0
        %2769 = vmatmul.mubr.bf16.gmra.mrb[0].mxu0 %v2671
        %v2770 = vpop.f32.mrb[0].mxu0
        %v2771 = vadd.f32 0.0, %v2770
        %v2772 = vpop.f32.mrb[0].mxu0
        %v2773 = vpop.f32.mrb[0].mxu0
        %v2774 = vadd.f32 0.0, %v2773
        %v2775 = vpop.f32.mrb[0].mxu0
        %2776 = vdwg.mxu0
        %v2777 = vadd.f32 %v599, %v2771
        %v2778 = vadd.f32 %v600, %v2774
        %v2779 = vadd.f32 %v601, %v2771
        %v2780 = vadd.f32 %v602, %v2774
        %v2781 = vld [vmem:[%s526] sm:$0xff]
        %v2782 = vld [vmem:[%s526 + $0x8] sm:$0xff]
        %v2783 = vld [vmem:[%s526 + $0x10] sm:$0xff]
        %v2784 = vld [vmem:[%s526 + $0x18] sm:$0xff]
        %2785 = vadd.xlane.f32.xlu0 %v2777
        %v2786 = vpop.xlane.xlu0 %2785
        %2787 = vadd.xlane.f32.xlu0 %v2778
        %v2788 = vpop.xlane.xlu0 %2787
        %2789 = vadd.xlane.f32.xlu0 %v2779
        %v2790 = vpop.xlane.xlu0 %2789
        %2791 = vadd.xlane.f32.xlu0 %v2780
        %v2792 = vpop.xlane.xlu0 %2791
        %v2793 = vrcp.pop 128.0
        %v2794 = vmul.f32 %v2786, %v2793
        %v2795 = vmul.f32 %v2788, %v2793
        %v2796 = vmul.f32 %v2790, %v2793
        %v2797 = vmul.f32 %v2792, %v2793
        %v2798 = vmul.f32 %v2777, %v2777
        %v2799 = vmul.f32 %v2778, %v2778
        %v2800 = vmul.f32 %v2779, %v2779
        %v2801 = vmul.f32 %v2780, %v2780
        %2802 = vadd.xlane.f32.xlu0 %v2798
        %v2803 = vpop.xlane.xlu0 %2802
        %2804 = vadd.xlane.f32.xlu0 %v2799
        %v2805 = vpop.xlane.xlu0 %2804
        %2806 = vadd.xlane.f32.xlu0 %v2800
        %v2807 = vpop.xlane.xlu0 %2806
        %2808 = vadd.xlane.f32.xlu0 %v2801
        %v2809 = vpop.xlane.xlu0 %2808
        %v2810 = vmul.f32 %v2803, %v2793
        %v2811 = vmul.f32 %v2805, %v2793
        %v2812 = vmul.f32 %v2807, %v2793
        %v2813 = vmul.f32 %v2809, %v2793
        %v2814 = vmul.f32 %v2794, %v2794
        %v2815 = vmul.f32 %v2795, %v2795
        %v2816 = vmul.f32 %v2796, %v2796
        %v2817 = vmul.f32 %v2797, %v2797
        %v2818 = vsub.f32 %v2810, %v2814
        %v2819 = vsub.f32 %v2811, %v2815
        %v2820 = vsub.f32 %v2812, %v2816
        %v2821 = vsub.f32 %v2813, %v2817
        %v2822 = vsub.f32 %v2777, %v2794
        %v2823 = vsub.f32 %v2778, %v2795
        %v2824 = vsub.f32 %v2779, %v2796
        %v2825 = vsub.f32 %v2780, %v2797
        %v2826 = vadd.f32 %v2818, 1e-05
        %v2827 = vadd.f32 %v2819, 1e-05
        %v2828 = vadd.f32 %v2820, 1e-05
        %v2829 = vadd.f32 %v2821, 1e-05
        %v2830 = vrsqrt.pop %v2826
        %v2831 = vrsqrt.pop %v2827
        %v2832 = vrsqrt.pop %v2828
        %v2833 = vrsqrt.pop %v2829
        %v2834 = vmul.f32 %v2822, %v2830
        %v2835 = vmul.f32 %v2823, %v2831
        %v2836 = vmul.f32 %v2824, %v2832
        %v2837 = vmul.f32 %v2825, %v2833
        %v2838 = vlaneseq
        %v2839 = vshrl.u32 %v2838, 7
        %v2840 = vsub.s32 2, %v2839
        %v2841 = vrot.slane %v2781, %v2840
        %v2842 = vmul.f32 %v2834, %v2841
        %v2843 = vmul.f32 %v2835, %v2841
        %v2844 = vmul.f32 %v2836, %v2841
        %v2845 = vmul.f32 %v2837, %v2841
        %v2846 = vlaneseq
        %v2847 = vshrl.u32 %v2846, 7
        %v2848 = vsub.s32 3, %v2847
        %v2849 = vrot.slane %v2781, %v2848
        %v2850 = vadd.f32 %v2842, %v2849
        %v2851 = vadd.f32 %v2843, %v2849
        %v2852 = vadd.f32 %v2844, %v2849
        %v2853 = vadd.f32 %v2845, %v2849
        %v2854 = vpack.c.bf16 %v2851, %v2850
        %v2855 = vpack.c.bf16 %v2853, %v2852
        %v2856 = vld [vmem:[%s508] sm:$0xff]
        %v2857 = vld [vmem:[%s508 + $0x8] sm:$0xff]
        %v2858 = vld [vmem:[%s508 + $0x10] sm:$0xff]
        %v2859 = vld [vmem:[%s508 + $0x18] sm:$0xff]
        %v2860 = vld [vmem:[%s508 + $0x20] sm:$0xff]
        %v2861 = vld [vmem:[%s508 + $0x28] sm:$0xff]
        %v2862 = vld [vmem:[%s508 + $0x30] sm:$0xff]
        %v2863 = vld [vmem:[%s508 + $0x38] sm:$0xff]
        %v2864 = vld [vmem:[%s508 + $0x40] sm:$0xff]
        %v2865 = vld [vmem:[%s508 + $0x48] sm:$0xff]
        %v2866 = vld [vmem:[%s508 + $0x50] sm:$0xff]
        %v2867 = vld [vmem:[%s508 + $0x58] sm:$0xff]
        %v2868 = vld [vmem:[%s508 + $0x60] sm:$0xff]
        %v2869 = vld [vmem:[%s508 + $0x68] sm:$0xff]
        %v2870 = vld [vmem:[%s508 + $0x70] sm:$0xff]
        %v2871 = vld [vmem:[%s508 + $0x78] sm:$0xff]
        %v2872 = vld [vmem:[%s508 + $0x80] sm:$0xff]
        %v2873 = vld [vmem:[%s508 + $0x88] sm:$0xff]
        %v2874 = vld [vmem:[%s508 + $0x90] sm:$0xff]
        %v2875 = vld [vmem:[%s508 + $0x98] sm:$0xff]
        %v2876 = vld [vmem:[%s508 + $0xa0] sm:$0xff]
        %v2877 = vld [vmem:[%s508 + $0xa8] sm:$0xff]
        %v2878 = vld [vmem:[%s508 + $0xb0] sm:$0xff]
        %v2879 = vld [vmem:[%s508 + $0xb8] sm:$0xff]
        %v2880 = vld [vmem:[%s508 + $0xc0] sm:$0xff]
        %v2881 = vld [vmem:[%s508 + $0xc8] sm:$0xff]
        %v2882 = vld [vmem:[%s508 + $0xd0] sm:$0xff]
        %v2883 = vld [vmem:[%s508 + $0xd8] sm:$0xff]
        %v2884 = vld [vmem:[%s508 + $0xe0] sm:$0xff]
        %v2885 = vld [vmem:[%s508 + $0xe8] sm:$0xff]
        %v2886 = vld [vmem:[%s508 + $0xf0] sm:$0xff]
        %v2887 = vld [vmem:[%s508 + $0xf8] sm:$0xff]
        %v2888 = vlaneseq
        %v2889 = vshrl.u32 %v2888, 7
        %v2890 = vsub.s32 0, %v2889
        %v2891 = vrot.slane %v2781, %v2890
        %v2892 = vlaneseq
        %v2893 = vshrl.u32 %v2892, 7
        %v2894 = vsub.s32 0, %v2893
        %v2895 = vrot.slane %v2782, %v2894
        %v2896 = vlaneseq
        %v2897 = vshrl.u32 %v2896, 7
        %v2898 = vsub.s32 0, %v2897
        %v2899 = vrot.slane %v2783, %v2898
        %v2900 = vlaneseq
        %v2901 = vshrl.u32 %v2900, 7
        %v2902 = vsub.s32 0, %v2901
        %v2903 = vrot.slane %v2784, %v2902
        %v2936 = vunpack.c.l.b16 %v2856
        %v2937 = vunpack.c.h.b16 %v2856
        %v2938 = vunpack.c.l.b16 %v2857
        %v2939 = vunpack.c.h.b16 %v2857
        %v2940 = vunpack.c.l.b16 %v2858
        %v2941 = vunpack.c.h.b16 %v2858
        %v2942 = vunpack.c.l.b16 %v2859
        %v2943 = vunpack.c.h.b16 %v2859
        %v2944 = vunpack.c.l.b16 %v2860
        %v2945 = vunpack.c.h.b16 %v2860
        %v2946 = vunpack.c.l.b16 %v2861
        %v2947 = vunpack.c.h.b16 %v2861
        %v2948 = vunpack.c.l.b16 %v2862
        %v2949 = vunpack.c.h.b16 %v2862
        %v2950 = vunpack.c.l.b16 %v2863
        %v2951 = vunpack.c.h.b16 %v2863
        %v2952 = vunpack.c.l.b16 %v2864
        %v2953 = vunpack.c.h.b16 %v2864
        %v2954 = vunpack.c.l.b16 %v2865
        %v2955 = vunpack.c.h.b16 %v2865
        %v2956 = vunpack.c.l.b16 %v2866
        %v2957 = vunpack.c.h.b16 %v2866
        %v2958 = vunpack.c.l.b16 %v2867
        %v2959 = vunpack.c.h.b16 %v2867
        %v2960 = vunpack.c.l.b16 %v2868
        %v2961 = vunpack.c.h.b16 %v2868
        %v2962 = vunpack.c.l.b16 %v2869
        %v2963 = vunpack.c.h.b16 %v2869
        %v2964 = vunpack.c.l.b16 %v2870
        %v2965 = vunpack.c.h.b16 %v2870
        %v2966 = vunpack.c.l.b16 %v2871
        %v2967 = vunpack.c.h.b16 %v2871
        %v2968 = vunpack.c.l.b16 %v2872
        %v2969 = vunpack.c.h.b16 %v2872
        %v2970 = vunpack.c.l.b16 %v2873
        %v2971 = vunpack.c.h.b16 %v2873
        %v2972 = vunpack.c.l.b16 %v2874
        %v2973 = vunpack.c.h.b16 %v2874
        %v2974 = vunpack.c.l.b16 %v2875
        %v2975 = vunpack.c.h.b16 %v2875
        %v2976 = vunpack.c.l.b16 %v2876
        %v2977 = vunpack.c.h.b16 %v2876
        %v2978 = vunpack.c.l.b16 %v2877
        %v2979 = vunpack.c.h.b16 %v2877
        %v2980 = vunpack.c.l.b16 %v2878
        %v2981 = vunpack.c.h.b16 %v2878
        %v2982 = vunpack.c.l.b16 %v2879
        %v2983 = vunpack.c.h.b16 %v2879
        %v2984 = vunpack.c.l.b16 %v2880
        %v2985 = vunpack.c.h.b16 %v2880
        %v2986 = vunpack.c.l.b16 %v2881
        %v2987 = vunpack.c.h.b16 %v2881
        %v2988 = vunpack.c.l.b16 %v2882
        %v2989 = vunpack.c.h.b16 %v2882
        %v2990 = vunpack.c.l.b16 %v2883
        %v2991 = vunpack.c.h.b16 %v2883
        %v2992 = vunpack.c.l.b16 %v2884
        %v2993 = vunpack.c.h.b16 %v2884
        %v2994 = vunpack.c.l.b16 %v2885
        %v2995 = vunpack.c.h.b16 %v2885
        %v2996 = vunpack.c.l.b16 %v2886
        %v2997 = vunpack.c.h.b16 %v2886
        %v2998 = vunpack.c.l.b16 %v2887
        %v2999 = vunpack.c.h.b16 %v2887
        %v3000 = vpack.c.b16 %v2940, %v2936
        %v3001 = vpack.c.b16 %v2941, %v2937
        %v3002 = vpack.c.b16 %v2942, %v2938
        %v3003 = vpack.c.b16 %v2943, %v2939
        %v3004 = vpack.c.b16 %v2948, %v2944
        %v3005 = vpack.c.b16 %v2949, %v2945
        %v3006 = vpack.c.b16 %v2950, %v2946
        %v3007 = vpack.c.b16 %v2951, %v2947
        %v3008 = vpack.c.b16 %v2956, %v2952
        %v3009 = vpack.c.b16 %v2957, %v2953
        %v3010 = vpack.c.b16 %v2958, %v2954
        %v3011 = vpack.c.b16 %v2959, %v2955
        %v3012 = vpack.c.b16 %v2964, %v2960
        %v3013 = vpack.c.b16 %v2965, %v2961
        %v3014 = vpack.c.b16 %v2966, %v2962
        %v3015 = vpack.c.b16 %v2967, %v2963
        %v3016 = vpack.c.b16 %v2972, %v2968
        %v3017 = vpack.c.b16 %v2973, %v2969
        %v3018 = vpack.c.b16 %v2974, %v2970
        %v3019 = vpack.c.b16 %v2975, %v2971
        %v3020 = vpack.c.b16 %v2980, %v2976
        %v3021 = vpack.c.b16 %v2981, %v2977
        %v3022 = vpack.c.b16 %v2982, %v2978
        %v3023 = vpack.c.b16 %v2983, %v2979
        %v3024 = vpack.c.b16 %v2988, %v2984
        %v3025 = vpack.c.b16 %v2989, %v2985
        %v3026 = vpack.c.b16 %v2990, %v2986
        %v3027 = vpack.c.b16 %v2991, %v2987
        %v3028 = vpack.c.b16 %v2996, %v2992
        %v3029 = vpack.c.b16 %v2997, %v2993
        %v3030 = vpack.c.b16 %v2998, %v2994
        %v3031 = vpack.c.b16 %v2999, %v2995
        %3064 = vmatprep.subr.bf16.mxu0 %v3001
        %3065 = vmatpush1.bf16.msra.mxu0 %v3000
        %3066 = vmatprep.subr.bf16.mxu0 %v3005
        %3067 = vmatpush1.bf16.msra.mxu0 %v3004
        %3068 = vmatprep.subr.bf16.mxu0 %v3009
        %3069 = vmatpush1.bf16.msra.mxu0 %v3008
        %3070 = vmatprep.subr.bf16.mxu0 %v3013
        %3071 = vmatpush1.bf16.msra.mxu0 %v3012
        %3072 = vmatprep.subr.bf16.mxu0 %v3017
        %3073 = vmatpush1.bf16.msra.mxu0 %v3016
        %3074 = vmatprep.subr.bf16.mxu0 %v3021
        %3075 = vmatpush1.bf16.msra.mxu0 %v3020
        %3076 = vmatprep.subr.bf16.mxu0 %v3025
        %3077 = vmatpush1.bf16.msra.mxu0 %v3024
        %3078 = vmatprep.subr.bf16.mxu0 %v3029
        %3079 = vmatpush1.bf16.msra.mxu0 %v3028
        %3080 = vmatprep.subr.bf16.mxu0 0
        %3081 = vmatpush1.bf16.msra.mxu0 0
        %3082 = vmatprep.subr.bf16.mxu0 0
        %3083 = vmatpush1.bf16.msra.mxu0 0
        %3084 = vmatprep.subr.bf16.mxu0 0
        %3085 = vmatpush1.bf16.msra.mxu0 0
        %3086 = vmatprep.subr.bf16.mxu0 0
        %3087 = vmatpush1.bf16.msra.mxu0 0
        %3088 = vmatprep.subr.bf16.mxu0 0
        %3089 = vmatpush1.bf16.msra.mxu0 0
        %3090 = vmatprep.subr.bf16.mxu0 0
        %3091 = vmatpush1.bf16.msra.mxu0 0
        %3092 = vmatprep.subr.bf16.mxu0 0
        %3093 = vmatpush1.bf16.msra.mxu0 0
        %3094 = vmatprep.subr.bf16.mxu0 0
        %3095 = vmatpush1.bf16.msra.mxu0 0
        %3096 = vmatprep.mubr.bf16.mxu0 0
        %3097 = vmatmul.mubr.bf16.gmra.mrb[0].mxu0 %v2854
        %v3098 = vpop.f32.mrb[0].mxu0
        %v3099 = vadd.f32 %v2891, %v3098
        %v3100 = vpop.f32.mrb[0].mxu0
        %v3101 = vadd.f32 %v2895, %v3100
        %v3102 = vpop.f32.mrb[0].mxu0
        %v3103 = vadd.f32 %v2891, %v3102
        %v3104 = vpop.f32.mrb[0].mxu0
        %v3105 = vadd.f32 %v2895, %v3104
        %3106 = vmatprep.mubr.bf16.mxu0 0
        %3107 = vmatmul.mubr.bf16.gmra.mrb[0].mxu0 %v2855
        %v3108 = vpop.f32.mrb[0].mxu0
        %v3109 = vadd.f32 %v2891, %v3108
        %v3110 = vpop.f32.mrb[0].mxu0
        %v3111 = vadd.f32 %v2895, %v3110
        %v3112 = vpop.f32.mrb[0].mxu0
        %v3113 = vadd.f32 %v2891, %v3112
        %v3114 = vpop.f32.mrb[0].mxu0
        %v3115 = vadd.f32 %v2895, %v3114
        %3116 = vdwg.mxu0
        %3117 = vmatprep.subr.bf16.mxu0 %v3003
        %3118 = vmatpush1.bf16.msra.mxu0 %v3002
        %3119 = vmatprep.subr.bf16.mxu0 %v3007
        %3120 = vmatpush1.bf16.msra.mxu0 %v3006
        %3121 = vmatprep.subr.bf16.mxu0 %v3011
        %3122 = vmatpush1.bf16.msra.mxu0 %v3010
        %3123 = vmatprep.subr.bf16.mxu0 %v3015
        %3124 = vmatpush1.bf16.msra.mxu0 %v3014
        %3125 = vmatprep.subr.bf16.mxu0 %v3019
        %3126 = vmatpush1.bf16.msra.mxu0 %v3018
        %3127 = vmatprep.subr.bf16.mxu0 %v3023
        %3128 = vmatpush1.bf16.msra.mxu0 %v3022
        %3129 = vmatprep.subr.bf16.mxu0 %v3027
        %3130 = vmatpush1.bf16.msra.mxu0 %v3026
        %3131 = vmatprep.subr.bf16.mxu0 %v3031
        %3132 = vmatpush1.bf16.msra.mxu0 %v3030
        %3133 = vmatprep.subr.bf16.mxu0 0
        %3134 = vmatpush1.bf16.msra.mxu0 0
        %3135 = vmatprep.subr.bf16.mxu0 0
        %3136 = vmatpush1.bf16.msra.mxu0 0
        %3137 = vmatprep.subr.bf16.mxu0 0
        %3138 = vmatpush1.bf16.msra.mxu0 0
        %3139 = vmatprep.subr.bf16.mxu0 0
        %3140 = vmatpush1.bf16.msra.mxu0 0
        %3141 = vmatprep.subr.bf16.mxu0 0
        %3142 = vmatpush1.bf16.msra.mxu0 0
        %3143 = vmatprep.subr.bf16.mxu0 0
        %3144 = vmatpush1.bf16.msra.mxu0 0
        %3145 = vmatprep.subr.bf16.mxu0 0
        %3146 = vmatpush1.bf16.msra.mxu0 0
        %3147 = vmatprep.subr.bf16.mxu0 0
        %3148 = vmatpush1.bf16.msra.mxu0 0
        %3149 = vmatprep.mubr.bf16.mxu0 0
        %3150 = vmatmul.mubr.bf16.gmra.mrb[0].mxu0 %v2854
        %v3151 = vpop.f32.mrb[0].mxu0
        %v3152 = vadd.f32 %v2899, %v3151
        %v3153 = vpop.f32.mrb[0].mxu0
        %v3154 = vadd.f32 %v2903, %v3153
        %v3155 = vpop.f32.mrb[0].mxu0
        %v3156 = vadd.f32 %v2899, %v3155
        %v3157 = vpop.f32.mrb[0].mxu0
        %v3158 = vadd.f32 %v2903, %v3157
        %3159 = vmatprep.mubr.bf16.mxu0 0
        %3160 = vmatmul.mubr.bf16.gmra.mrb[0].mxu0 %v2855
        %v3161 = vpop.f32.mrb[0].mxu0
        %v3162 = vadd.f32 %v2899, %v3161
        %v3163 = vpop.f32.mrb[0].mxu0
        %v3164 = vadd.f32 %v2903, %v3163
        %v3165 = vpop.f32.mrb[0].mxu0
        %v3166 = vadd.f32 %v2899, %v3165
        %v3167 = vpop.f32.mrb[0].mxu0
        %v3168 = vadd.f32 %v2903, %v3167
        %3169 = vdwg.mxu0
        %v3170 = vmax.f32 %v3099, 0.0
        %v3171 = vmax.f32 %v3101, 0.0
        %v3172 = vmax.f32 %v3152, 0.0
        %v3173 = vmax.f32 %v3154, 0.0
        %v3174 = vmax.f32 %v3103, 0.0
        %v3175 = vmax.f32 %v3105, 0.0
        %v3176 = vmax.f32 %v3156, 0.0
        %v3177 = vmax.f32 %v3158, 0.0
        %v3178 = vmax.f32 %v3109, 0.0
        %v3179 = vmax.f32 %v3111, 0.0
        %v3180 = vmax.f32 %v3162, 0.0
        %v3181 = vmax.f32 %v3164, 0.0
        %v3182 = vmax.f32 %v3113, 0.0
        %v3183 = vmax.f32 %v3115, 0.0
        %v3184 = vmax.f32 %v3166, 0.0
        %v3185 = vmax.f32 %v3168, 0.0
        %v3186 = vpack.c.bf16 %v3174, %v3170
        %v3187 = vpack.c.bf16 %v3175, %v3171
        %v3188 = vpack.c.bf16 %v3176, %v3172
        %v3189 = vpack.c.bf16 %v3177, %v3173
        %v3190 = vpack.c.bf16 %v3182, %v3178
        %v3191 = vpack.c.bf16 %v3183, %v3179
        %v3192 = vpack.c.bf16 %v3184, %v3180
        %v3193 = vpack.c.bf16 %v3185, %v3181
        %v3194 = vld [vmem:[%s517] sm:$0xf]
        %v3195 = vld [vmem:[%s517 + $0x4] sm:$0xf]
        %v3196 = vld [vmem:[%s517 + $0x8] sm:$0xf]
        %v3197 = vld [vmem:[%s517 + $0xc] sm:$0xf]
        %v3198 = vld [vmem:[%s517 + $0x10] sm:$0xf]
        %v3199 = vld [vmem:[%s517 + $0x14] sm:$0xf]
        %v3200 = vld [vmem:[%s517 + $0x18] sm:$0xf]
        %v3201 = vld [vmem:[%s517 + $0x1c] sm:$0xf]
        %v3202 = vld [vmem:[%s517 + $0x20] sm:$0xf]
        %v3203 = vld [vmem:[%s517 + $0x24] sm:$0xf]
        %v3204 = vld [vmem:[%s517 + $0x28] sm:$0xf]
        %v3205 = vld [vmem:[%s517 + $0x2c] sm:$0xf]
        %v3206 = vld [vmem:[%s517 + $0x30] sm:$0xf]
        %v3207 = vld [vmem:[%s517 + $0x34] sm:$0xf]
        %v3208 = vld [vmem:[%s517 + $0x38] sm:$0xf]
        %v3209 = vld [vmem:[%s517 + $0x3c] sm:$0xf]
        %v3210 = vld [vmem:[%s517 + $0x40] sm:$0xf]
        %v3211 = vld [vmem:[%s517 + $0x44] sm:$0xf]
        %v3212 = vld [vmem:[%s517 + $0x48] sm:$0xf]
        %v3213 = vld [vmem:[%s517 + $0x4c] sm:$0xf]
        %v3214 = vld [vmem:[%s517 + $0x50] sm:$0xf]
        %v3215 = vld [vmem:[%s517 + $0x54] sm:$0xf]
        %v3216 = vld [vmem:[%s517 + $0x58] sm:$0xf]
        %v3217 = vld [vmem:[%s517 + $0x5c] sm:$0xf]
        %v3218 = vld [vmem:[%s517 + $0x60] sm:$0xf]
        %v3219 = vld [vmem:[%s517 + $0x64] sm:$0xf]
        %v3220 = vld [vmem:[%s517 + $0x68] sm:$0xf]
        %v3221 = vld [vmem:[%s517 + $0x6c] sm:$0xf]
        %v3222 = vld [vmem:[%s517 + $0x70] sm:$0xf]
        %v3223 = vld [vmem:[%s517 + $0x74] sm:$0xf]
        %v3224 = vld [vmem:[%s517 + $0x78] sm:$0xf]
        %v3225 = vld [vmem:[%s517 + $0x7c] sm:$0xf]
        %v3226 = vld [vmem:[%s517 + $0x80] sm:$0xf]
        %v3227 = vld [vmem:[%s517 + $0x84] sm:$0xf]
        %v3228 = vld [vmem:[%s517 + $0x88] sm:$0xf]
        %v3229 = vld [vmem:[%s517 + $0x8c] sm:$0xf]
        %v3230 = vld [vmem:[%s517 + $0x90] sm:$0xf]
        %v3231 = vld [vmem:[%s517 + $0x94] sm:$0xf]
        %v3232 = vld [vmem:[%s517 + $0x98] sm:$0xf]
        %v3233 = vld [vmem:[%s517 + $0x9c] sm:$0xf]
        %v3234 = vld [vmem:[%s517 + $0xa0] sm:$0xf]
        %v3235 = vld [vmem:[%s517 + $0xa4] sm:$0xf]
        %v3236 = vld [vmem:[%s517 + $0xa8] sm:$0xf]
        %v3237 = vld [vmem:[%s517 + $0xac] sm:$0xf]
        %v3238 = vld [vmem:[%s517 + $0xb0] sm:$0xf]
        %v3239 = vld [vmem:[%s517 + $0xb4] sm:$0xf]
        %v3240 = vld [vmem:[%s517 + $0xb8] sm:$0xf]
        %v3241 = vld [vmem:[%s517 + $0xbc] sm:$0xf]
        %v3242 = vld [vmem:[%s517 + $0xc0] sm:$0xf]
        %v3243 = vld [vmem:[%s517 + $0xc4] sm:$0xf]
        %v3244 = vld [vmem:[%s517 + $0xc8] sm:$0xf]
        %v3245 = vld [vmem:[%s517 + $0xcc] sm:$0xf]
        %v3246 = vld [vmem:[%s517 + $0xd0] sm:$0xf]
        %v3247 = vld [vmem:[%s517 + $0xd4] sm:$0xf]
        %v3248 = vld [vmem:[%s517 + $0xd8] sm:$0xf]
        %v3249 = vld [vmem:[%s517 + $0xdc] sm:$0xf]
        %v3250 = vld [vmem:[%s517 + $0xe0] sm:$0xf]
        %v3251 = vld [vmem:[%s517 + $0xe4] sm:$0xf]
        %v3252 = vld [vmem:[%s517 + $0xe8] sm:$0xf]
        %v3253 = vld [vmem:[%s517 + $0xec] sm:$0xf]
        %v3254 = vld [vmem:[%s517 + $0xf0] sm:$0xf]
        %v3255 = vld [vmem:[%s517 + $0xf4] sm:$0xf]
        %v3256 = vld [vmem:[%s517 + $0xf8] sm:$0xf]
        %v3257 = vld [vmem:[%s517 + $0xfc] sm:$0xf]
        %v3258 = vlaneseq
        %v3259 = vshrl.u32 %v3258, 7
        %v3260 = vsub.s32 1, %v3259
        %v3261 = vrot.slane %v2781, %v3260
        %v3326 = vunpack.c.l.b16 %v3194
        %v3327 = vunpack.c.l.b16 %v3195
        %v3328 = vunpack.c.l.b16 %v3196
        %v3329 = vunpack.c.l.b16 %v3197
        %v3330 = vunpack.c.l.b16 %v3198
        %v3331 = vunpack.c.l.b16 %v3199
        %v3332 = vunpack.c.l.b16 %v3200
        %v3333 = vunpack.c.l.b16 %v3201
        %v3334 = vunpack.c.l.b16 %v3202
        %v3335 = vunpack.c.l.b16 %v3203
        %v3336 = vunpack.c.l.b16 %v3204
        %v3337 = vunpack.c.l.b16 %v3205
        %v3338 = vunpack.c.l.b16 %v3206
        %v3339 = vunpack.c.l.b16 %v3207
        %v3340 = vunpack.c.l.b16 %v3208
        %v3341 = vunpack.c.l.b16 %v3209
        %v3342 = vunpack.c.l.b16 %v3210
        %v3343 = vunpack.c.l.b16 %v3211
        %v3344 = vunpack.c.l.b16 %v3212
        %v3345 = vunpack.c.l.b16 %v3213
        %v3346 = vunpack.c.l.b16 %v3214
        %v3347 = vunpack.c.l.b16 %v3215
        %v3348 = vunpack.c.l.b16 %v3216
        %v3349 = vunpack.c.l.b16 %v3217
        %v3350 = vunpack.c.l.b16 %v3218
        %v3351 = vunpack.c.l.b16 %v3219
        %v3352 = vunpack.c.l.b16 %v3220
        %v3353 = vunpack.c.l.b16 %v3221
        %v3354 = vunpack.c.l.b16 %v3222
        %v3355 = vunpack.c.l.b16 %v3223
        %v3356 = vunpack.c.l.b16 %v3224
        %v3357 = vunpack.c.l.b16 %v3225
        %v3358 = vunpack.c.l.b16 %v3226
        %v3359 = vunpack.c.l.b16 %v3227
        %v3360 = vunpack.c.l.b16 %v3228
        %v3361 = vunpack.c.l.b16 %v3229
        %v3362 = vunpack.c.l.b16 %v3230
        %v3363 = vunpack.c.l.b16 %v3231
        %v3364 = vunpack.c.l.b16 %v3232
        %v3365 = vunpack.c.l.b16 %v3233
        %v3366 = vunpack.c.l.b16 %v3234
        %v3367 = vunpack.c.l.b16 %v3235
        %v3368 = vunpack.c.l.b16 %v3236
        %v3369 = vunpack.c.l.b16 %v3237
        %v3370 = vunpack.c.l.b16 %v3238
        %v3371 = vunpack.c.l.b16 %v3239
        %v3372 = vunpack.c.l.b16 %v3240
        %v3373 = vunpack.c.l.b16 %v3241
        %v3374 = vunpack.c.l.b16 %v3242
        %v3375 = vunpack.c.l.b16 %v3243
        %v3376 = vunpack.c.l.b16 %v3244
        %v3377 = vunpack.c.l.b16 %v3245
        %v3378 = vunpack.c.l.b16 %v3246
        %v3379 = vunpack.c.l.b16 %v3247
        %v3380 = vunpack.c.l.b16 %v3248
        %v3381 = vunpack.c.l.b16 %v3249
        %v3382 = vunpack.c.l.b16 %v3250
        %v3383 = vunpack.c.l.b16 %v3251
        %v3384 = vunpack.c.l.b16 %v3252
        %v3385 = vunpack.c.l.b16 %v3253
        %v3386 = vunpack.c.l.b16 %v3254
        %v3387 = vunpack.c.l.b16 %v3255
        %v3388 = vunpack.c.l.b16 %v3256
        %v3389 = vunpack.c.l.b16 %v3257
        %v3390 = vpack.c.b16 %v3327, %v3326
        %v3391 = vpack.c.b16 %v3329, %v3328
        %v3392 = vpack.c.b16 %v3331, %v3330
        %v3393 = vpack.c.b16 %v3333, %v3332
        %v3394 = vpack.c.b16 %v3335, %v3334
        %v3395 = vpack.c.b16 %v3337, %v3336
        %v3396 = vpack.c.b16 %v3339, %v3338
        %v3397 = vpack.c.b16 %v3341, %v3340
        %v3398 = vpack.c.b16 %v3343, %v3342
        %v3399 = vpack.c.b16 %v3345, %v3344
        %v3400 = vpack.c.b16 %v3347, %v3346
        %v3401 = vpack.c.b16 %v3349, %v3348
        %v3402 = vpack.c.b16 %v3351, %v3350
        %v3403 = vpack.c.b16 %v3353, %v3352
        %v3404 = vpack.c.b16 %v3355, %v3354
        %v3405 = vpack.c.b16 %v3357, %v3356
        %v3406 = vpack.c.b16 %v3359, %v3358
        %v3407 = vpack.c.b16 %v3361, %v3360
        %v3408 = vpack.c.b16 %v3363, %v3362
        %v3409 = vpack.c.b16 %v3365, %v3364
        %v3410 = vpack.c.b16 %v3367, %v3366
        %v3411 = vpack.c.b16 %v3369, %v3368
        %v3412 = vpack.c.b16 %v3371, %v3370
        %v3413 = vpack.c.b16 %v3373, %v3372
        %v3414 = vpack.c.b16 %v3375, %v3374
        %v3415 = vpack.c.b16 %v3377, %v3376
        %v3416 = vpack.c.b16 %v3379, %v3378
        %v3417 = vpack.c.b16 %v3381, %v3380
        %v3418 = vpack.c.b16 %v3383, %v3382
        %v3419 = vpack.c.b16 %v3385, %v3384
        %v3420 = vpack.c.b16 %v3387, %v3386
        %v3421 = vpack.c.b16 %v3389, %v3388
        %3454 = vmatprep.subr.bf16.mxu0 0
        %3455 = vmatpush1.bf16.msra.mxu0 %v3390
        %3456 = vmatprep.subr.bf16.mxu0 0
        %3457 = vmatpush1.bf16.msra.mxu0 %v3391
        %3458 = vmatprep.subr.bf16.mxu0 0
        %3459 = vmatpush1.bf16.msra.mxu0 %v3392
        %3460 = vmatprep.subr.bf16.mxu0 0
        %3461 = vmatpush1.bf16.msra.mxu0 %v3393
        %3462 = vmatprep.subr.bf16.mxu0 0
        %3463 = vmatpush1.bf16.msra.mxu0 %v3394
        %3464 = vmatprep.subr.bf16.mxu0 0
        %3465 = vmatpush1.bf16.msra.mxu0 %v3395
        %3466 = vmatprep.subr.bf16.mxu0 0
        %3467 = vmatpush1.bf16.msra.mxu0 %v3396
        %3468 = vmatprep.subr.bf16.mxu0 0
        %3469 = vmatpush1.bf16.msra.mxu0 %v3397
        %3470 = vmatprep.subr.bf16.mxu0 0
        %3471 = vmatpush1.bf16.msra.mxu0 %v3398
        %3472 = vmatprep.subr.bf16.mxu0 0
        %3473 = vmatpush1.bf16.msra.mxu0 %v3399
        %3474 = vmatprep.subr.bf16.mxu0 0
        %3475 = vmatpush1.bf16.msra.mxu0 %v3400
        %3476 = vmatprep.subr.bf16.mxu0 0
        %3477 = vmatpush1.bf16.msra.mxu0 %v3401
        %3478 = vmatprep.subr.bf16.mxu0 0
        %3479 = vmatpush1.bf16.msra.mxu0 %v3402
        %3480 = vmatprep.subr.bf16.mxu0 0
        %3481 = vmatpush1.bf16.msra.mxu0 %v3403
        %3482 = vmatprep.subr.bf16.mxu0 0
        %3483 = vmatpush1.bf16.msra.mxu0 %v3404
        %3484 = vmatprep.subr.bf16.mxu0 0
        %3485 = vmatpush1.bf16.msra.mxu0 %v3405
        %3486 = vmatprep.mubr.bf16.mxu0 %v3187
        %3487 = vmatmul.mubr.bf16.gmra.mrb[0].mxu0 %v3186
        %v3488 = vpop.f32.mrb[0].mxu0
        %v3489 = vadd.f32 %v3261, %v3488
        %v3490 = vpop.f32.mrb[0].mxu0
        %v3491 = vpop.f32.mrb[0].mxu0
        %v3492 = vadd.f32 %v3261, %v3491
        %v3493 = vpop.f32.mrb[0].mxu0
        %3494 = vmatprep.mubr.bf16.mxu0 %v3191
        %3495 = vmatmul.mubr.bf16.gmra.mrb[0].mxu0 %v3190
        %v3496 = vpop.f32.mrb[0].mxu0
        %v3497 = vadd.f32 %v3261, %v3496
        %v3498 = vpop.f32.mrb[0].mxu0
        %v3499 = vpop.f32.mrb[0].mxu0
        %v3500 = vadd.f32 %v3261, %v3499
        %v3501 = vpop.f32.mrb[0].mxu0
        %3502 = vdwg.mxu0
        %3503 = vmatprep.subr.bf16.mxu0 0
        %3504 = vmatpush1.bf16.msra.mxu0 %v3406
        %3505 = vmatprep.subr.bf16.mxu0 0
        %3506 = vmatpush1.bf16.msra.mxu0 %v3407
        %3507 = vmatprep.subr.bf16.mxu0 0
        %3508 = vmatpush1.bf16.msra.mxu0 %v3408
        %3509 = vmatprep.subr.bf16.mxu0 0
        %3510 = vmatpush1.bf16.msra.mxu0 %v3409
        %3511 = vmatprep.subr.bf16.mxu0 0
        %3512 = vmatpush1.bf16.msra.mxu0 %v3410
        %3513 = vmatprep.subr.bf16.mxu0 0
        %3514 = vmatpush1.bf16.msra.mxu0 %v3411
        %3515 = vmatprep.subr.bf16.mxu0 0
        %3516 = vmatpush1.bf16.msra.mxu0 %v3412
        %3517 = vmatprep.subr.bf16.mxu0 0
        %3518 = vmatpush1.bf16.msra.mxu0 %v3413
        %3519 = vmatprep.subr.bf16.mxu0 0
        %3520 = vmatpush1.bf16.msra.mxu0 %v3414
        %3521 = vmatprep.subr.bf16.mxu0 0
        %3522 = vmatpush1.bf16.msra.mxu0 %v3415
        %3523 = vmatprep.subr.bf16.mxu0 0
        %3524 = vmatpush1.bf16.msra.mxu0 %v3416
        %3525 = vmatprep.subr.bf16.mxu0 0
        %3526 = vmatpush1.bf16.msra.mxu0 %v3417
        %3527 = vmatprep.subr.bf16.mxu0 0
        %3528 = vmatpush1.bf16.msra.mxu0 %v3418
        %3529 = vmatprep.subr.bf16.mxu0 0
        %3530 = vmatpush1.bf16.msra.mxu0 %v3419
        %3531 = vmatprep.subr.bf16.mxu0 0
        %3532 = vmatpush1.bf16.msra.mxu0 %v3420
        %3533 = vmatprep.subr.bf16.mxu0 0
        %3534 = vmatpush1.bf16.msra.mxu0 %v3421
        %3535 = vmatprep.mubr.bf16.mxu0 %v3189
        %3536 = vmatmul.mubr.bf16.gmra.mrb[0].mxu0 %v3188
        %v3537 = vpop.f32.mrb[0].mxu0
        %v3538 = vadd.f32 %v3489, %v3537
        %v3539 = vpop.f32.mrb[0].mxu0
        %v3540 = vpop.f32.mrb[0].mxu0
        %v3541 = vadd.f32 %v3492, %v3540
        %v3542 = vpop.f32.mrb[0].mxu0
        %3543 = vmatprep.mubr.bf16.mxu0 %v3193
        %3544 = vmatmul.mubr.bf16.gmra.mrb[0].mxu0 %v3192
        %v3545 = vpop.f32.mrb[0].mxu0
        %v3546 = vadd.f32 %v3497, %v3545
        %v3547 = vpop.f32.mrb[0].mxu0
        %v3548 = vpop.f32.mrb[0].mxu0
        %v3549 = vadd.f32 %v3500, %v3548
        %v3550 = vpop.f32.mrb[0].mxu0
        %3551 = vdwg.mxu0
        %v3552 = vadd.f32 %v3538, %v2850
        %v3553 = vadd.f32 %v3541, %v2851
        %v3554 = vadd.f32 %v3546, %v2852
        %v3555 = vadd.f32 %v3549, %v2853
        %3556 = vadd.xlane.f32.xlu0 %v3552
        %v3557 = vpop.xlane.xlu0 %3556
        %3558 = vadd.xlane.f32.xlu0 %v3553
        %v3559 = vpop.xlane.xlu0 %3558
        %3560 = vadd.xlane.f32.xlu0 %v3554
        %v3561 = vpop.xlane.xlu0 %3560
        %3562 = vadd.xlane.f32.xlu0 %v3555
        %v3563 = vpop.xlane.xlu0 %3562
        %v3564 = vmul.f32 %v3557, %v2793
        %v3565 = vmul.f32 %v3559, %v2793
        %v3566 = vmul.f32 %v3561, %v2793
        %v3567 = vmul.f32 %v3563, %v2793
        %v3568 = vmul.f32 %v3552, %v3552
        %v3569 = vmul.f32 %v3553, %v3553
        %v3570 = vmul.f32 %v3554, %v3554
        %v3571 = vmul.f32 %v3555, %v3555
        %3572 = vadd.xlane.f32.xlu0 %v3568
        %v3573 = vpop.xlane.xlu0 %3572
        %3574 = vadd.xlane.f32.xlu0 %v3569
        %v3575 = vpop.xlane.xlu0 %3574
        %3576 = vadd.xlane.f32.xlu0 %v3570
        %v3577 = vpop.xlane.xlu0 %3576
        %3578 = vadd.xlane.f32.xlu0 %v3571
        %v3579 = vpop.xlane.xlu0 %3578
        %v3580 = vmul.f32 %v3573, %v2793
        %v3581 = vmul.f32 %v3575, %v2793
        %v3582 = vmul.f32 %v3577, %v2793
        %v3583 = vmul.f32 %v3579, %v2793
        %v3584 = vmul.f32 %v3564, %v3564
        %v3585 = vmul.f32 %v3565, %v3565
        %v3586 = vmul.f32 %v3566, %v3566
        %v3587 = vmul.f32 %v3567, %v3567
        %v3588 = vsub.f32 %v3580, %v3584
        %v3589 = vsub.f32 %v3581, %v3585
        %v3590 = vsub.f32 %v3582, %v3586
        %v3591 = vsub.f32 %v3583, %v3587
        %v3592 = vsub.f32 %v3552, %v3564
        %v3593 = vsub.f32 %v3553, %v3565
        %v3594 = vsub.f32 %v3554, %v3566
        %v3595 = vsub.f32 %v3555, %v3567
        %v3596 = vadd.f32 %v3588, 1e-05
        %v3597 = vadd.f32 %v3589, 1e-05
        %v3598 = vadd.f32 %v3590, 1e-05
        %v3599 = vadd.f32 %v3591, 1e-05
        %v3600 = vrsqrt.pop %v3596
        %v3601 = vrsqrt.pop %v3597
        %v3602 = vrsqrt.pop %v3598
        %v3603 = vrsqrt.pop %v3599
        %v3604 = vmul.f32 %v3592, %v3600
        %v3605 = vmul.f32 %v3593, %v3601
        %v3606 = vmul.f32 %v3594, %v3602
        %v3607 = vmul.f32 %v3595, %v3603
        %v3608 = vlaneseq
        %v3609 = vshrl.u32 %v3608, 7
        %v3610 = vsub.s32 4, %v3609
        %v3611 = vrot.slane %v2781, %v3610
        %v3612 = vmul.f32 %v3604, %v3611
        %v3613 = vmul.f32 %v3605, %v3611
        %v3614 = vmul.f32 %v3606, %v3611
        %v3615 = vmul.f32 %v3607, %v3611
        %v3616 = vlaneseq
        %v3617 = vshrl.u32 %v3616, 7
        %v3618 = vsub.s32 5, %v3617
        %v3619 = vrot.slane %v2781, %v3618
        %v3620 = vadd.f32 %v3612, %v3619
        %v3621 = vadd.f32 %v3613, %v3619
        %v3622 = vadd.f32 %v3614, %v3619
        %v3623 = vadd.f32 %v3615, %v3619
        %3624 = vst [vmem:[#allocation14] sm:$0xff] %v3620
        %3625 = vst [vmem:[#allocation14 + $0x8] sm:$0xff] %v3621
        %3626 = vst [vmem:[#allocation14 + $0x10] sm:$0xff] %v3622
        %3627 = vst [vmem:[#allocation14 + $0x18] sm:$0xff] %v3623
        // Predicated region
        $region97: #{tpu_custom_call.1} parent=55 // pred_check
          %p3628 = pneg %p260
        $region98: #{tpu_custom_call.1} parent=55 // pred_check_branch
          %3630 = sbr.rel (%p3628) target = $region100
        $region99: #{tpu_custom_call.1} parent=55 // pred_region
          %s3632 = ssub.s32 512, 512
          %3633 = vsyncadd [#allocation4], %s3632
          %s3634 = sshll.u32 [#allocation14], 4
          %s3635 = int_to_ptr.vmem [resolvable:$true] %s3634
          %3640 = dma.vmem_to_hbm [thread:$0]  %s3635, 512, %s9, [#allocation4], 128, 128, 8
        $region100: #{tpu_custom_call.1} parent=55 // pred_fallthru
          _
        // Predicated region
        $region101: #{tpu_custom_call.1} parent=55 // pred_check
          %p3641 = pneg %p260
        $region102: #{tpu_custom_call.1} parent=55 // pred_check_branch
          %3643 = sbr.rel (%p3641) target = $region104
        $region103: #{tpu_custom_call.1} parent=55 // pred_region
          %3644 = dma.done [#allocation4], 512
        $region104: #{tpu_custom_call.1} parent=55 // pred_fallthru
          _
      $region56: #{tpu_custom_call.1} parent=5 // pred_fallthru
        _
      %p3645 = scmp.le.s32.totalorder 2, %s18
      // Predicated region
      $region105: #{tpu_custom_call.1} parent=5 // pred_check
        %p3646 = pneg %p3645
      $region106: #{tpu_custom_call.1} parent=5 // pred_check_branch
        %3648 = sbr.rel (%p3646) target = $region108
      $region107: #{tpu_custom_call.1} parent=5 // pred_region
        %s3649 = ssub.s32 %s18, 2
      $region108: #{tpu_custom_call.1} parent=5 // pred_fallthru
        _
    $region6: #{tpu_custom_call.1} parent=1 // loop_footer
      %s22 = sadd.s32 1, %s18
    $region7: #{tpu_custom_call.1} parent=1 // loop_footer_branch
      %17 = sbr.rel target = $region3
    $region8: #{tpu_custom_call.1} parent=1 // loop_exit
      _
    %3650 = vsyncpa [#allocation3], 1
    %s3651 = scalar_lea.sflag [#allocation3], 1
    %3652 = vsyncpa %s3651, 1
    %3653 = vsyncpa [#allocation6], 1
    %3654 = vsyncpa [#allocation4], 1
    %s3655 = scalar_lea.sflag [#allocation4], 1
    %3656 = vsyncpa %s3655, 1

</llo_original>
